<compile_context>
chip_gen: v7x
topology: tpu7x:2x2x1
jax: 0.10.0
libtpu: 0.0.40
codegen_flags: <defaults>
</compile_context>

<pallas_src>
import jax
import jax.numpy as jnp
import numpy as np
from jax import lax
from jax.experimental import pallas as pl
from jax.experimental.pallas import tpu as pltpu

NUM_CLASSES = 10
FC_LANES = 128                    # lane-dense FC output block; slice [:, :10] outside
COMPUTE_DTYPE = jnp.bfloat16      # MXU inputs; accumulation / epilogue stay f32
MAX_BATCH_TILE = 8                # images per conv grid step


def _round_up(x, m):
    return (x + m - 1) // m * m


# ----------------------------- Pallas kernels ------------------------------


def _conv_relu_pool_kernel(x_ref, w_ref, b_ref, o_ref):
    """Conv2d(3x3, pad=1) + bias + ReLU + MaxPool2d(2) for a tile of BT images.

    x_ref: [BT, 4, P, K]  im2col patches, one branch per 2x2 pool offset;
                          P = Ho*Wo padded to a multiple of 8, K = 9*Cin.
    w_ref: [K, Cout] (bf16);  b_ref: [1, Cout] (f32);  o_ref: [BT, P, Cout].
    """
    bt, _, p, k = x_ref.shape
    cout = w_ref.shape[1]
    # Single merged MXU call over all BT images x 4 pool offsets.
    # (p % 8 == 0 keeps these reshapes tile-aligned -> free.)
    acc = jnp.dot(x_ref[...].reshape(bt * 4 * p, k), w_ref[...],
                  preferred_element_type=jnp.float32)
    acc = acc.reshape(bt, 4, p, cout)
    # MaxPool2d(2) == elementwise max over the 4 offset branches; bias/ReLU
    # hoisted after the max (bias identical per branch, ReLU monotone).
    m = jnp.maximum(jnp.maximum(acc[:, 0], acc[:, 1]),
                    jnp.maximum(acc[:, 2], acc[:, 3]))
    o_ref[...] = jnp.maximum(m + b_ref[...], 0.0).astype(o_ref.dtype)


def _linear_kernel(x_ref, w_ref, b_ref, o_ref):
    # x_ref: [BT, F] bf16;  w_ref: [F, FC_LANES] bf16 (zero-padded columns);
    # b_ref: [1, FC_LANES] f32;  o_ref: [BT, FC_LANES] f32 (lane-dense store).
    o_ref[...] = (jnp.dot(x_ref[...], w_ref[...],
                          preferred_element_type=jnp.float32) + b_ref[...])


# --------------------------- pallas_call wrappers ---------------------------


def conv_relu_pool(x4, w, b, bt):
    """x4: [B_pad, 4, P, K], w: [K, Cout], b: [1, Cout] -> [B_pad, P, Cout]."""
    bp, _, p, k = x4.shape
    cout = w.shape[1]
    return pl.pallas_call(
        _conv_relu_pool_kernel,
        out_shape=jax.ShapeDtypeStruct((bp, p, cout), COMPUTE_DTYPE),
        grid=(bp // bt,),
        in_specs=[
            pl.BlockSpec((bt, 4, p, k), lambda i: (i, 0, 0, 0)),
            pl.BlockSpec((k, cout), lambda i: (0, 0)),
            pl.BlockSpec((1, cout), lambda i: (0, 0)),
        ],
        out_specs=pl.BlockSpec((bt, p, cout), lambda i: (i, 0, 0)),
        compiler_params=pltpu.CompilerParams(dimension_semantics=("parallel",)),
    )(x4, w, b)


def linear(x, w, b, bt):
    """x: [B_pad, F], w: [F, FC_LANES], b: [1, FC_LANES] -> [B_pad, FC_LANES]."""
    bp, f = x.shape
    return pl.pallas_call(
        _linear_kernel,
        out_shape=jax.ShapeDtypeStruct((bp, FC_LANES), jnp.float32),
        grid=(bp // bt,),
        in_specs=[
            pl.BlockSpec((bt, f), lambda i: (i, 0)),
            pl.BlockSpec((f, FC_LANES), lambda i: (0, 0)),
            pl.BlockSpec((1, FC_LANES), lambda i: (0, 0)),
        ],
        out_specs=pl.BlockSpec((bt, FC_LANES), lambda i: (i, 0)),
        compiler_params=pltpu.CompilerParams(dimension_semantics=("parallel",)),
    )(x, w, b)


# ----------------------------------- Glue -----------------------------------


def _im2col_3x3(xp):
    """xp: [B, H+2, W+2, Cin] (zero-padded) -> [B, H, W, 9*Cin], (kh,kw,cin) order."""
    B, Hp, Wp, cin = xp.shape
    H, W = Hp - 2, Wp - 2
    taps = [xp[:, kh:kh + H, kw:kw + W, :] for kh in range(3) for kw in range(3)]
    return jnp.stack(taps, axis=3).reshape(B, H, W, 9 * cin)


def _pool_split(xc, p_pad):
    """xc: [B, H, W, K] -> [B, 4, p_pad, K]; one branch per 2x2 offset, rows
    ordered (ho, wo) row-major, zero-padded from Ho*Wo to p_pad."""
    B, H, W, K = xc.shape
    Ho, Wo = H // 2, W // 2
    parts = [xc[:, dh::2, dw::2, :].reshape(B, Ho * Wo, K)
             for dh in range(2) for dw in range(2)]
    x4 = jnp.stack(parts, axis=1)
    return jnp.pad(x4, ((0, 0), (0, 0), (0, p_pad - Ho * Wo), (0, 0)))


def _conv_block(x_nhwc, w_oihw, b, bt):
    """Conv2d(3x3,pad=1)+ReLU+MaxPool2d(2) -> ([B_pad, p_pad, Cout], (Ho,Wo,p_pad))."""
    B, H, W, cin = x_nhwc.shape
    cout = w_oihw.shape[0]
    Ho, Wo = H // 2, W // 2
    p_pad = _round_up(Ho * Wo, 8)
    xp = jnp.pad(x_nhwc, ((0, 0), (1, 1), (1, 1), (0, 0)))
    x4 = _pool_split(_im2col_3x3(xp), p_pad).astype(COMPUTE_DTYPE)
    wm = jnp.transpose(w_oihw, (2, 3, 1, 0)).reshape(9 * cin, cout)
    y = conv_relu_pool(x4, wm.astype(COMPUTE_DTYPE),
                       b.reshape(1, cout).astype(jnp.float32), bt)
    return y, (Ho, Wo, p_pad)


@jax.jit
def forward(x_nchw, params):
    """Matches ImageClassifier.forward: NCHW [B, 1, 28, 28] -> [B, 10] (f32)."""
    w1, b1, w2, b2, wfc, bfc = params
    B = x_nchw.shape[0]

    # Batch tile: >=2 grid steps whenever B>=2 (v7x has 2 TensorCores), BT<=8.
    bt = max(1, min(MAX_BATCH_TILE, B // 2))
    b_pad = _round_up(B, bt)

    x = jnp.transpose(x_nchw, (0, 2, 3, 1)).astype(COMPUTE_DTYPE)   # NHWC, bf16
    if b_pad != B:
        x = jnp.pad(x, ((0, b_pad - B), (0, 0), (0, 0), (0, 0)))

    h1, (h1o, w1o, p1) = _conv_block(x, w1, b1, bt)          # [B_pad, 200, 32]
    h1_map = h1[:, :h1o * w1o, :].reshape(b_pad, h1o, w1o, w1.shape[0])
    h2, (h2o, w2o, p2) = _conv_block(h1_map, w2, b2, bt)     # [B_pad, 56, 64]

    # FC: fold the PyTorch NCHW-flatten permutation AND the padded pool rows
    # into a zero-padded weight ([p2*Cout2, 128]); lane-dense output block.
    cout2 = w2.shape[0]
    wp = wfc.reshape(NUM_CLASSES, cout2, h2o, w2o).transpose(2, 3, 1, 0)
    wp = wp.reshape(h2o * w2o, cout2, NUM_CLASSES)
    wp = jnp.pad(wp, ((0, p2 - h2o * w2o), (0, 0), (0, FC_LANES - NUM_CLASSES)))
    wp = wp.reshape(p2 * cout2, FC_LANES).astype(COMPUTE_DTYPE)
    bp = jnp.pad(bfc, (0, FC_LANES - NUM_CLASSES)).reshape(1, FC_LANES)
    bp = bp.astype(jnp.float32)

    flat = h2.reshape(b_pad, p2 * cout2)                     # bf16, padded rows
    btf = min(128, b_pad)
    bpf = _round_up(b_pad, btf)
    if bpf != b_pad:
        flat = jnp.pad(flat, ((0, bpf - b_pad), (0, 0)))
    logits = linear(flat, wp, bp, btf)                       # [bpf, 128] f32
    return logits[:B, :NUM_CLASSES]


# ------------------------- pure-JAX reference check -------------------------


def reference_forward(x, params):
    w1, b1, w2, b2, wfc, bfc = params
    dn = ("NCHW", "OIHW", "NCHW")
    y = lax.conv_general_dilated(x, w1, (1, 1), "SAME", dimension_numbers=dn)
    y = jnp.maximum(y + b1[None, :, None, None], 0.0)
    y = lax.reduce_window(y, -jnp.inf, lax.max, (1, 1, 2, 2), (1, 1, 2, 2), "VALID")
    y = lax.conv_general_dilated(y, w2, (1, 1), "SAME", dimension_numbers=dn)
    y = jnp.maximum(y + b2[None, :, None, None], 0.0)
    y = lax.reduce_window(y, -jnp.inf, lax.max, (1, 1, 2, 2), (1, 1, 2, 2), "VALID")
    y = y.reshape(y.shape[0], -1)                    # NCHW flatten (c, h, w)
    return y @ wfc.T + bfc


# ----------------------------------- main -----------------------------------


if __name__ == "__main__":
    key = jax.random.PRNGKey(0)
    k = jax.random.split(key, 7)
    B = 2
    # Spatial size must be 28x28 so that Linear(64*7*7, 10) matches the module.
    x = jax.random.normal(k[0], (B, 1, 28, 28), jnp.float32)

    w1 = 0.10 * jax.random.normal(k[1], (32, 1, 3, 3), jnp.float32)
    b1 = 0.10 * jax.random.normal(k[2], (32,), jnp.float32)
    w2 = 0.05 * jax.random.normal(k[3], (64, 32, 3, 3), jnp.float32)
    b2 = 0.05 * jax.random.normal(k[4], (64,), jnp.float32)
    wfc = 0.02 * jax.random.normal(k[5], (NUM_CLASSES, 64 * 7 * 7), jnp.float32)
    bfc = 0.02 * jax.random.normal(k[6], (NUM_CLASSES,), jnp.float32)
    params = (w1, b1, w2, b2, wfc, bfc)

    out = forward(x, params)
    out = jax.block_until_ready(out)
    assert out.shape == (B, NUM_CLASSES)

    # Tolerance sized for the bf16 matmul-operand path (f32 accumulation).
    ref = reference_forward(x, params)
    np.testing.assert_allclose(np.asarray(out), np.asarray(ref),
                               rtol=2e-2, atol=2e-2)

    print("KERNEL_OK")
</pallas_src>

<mosaic_0001>
module attributes {stable_mosaic.version = 11 : i64} {
  func.func @_conv_relu_pool_kernel(%arg0: i32, %arg1: memref<1x4x200x9xbf16, #tpu.memory_space<vmem>>, %arg2: memref<9x32xbf16, #tpu.memory_space<vmem>>, %arg3: memref<1x32xf32, #tpu.memory_space<vmem>>, %arg4: memref<1x200x32xbf16, #tpu.memory_space<vmem>>) attributes {dimension_semantics = [#tpu.dimension_semantics<parallel>], iteration_bounds = array<i64: 2>, scalar_prefetch = 0 : i64, scratch_operands = 0 : i64, tpu.core_type = #tpu.core_type<tc>, window_params = [{transform_indices = @transform_0, window_bounds = array<i64: 1, 4, 200, 9>}, {pipeline_mode = #tpu.pipeline_mode<synchronous>, transform_indices = @transform_1, window_bounds = array<i64: 9, 32>}, {pipeline_mode = #tpu.pipeline_mode<synchronous>, transform_indices = @transform_2, window_bounds = array<i64: 1, 32>}, {transform_indices = @transform_3, window_bounds = array<i64: 1, 200, 32>}]} {
    %c0 = arith.constant 0 : index
    %c0_0 = arith.constant 0 : index
    %c0_1 = arith.constant 0 : index
    %c0_2 = arith.constant 0 : index
    %0 = vector.load %arg1[%c0, %c0_0, %c0_1, %c0_2] : memref<1x4x200x9xbf16, #tpu.memory_space<vmem>>, vector<1x4x200x9xbf16>
    %1 = vector.shape_cast %0 : vector<1x4x200x9xbf16> to vector<800x9xbf16>
    %c0_3 = arith.constant 0 : index
    %c0_4 = arith.constant 0 : index
    %2 = vector.load %arg2[%c0_3, %c0_4] : memref<9x32xbf16, #tpu.memory_space<vmem>>, vector<9x32xbf16>
    %cst = arith.constant dense<0.000000e+00> : vector<800x32xf32>
    %3 = tpu.matmul %1, %2, %cst {dimension_numbers = #tpu.dot_dimension_numbers<[1], [0], [0], [1], [0, 0, 1, 1], [], []>} : vector<800x9xbf16>, vector<9x32xbf16>, vector<800x32xf32> -> vector<800x32xf32>
    %4 = vector.shape_cast %3 : vector<800x32xf32> to vector<1x4x200x32xf32>
    %5 = vector.extract_strided_slice %4 {offsets = [0, 0, 0, 0], sizes = [1, 1, 200, 32], strides = [1, 1, 1, 1]} : vector<1x4x200x32xf32> to vector<1x1x200x32xf32>
    %6 = vector.shape_cast %5 : vector<1x1x200x32xf32> to vector<1x200x32xf32>
    %7 = vector.extract_strided_slice %4 {offsets = [0, 1, 0, 0], sizes = [1, 1, 200, 32], strides = [1, 1, 1, 1]} : vector<1x4x200x32xf32> to vector<1x1x200x32xf32>
    %8 = vector.shape_cast %7 : vector<1x1x200x32xf32> to vector<1x200x32xf32>
    %9 = arith.maximumf %6, %8 : vector<1x200x32xf32>
    %10 = vector.extract_strided_slice %4 {offsets = [0, 2, 0, 0], sizes = [1, 1, 200, 32], strides = [1, 1, 1, 1]} : vector<1x4x200x32xf32> to vector<1x1x200x32xf32>
    %11 = vector.shape_cast %10 : vector<1x1x200x32xf32> to vector<1x200x32xf32>
    %12 = vector.extract_strided_slice %4 {offsets = [0, 3, 0, 0], sizes = [1, 1, 200, 32], strides = [1, 1, 1, 1]} : vector<1x4x200x32xf32> to vector<1x1x200x32xf32>
    %13 = vector.shape_cast %12 : vector<1x1x200x32xf32> to vector<1x200x32xf32>
    %14 = arith.maximumf %11, %13 : vector<1x200x32xf32>
    %15 = arith.maximumf %9, %14 : vector<1x200x32xf32>
    %c0_5 = arith.constant 0 : index
    %c0_6 = arith.constant 0 : index
    %16 = vector.load %arg3[%c0_5, %c0_6] : memref<1x32xf32, #tpu.memory_space<vmem>>, vector<1x32xf32>
    %17 = vector.shape_cast %16 : vector<1x32xf32> to vector<1x1x32xf32>
    %18 = vector.broadcast %17 : vector<1x1x32xf32> to vector<1x200x32xf32>
    %19 = arith.addf %15, %18 : vector<1x200x32xf32>
    %cst_7 = arith.constant 0.000000e+00 : f32
    %20 = vector.broadcast %cst_7 : f32 to vector<1x200x32xf32>
    %21 = arith.maximumf %19, %20 : vector<1x200x32xf32>
    %22 = arith.truncf %21 : vector<1x200x32xf32> to vector<1x200x32xbf16>
    %c0_8 = arith.constant 0 : index
    %c0_9 = arith.constant 0 : index
    %c0_10 = arith.constant 0 : index
    %23 = vector.load %arg4[%c0_8, %c0_9, %c0_10] : memref<1x200x32xbf16, #tpu.memory_space<vmem>>, vector<1x200x32xbf16>
    tpu.vector_store %arg4[%c0_8, %c0_9, %c0_10], %22 {strides = array<i32>} : memref<1x200x32xbf16, #tpu.memory_space<vmem>>, vector<1x200x32xbf16>,
    return
  }
  func.func @transform_0(%arg0: i32) -> (i32, i32, i32, i32) {
    %c0_i32 = arith.constant 0 : i32
    %c0_i32_0 = arith.constant 0 : i32
    %c0_i32_1 = arith.constant 0 : i32
    %c0_i32_2 = arith.constant 0 : i32
    return %arg0, %c0_i32, %c0_i32_0, %c0_i32_1 : i32, i32, i32, i32
  }
  func.func @transform_1(%arg0: i32) -> (i32, i32) {
    %c0_i32 = arith.constant 0 : i32
    %c0_i32_0 = arith.constant 0 : i32
    %c0_i32_1 = arith.constant 0 : i32
    return %c0_i32, %c0_i32_0 : i32, i32
  }
  func.func @transform_2(%arg0: i32) -> (i32, i32) {
    %c0_i32 = arith.constant 0 : i32
    %c0_i32_0 = arith.constant 0 : i32
    %c0_i32_1 = arith.constant 0 : i32
    return %c0_i32, %c0_i32_0 : i32, i32
  }
  func.func @transform_3(%arg0: i32) -> (i32, i32, i32) {
    %c0_i32 = arith.constant 0 : i32
    %c0_i32_0 = arith.constant 0 : i32
    %c0_i32_1 = arith.constant 0 : i32
    return %arg0, %c0_i32, %c0_i32_0 : i32, i32, i32
  }
}

module attributes {stable_mosaic.version = 11 : i64} {
  func.func @_conv_relu_pool_kernel(%arg0: i32, %arg1: memref<1x4x56x288xbf16, #tpu.memory_space<vmem>>, %arg2: memref<288x64xbf16, #tpu.memory_space<vmem>>, %arg3: memref<1x64xf32, #tpu.memory_space<vmem>>, %arg4: memref<1x56x64xbf16, #tpu.memory_space<vmem>>) attributes {dimension_semantics = [#tpu.dimension_semantics<parallel>], iteration_bounds = array<i64: 2>, scalar_prefetch = 0 : i64, scratch_operands = 0 : i64, tpu.core_type = #tpu.core_type<tc>, window_params = [{transform_indices = @transform_0, window_bounds = array<i64: 1, 4, 56, 288>}, {pipeline_mode = #tpu.pipeline_mode<synchronous>, transform_indices = @transform_1, window_bounds = array<i64: 288, 64>}, {pipeline_mode = #tpu.pipeline_mode<synchronous>, transform_indices = @transform_2, window_bounds = array<i64: 1, 64>}, {transform_indices = @transform_3, window_bounds = array<i64: 1, 56, 64>}]} {
    %c0 = arith.constant 0 : index
    %c0_0 = arith.constant 0 : index
    %c0_1 = arith.constant 0 : index
    %c0_2 = arith.constant 0 : index
    %0 = vector.load %arg1[%c0, %c0_0, %c0_1, %c0_2] : memref<1x4x56x288xbf16, #tpu.memory_space<vmem>>, vector<1x4x56x288xbf16>
    %1 = vector.shape_cast %0 : vector<1x4x56x288xbf16> to vector<224x288xbf16>
    %c0_3 = arith.constant 0 : index
    %c0_4 = arith.constant 0 : index
    %2 = vector.load %arg2[%c0_3, %c0_4] : memref<288x64xbf16, #tpu.memory_space<vmem>>, vector<288x64xbf16>
    %cst = arith.constant dense<0.000000e+00> : vector<224x64xf32>
    %3 = tpu.matmul %1, %2, %cst {dimension_numbers = #tpu.dot_dimension_numbers<[1], [0], [0], [1], [0, 0, 1, 1], [], []>} : vector<224x288xbf16>, vector<288x64xbf16>, vector<224x64xf32> -> vector<224x64xf32>
    %4 = vector.shape_cast %3 : vector<224x64xf32> to vector<1x4x56x64xf32>
    %5 = vector.extract_strided_slice %4 {offsets = [0, 0, 0, 0], sizes = [1, 1, 56, 64], strides = [1, 1, 1, 1]} : vector<1x4x56x64xf32> to vector<1x1x56x64xf32>
    %6 = vector.shape_cast %5 : vector<1x1x56x64xf32> to vector<1x56x64xf32>
    %7 = vector.extract_strided_slice %4 {offsets = [0, 1, 0, 0], sizes = [1, 1, 56, 64], strides = [1, 1, 1, 1]} : vector<1x4x56x64xf32> to vector<1x1x56x64xf32>
    %8 = vector.shape_cast %7 : vector<1x1x56x64xf32> to vector<1x56x64xf32>
    %9 = arith.maximumf %6, %8 : vector<1x56x64xf32>
    %10 = vector.extract_strided_slice %4 {offsets = [0, 2, 0, 0], sizes = [1, 1, 56, 64], strides = [1, 1, 1, 1]} : vector<1x4x56x64xf32> to vector<1x1x56x64xf32>
    %11 = vector.shape_cast %10 : vector<1x1x56x64xf32> to vector<1x56x64xf32>
    %12 = vector.extract_strided_slice %4 {offsets = [0, 3, 0, 0], sizes = [1, 1, 56, 64], strides = [1, 1, 1, 1]} : vector<1x4x56x64xf32> to vector<1x1x56x64xf32>
    %13 = vector.shape_cast %12 : vector<1x1x56x64xf32> to vector<1x56x64xf32>
    %14 = arith.maximumf %11, %13 : vector<1x56x64xf32>
    %15 = arith.maximumf %9, %14 : vector<1x56x64xf32>
    %c0_5 = arith.constant 0 : index
    %c0_6 = arith.constant 0 : index
    %16 = vector.load %arg3[%c0_5, %c0_6] : memref<1x64xf32, #tpu.memory_space<vmem>>, vector<1x64xf32>
    %17 = vector.shape_cast %16 : vector<1x64xf32> to vector<1x1x64xf32>
    %18 = vector.broadcast %17 : vector<1x1x64xf32> to vector<1x56x64xf32>
    %19 = arith.addf %15, %18 : vector<1x56x64xf32>
    %cst_7 = arith.constant 0.000000e+00 : f32
    %20 = vector.broadcast %cst_7 : f32 to vector<1x56x64xf32>
    %21 = arith.maximumf %19, %20 : vector<1x56x64xf32>
    %22 = arith.truncf %21 : vector<1x56x64xf32> to vector<1x56x64xbf16>
    %c0_8 = arith.constant 0 : index
    %c0_9 = arith.constant 0 : index
    %c0_10 = arith.constant 0 : index
    %23 = vector.load %arg4[%c0_8, %c0_9, %c0_10] : memref<1x56x64xbf16, #tpu.memory_space<vmem>>, vector<1x56x64xbf16>
    tpu.vector_store %arg4[%c0_8, %c0_9, %c0_10], %22 {strides = array<i32>} : memref<1x56x64xbf16, #tpu.memory_space<vmem>>, vector<1x56x64xbf16>,
    return
  }
  func.func @transform_0(%arg0: i32) -> (i32, i32, i32, i32) {
    %c0_i32 = arith.constant 0 : i32
    %c0_i32_0 = arith.constant 0 : i32
    %c0_i32_1 = arith.constant 0 : i32
    %c0_i32_2 = arith.constant 0 : i32
    return %arg0, %c0_i32, %c0_i32_0, %c0_i32_1 : i32, i32, i32, i32
  }
  func.func @transform_1(%arg0: i32) -> (i32, i32) {
    %c0_i32 = arith.constant 0 : i32
    %c0_i32_0 = arith.constant 0 : i32
    %c0_i32_1 = arith.constant 0 : i32
    return %c0_i32, %c0_i32_0 : i32, i32
  }
  func.func @transform_2(%arg0: i32) -> (i32, i32) {
    %c0_i32 = arith.constant 0 : i32
    %c0_i32_0 = arith.constant 0 : i32
    %c0_i32_1 = arith.constant 0 : i32
    return %c0_i32, %c0_i32_0 : i32, i32
  }
  func.func @transform_3(%arg0: i32) -> (i32, i32, i32) {
    %c0_i32 = arith.constant 0 : i32
    %c0_i32_0 = arith.constant 0 : i32
    %c0_i32_1 = arith.constant 0 : i32
    return %arg0, %c0_i32, %c0_i32_0 : i32, i32, i32
  }
}

module attributes {stable_mosaic.version = 11 : i64} {
  func.func @_linear_kernel(%arg0: i32, %arg1: memref<2x3584xbf16, #tpu.memory_space<vmem>>, %arg2: memref<3584x128xbf16, #tpu.memory_space<vmem>>, %arg3: memref<1x128xf32, #tpu.memory_space<vmem>>, %arg4: memref<2x128xf32, #tpu.memory_space<vmem>>) attributes {dimension_semantics = [#tpu.dimension_semantics<parallel>], iteration_bounds = array<i64: 1>, scalar_prefetch = 0 : i64, scratch_operands = 0 : i64, tpu.core_type = #tpu.core_type<tc>, window_params = [{transform_indices = @transform_0, window_bounds = array<i64: 2, 3584>}, {pipeline_mode = #tpu.pipeline_mode<synchronous>, transform_indices = @transform_1, window_bounds = array<i64: 3584, 128>}, {pipeline_mode = #tpu.pipeline_mode<synchronous>, transform_indices = @transform_2, window_bounds = array<i64: 1, 128>}, {transform_indices = @transform_3, window_bounds = array<i64: 2, 128>}]} {
    %c0 = arith.constant 0 : index
    %c0_0 = arith.constant 0 : index
    %0 = vector.load %arg1[%c0, %c0_0] : memref<2x3584xbf16, #tpu.memory_space<vmem>>, vector<2x3584xbf16>
    %c0_1 = arith.constant 0 : index
    %c0_2 = arith.constant 0 : index
    %1 = vector.load %arg2[%c0_1, %c0_2] : memref<3584x128xbf16, #tpu.memory_space<vmem>>, vector<3584x128xbf16>
    %cst = arith.constant dense<0.000000e+00> : vector<2x128xf32>
    %2 = tpu.matmul %0, %1, %cst {dimension_numbers = #tpu.dot_dimension_numbers<[1], [0], [0], [1], [0, 0, 1, 1], [], []>} : vector<2x3584xbf16>, vector<3584x128xbf16>, vector<2x128xf32> -> vector<2x128xf32>
    %c0_3 = arith.constant 0 : index
    %c0_4 = arith.constant 0 : index
    %3 = vector.load %arg3[%c0_3, %c0_4] : memref<1x128xf32, #tpu.memory_space<vmem>>, vector<1x128xf32>
    %4 = vector.broadcast %3 : vector<1x128xf32> to vector<2x128xf32>
    %5 = arith.addf %2, %4 : vector<2x128xf32>
    %c0_5 = arith.constant 0 : index
    %c0_6 = arith.constant 0 : index
    %6 = vector.load %arg4[%c0_5, %c0_6] : memref<2x128xf32, #tpu.memory_space<vmem>>, vector<2x128xf32>
    tpu.vector_store %arg4[%c0_5, %c0_6], %5 {strides = array<i32>} : memref<2x128xf32, #tpu.memory_space<vmem>>, vector<2x128xf32>,
    return
  }
  func.func @transform_0(%arg0: i32) -> (i32, i32) {
    %c0_i32 = arith.constant 0 : i32
    %c0_i32_0 = arith.constant 0 : i32
    return %arg0, %c0_i32 : i32, i32
  }
  func.func @transform_1(%arg0: i32) -> (i32, i32) {
    %c0_i32 = arith.constant 0 : i32
    %c0_i32_0 = arith.constant 0 : i32
    %c0_i32_1 = arith.constant 0 : i32
    return %c0_i32, %c0_i32_0 : i32, i32
  }
  func.func @transform_2(%arg0: i32) -> (i32, i32) {
    %c0_i32 = arith.constant 0 : i32
    %c0_i32_0 = arith.constant 0 : i32
    %c0_i32_1 = arith.constant 0 : i32
    return %c0_i32, %c0_i32_0 : i32, i32
  }
  func.func @transform_3(%arg0: i32) -> (i32, i32) {
    %c0_i32 = arith.constant 0 : i32
    %c0_i32_0 = arith.constant 0 : i32
    return %arg0, %c0_i32 : i32, i32
  }
}

</mosaic_0001>

<llo_original>
// kernel: forward.3
$region0: #{forward.3}
  #allocation0 [shape = 'u32[]', space=smem, size = 0x4, offset = 0x4, fixed_abs, tag = 'smem constant byte address 0x4 - core index']
  #allocation1 [shape = 'u32[144,128]{1,0:T(1,128)}', space=vmem, size = 0x12000, scoped, tag = 'internal scratch']
  %s0 = inlined_call_operand.vmem [shape: bf16[2,4,200,9], index: 0, kind: input, shape index: {}]
  %s1 = inlined_call_operand.vmem [shape: bf16[9,32], index: 1, kind: input, shape index: {}]
  %s2 = inlined_call_operand.vmem [shape: f32[1,32], index: 2, kind: input, shape index: {}]
  %s3 = inlined_call_operand.vmem [shape: bf16[2,200,32], index: 3, kind: output, shape index: {}]
  %s4 = sld [smem:[#allocation0]]
  $region45: #{forward.3} parent=0
    _
  %s6 = ssub.s32 1, %s4
  %s7 = scalar_select 0, %s6, %s4
  loop: start=0, step=1, limit=4
  $region2: #{forward.3} parent=0 // loop_pre_header
    _
  $region3: #{forward.3} parent=0 // loop_header
    %s9 = sphi 0, %s13
    %p10 = scmp.ge.s32.totalorder %s9, 4
    %s19 = sphi 0, %s21
    %s22 = sphi 0, %s19
    %s23 = sphi 0, %s22
    %s39 = sphi 0, %s23
    %s43 = sphi 0, %s43
    %s45 = sphi 0, %s43
    %s46 = sphi 0, %s45
    %s60 = sphi 0, %s46
    %s64 = sphi 0, %s64
    %s66 = sphi 0, %s64
    %s67 = sphi 0, %s66
    %s81 = sphi 0, %s67
    %s87 = sphi 0, %s89
    %s90 = sphi 0, %s87
    %s91 = sphi 0, %s90
    %s107 = sphi 0, %s91
  $region4: #{forward.3} parent=0 // loop_header_branch
    %12 = sbr.rel (%p10) target = $region8
  $region5: #{forward.3} parent=0 // loop_body
    %s14 = ssub.s32 %s9, 1
    %s15 = ssub.s32 %s9, 2
    %s16 = sadd.s32 %s9, 1
    %s17 = ssub.s32 %s9, %s16
    %p18 = scmp.eq.s32.totalorder %s17, 0
    %s20 = sadd.s32 %s19, 1
    %s21 = scalar_select %p18, %s19, %s20
    %p24 = pneg %p18
    %p25 = scmp.eq.s32.totalorder %s9, 1
    %p26 = por %p24, %p25
    %p27 = scmp.ne.s32.totalorder %s19, %s22
    %p28 = scmp.eq.s32.totalorder %s9, 0
    %p29 = por %p27, %p28
    %p30 = scmp.ne.s32.totalorder %s19, %s22
    %p31 = scmp.eq.s32.totalorder %s14, 1
    %p32 = por %p30, %p31
    %p33 = scmp.ne.s32.totalorder %s22, %s23
    %p34 = scmp.eq.s32.totalorder %s14, 0
    %p35 = por %p33, %p34
    %p36 = scmp.ne.s32.totalorder %s22, %s23
    %p37 = scmp.eq.s32.totalorder %s15, 1
    %p38 = por %p36, %p37
    %p40 = scmp.ne.s32.totalorder %s23, %s39
    %p41 = scmp.eq.s32.totalorder %s15, 0
    %p42 = por %p40, %p41
    %s44 = sadd.s32 %s43, 1
    %p47 = scmp.eq.s32.totalorder %s9, 1
    %p48 = scmp.ne.s32.totalorder %s43, %s45
    %p49 = scmp.eq.s32.totalorder %s9, 0
    %p50 = por %p48, %p49
    %p51 = scmp.ne.s32.totalorder %s43, %s45
    %p52 = scmp.eq.s32.totalorder %s14, 1
    %p53 = por %p51, %p52
    %p54 = scmp.ne.s32.totalorder %s45, %s46
    %p55 = scmp.eq.s32.totalorder %s14, 0
    %p56 = por %p54, %p55
    %p57 = scmp.ne.s32.totalorder %s45, %s46
    %p58 = scmp.eq.s32.totalorder %s15, 1
    %p59 = por %p57, %p58
    %p61 = scmp.ne.s32.totalorder %s46, %s60
    %p62 = scmp.eq.s32.totalorder %s15, 0
    %p63 = por %p61, %p62
    %s65 = sadd.s32 %s64, 1
    %p68 = scmp.eq.s32.totalorder %s9, 1
    %p69 = scmp.ne.s32.totalorder %s64, %s66
    %p70 = scmp.eq.s32.totalorder %s9, 0
    %p71 = por %p69, %p70
    %p72 = scmp.ne.s32.totalorder %s64, %s66
    %p73 = scmp.eq.s32.totalorder %s14, 1
    %p74 = por %p72, %p73
    %p75 = scmp.ne.s32.totalorder %s66, %s67
    %p76 = scmp.eq.s32.totalorder %s14, 0
    %p77 = por %p75, %p76
    %p78 = scmp.ne.s32.totalorder %s66, %s67
    %p79 = scmp.eq.s32.totalorder %s15, 1
    %p80 = por %p78, %p79
    %p82 = scmp.ne.s32.totalorder %s67, %s81
    %p83 = scmp.eq.s32.totalorder %s15, 0
    %p84 = por %p82, %p83
    %s85 = ssub.s32 %s9, %s16
    %p86 = scmp.eq.s32.totalorder %s85, 0
    %s88 = sadd.s32 %s87, 1
    %s89 = scalar_select %p86, %s87, %s88
    %p92 = pneg %p86
    %p93 = scmp.eq.s32.totalorder %s9, 1
    %p94 = por %p92, %p93
    %p95 = scmp.ne.s32.totalorder %s87, %s90
    %p96 = scmp.eq.s32.totalorder %s9, 0
    %p97 = por %p95, %p96
    %p98 = scmp.ne.s32.totalorder %s87, %s90
    %p99 = scmp.eq.s32.totalorder %s14, 1
    %p100 = por %p98, %p99
    %p101 = scmp.ne.s32.totalorder %s90, %s91
    %p102 = scmp.eq.s32.totalorder %s14, 0
    %p103 = por %p101, %p102
    %p104 = scmp.ne.s32.totalorder %s90, %s91
    %p105 = scmp.eq.s32.totalorder %s15, 1
    %p106 = por %p104, %p105
    %p108 = scmp.ne.s32.totalorder %s91, %s107
    %p109 = scmp.eq.s32.totalorder %s15, 0
    %p110 = por %p108, %p109
    %p111 = scmp.le.s32.totalorder 1, %s9
    %p112 = scmp.lt.s32.totalorder %s9, 3
    %p113 = pnand %p111, %p112
    %p114 = pneg %p113
    // Predicated region
    $region9: #{forward.3} parent=5 // pred_check
      _
    $region10: #{forward.3} parent=5 // pred_check_branch
      %116 = sbr.rel (%p113) target = $region12
    $region11: #{forward.3} parent=5 // pred_region
      %s117 = ssub.s32 %s9, 1
      // Predicated region
      $region13: #{forward.3} parent=11 // pred_check
        %p118 = pneg %p56
      $region14: #{forward.3} parent=11 // pred_check_branch
        %120 = sbr.rel (%p118) target = $region16
      $region15: #{forward.3} parent=11 // pred_region
        _
      $region16: #{forward.3} parent=11 // pred_fallthru
        _
      // Predicated region
      $region17: #{forward.3} parent=11 // pred_check
        %p121 = pneg %p77
      $region18: #{forward.3} parent=11 // pred_check_branch
        %123 = sbr.rel (%p121) target = $region20
      $region19: #{forward.3} parent=11 // pred_region
        _
      $region20: #{forward.3} parent=11 // pred_fallthru
        _
    $region12: #{forward.3} parent=5 // pred_fallthru
      _
    %p124 = scmp.lt.s32.totalorder %s9, 2
    // Predicated region
    $region21: #{forward.3} parent=5 // pred_check
      %p125 = pneg %p124
    $region22: #{forward.3} parent=5 // pred_check_branch
      %127 = sbr.rel (%p125) target = $region24
    $region23: #{forward.3} parent=5 // pred_region
      // Predicated region
      $region25: #{forward.3} parent=23 // pred_check
        %p128 = pneg %p29
      $region26: #{forward.3} parent=23 // pred_check_branch
        %130 = sbr.rel (%p128) target = $region28
      $region27: #{forward.3} parent=23 // pred_region
        %p131 = scmp.lt.s32.totalorder %s9, 1
        %s132 = scalar_select %p131, %s9, 1
        %s133 = smul.addr %s132, 100
        %s134 = smul.addr %s133, 4
        %s135 = scalar_lea.vmem %s0, %s134
      $region28: #{forward.3} parent=23 // pred_fallthru
        _
    $region24: #{forward.3} parent=5 // pred_fallthru
      _
    %p136 = scmp.le.s32.totalorder 1, %s9
    %p137 = scmp.lt.s32.totalorder %s9, 3
    %p138 = pnand %p136, %p137
    %p139 = pneg %p138
    // Predicated region
    $region29: #{forward.3} parent=5 // pred_check
      _
    $region30: #{forward.3} parent=5 // pred_check_branch
      %141 = sbr.rel (%p138) target = $region32
    $region31: #{forward.3} parent=5 // pred_region
      %s142 = ssub.s32 %s9, 1
      %p143 = scmp.lt.s32.totalorder %s14, 1
      %s144 = scalar_select %p143, %s14, 1
      %s145 = smul.addr %s144, 100
      %s146 = smul.addr %s145, 4
      %s147 = scalar_lea.vmem %s0, %s146
      %p148 = pneg %p35
      %p149 = pneg %p32
      %p150 = pneg %p56
      %p151 = pneg %p53
      %p152 = pneg %p77
      %p153 = pneg %p74
      %p154 = pneg %p103
      %p155 = pneg %p100
      %p156 = scmp.lt.s32.totalorder %s14, 1
      %s157 = scalar_select %p156, %s14, 1
      %s158 = smul.addr %s157, 25
      %s159 = smul.addr %s158, 4
      %s160 = scalar_lea.vmem %s3, %s159
      %p161 = scmp.lt.s32.totalorder %s14, 1
      %s162 = scalar_select %p161, %s14, 1
      %s163 = smul.addr %s162, 100
      %s164 = smul.addr %s163, 4
      %s165 = scalar_lea.vmem %s0, %s164
      %p166 = scmp.lt.s32.totalorder %s14, 1
      %s167 = scalar_select %p166, %s14, 1
      %s168 = smul.addr %s167, 25
      %s169 = smul.addr %s168, 4
      %s170 = scalar_lea.vmem %s3, %s169
      %v172 = vld [vmem:[%s165] sm:$0xf]
      %v173 = vld [vmem:[%s165 + $0x4] sm:$0xf]
      %v174 = vld [vmem:[%s165 + $0x8] sm:$0xf]
      %v175 = vld [vmem:[%s165 + $0xc] sm:$0xf]
      %v176 = vld [vmem:[%s165 + $0x10] sm:$0xf]
      %v177 = vld [vmem:[%s165 + $0x14] sm:$0xf]
      %v178 = vld [vmem:[%s165 + $0x18] sm:$0xf]
      %v179 = vld [vmem:[%s165 + $0x1c] sm:$0xf]
      %v180 = vld [vmem:[%s165 + $0x20] sm:$0xf]
      %v181 = vld [vmem:[%s165 + $0x24] sm:$0xf]
      %v182 = vld [vmem:[%s165 + $0x28] sm:$0xf]
      %v183 = vld [vmem:[%s165 + $0x2c] sm:$0xf]
      %v184 = vld [vmem:[%s165 + $0x30] sm:$0xf]
      %v185 = vld [vmem:[%s165 + $0x34] sm:$0xf]
      %v186 = vld [vmem:[%s165 + $0x38] sm:$0xf]
      %v187 = vld [vmem:[%s165 + $0x3c] sm:$0xf]
      %v188 = vld [vmem:[%s165 + $0x40] sm:$0xf]
      %v189 = vld [vmem:[%s165 + $0x44] sm:$0xf]
      %v190 = vld [vmem:[%s165 + $0x48] sm:$0xf]
      %v191 = vld [vmem:[%s165 + $0x4c] sm:$0xf]
      %v192 = vld [vmem:[%s165 + $0x50] sm:$0xf]
      %v193 = vld [vmem:[%s165 + $0x54] sm:$0xf]
      %v194 = vld [vmem:[%s165 + $0x58] sm:$0xf]
      %v195 = vld [vmem:[%s165 + $0x5c] sm:$0xf]
      %v196 = vld [vmem:[%s165 + $0x60] sm:$0xf]
      %v197 = vld [vmem:[%s165 + $0x64] sm:$0xf]
      %v198 = vld [vmem:[%s165 + $0x68] sm:$0xf]
      %v199 = vld [vmem:[%s165 + $0x6c] sm:$0xf]
      %v200 = vld [vmem:[%s165 + $0x70] sm:$0xf]
      %v201 = vld [vmem:[%s165 + $0x74] sm:$0xf]
      %v202 = vld [vmem:[%s165 + $0x78] sm:$0xf]
      %v203 = vld [vmem:[%s165 + $0x7c] sm:$0xf]
      %v204 = vld [vmem:[%s165 + $0x80] sm:$0xf]
      %v205 = vld [vmem:[%s165 + $0x84] sm:$0xf]
      %v206 = vld [vmem:[%s165 + $0x88] sm:$0xf]
      %v207 = vld [vmem:[%s165 + $0x8c] sm:$0xf]
      %v208 = vld [vmem:[%s165 + $0x90] sm:$0xf]
      %v209 = vld [vmem:[%s165 + $0x94] sm:$0xf]
      %v210 = vld [vmem:[%s165 + $0x98] sm:$0xf]
      %v211 = vld [vmem:[%s165 + $0x9c] sm:$0xf]
      %v212 = vld [vmem:[%s165 + $0xa0] sm:$0xf]
      %v213 = vld [vmem:[%s165 + $0xa4] sm:$0xf]
      %v214 = vld [vmem:[%s165 + $0xa8] sm:$0xf]
      %v215 = vld [vmem:[%s165 + $0xac] sm:$0xf]
      %v216 = vld [vmem:[%s165 + $0xb0] sm:$0xf]
      %v217 = vld [vmem:[%s165 + $0xb4] sm:$0xf]
      %v218 = vld [vmem:[%s165 + $0xb8] sm:$0xf]
      %v219 = vld [vmem:[%s165 + $0xbc] sm:$0xf]
      %v220 = vld [vmem:[%s165 + $0xc0] sm:$0xf]
      %v221 = vld [vmem:[%s165 + $0xc4] sm:$0xf]
      %v222 = vld [vmem:[%s165 + $0xc8] sm:$0xf]
      %v223 = vld [vmem:[%s165 + $0xcc] sm:$0xf]
      %v224 = vld [vmem:[%s165 + $0xd0] sm:$0xf]
      %v225 = vld [vmem:[%s165 + $0xd4] sm:$0xf]
      %v226 = vld [vmem:[%s165 + $0xd8] sm:$0xf]
      %v227 = vld [vmem:[%s165 + $0xdc] sm:$0xf]
      %v228 = vld [vmem:[%s165 + $0xe0] sm:$0xf]
      %v229 = vld [vmem:[%s165 + $0xe4] sm:$0xf]
      %v230 = vld [vmem:[%s165 + $0xe8] sm:$0xf]
      %v231 = vld [vmem:[%s165 + $0xec] sm:$0xf]
      %v232 = vld [vmem:[%s165 + $0xf0] sm:$0xf]
      %v233 = vld [vmem:[%s165 + $0xf4] sm:$0xf]
      %v234 = vld [vmem:[%s165 + $0xf8] sm:$0xf]
      %v235 = vld [vmem:[%s165 + $0xfc] sm:$0xf]
      %v236 = vld [vmem:[%s165 + $0x100] sm:$0xf]
      %v237 = vld [vmem:[%s165 + $0x104] sm:$0xf]
      %v238 = vld [vmem:[%s165 + $0x108] sm:$0xf]
      %v239 = vld [vmem:[%s165 + $0x10c] sm:$0xf]
      %v240 = vld [vmem:[%s165 + $0x110] sm:$0xf]
      %v241 = vld [vmem:[%s165 + $0x114] sm:$0xf]
      %v242 = vld [vmem:[%s165 + $0x118] sm:$0xf]
      %v243 = vld [vmem:[%s165 + $0x11c] sm:$0xf]
      %v244 = vld [vmem:[%s165 + $0x120] sm:$0xf]
      %v245 = vld [vmem:[%s165 + $0x124] sm:$0xf]
      %v246 = vld [vmem:[%s165 + $0x128] sm:$0xf]
      %v247 = vld [vmem:[%s165 + $0x12c] sm:$0xf]
      %v248 = vld [vmem:[%s165 + $0x130] sm:$0xf]
      %v249 = vld [vmem:[%s165 + $0x134] sm:$0xf]
      %v250 = vld [vmem:[%s165 + $0x138] sm:$0xf]
      %v251 = vld [vmem:[%s165 + $0x13c] sm:$0xf]
      %v252 = vld [vmem:[%s165 + $0x140] sm:$0xf]
      %v253 = vld [vmem:[%s165 + $0x144] sm:$0xf]
      %v254 = vld [vmem:[%s165 + $0x148] sm:$0xf]
      %v255 = vld [vmem:[%s165 + $0x14c] sm:$0xf]
      %v256 = vld [vmem:[%s165 + $0x150] sm:$0xf]
      %v257 = vld [vmem:[%s165 + $0x154] sm:$0xf]
      %v258 = vld [vmem:[%s165 + $0x158] sm:$0xf]
      %v259 = vld [vmem:[%s165 + $0x15c] sm:$0xf]
      %v260 = vld [vmem:[%s165 + $0x160] sm:$0xf]
      %v261 = vld [vmem:[%s165 + $0x164] sm:$0xf]
      %v262 = vld [vmem:[%s165 + $0x168] sm:$0xf]
      %v263 = vld [vmem:[%s165 + $0x16c] sm:$0xf]
      %v264 = vld [vmem:[%s165 + $0x170] sm:$0xf]
      %v265 = vld [vmem:[%s165 + $0x174] sm:$0xf]
      %v266 = vld [vmem:[%s165 + $0x178] sm:$0xf]
      %v267 = vld [vmem:[%s165 + $0x17c] sm:$0xf]
      %v268 = vld [vmem:[%s165 + $0x180] sm:$0xf]
      %v269 = vld [vmem:[%s165 + $0x184] sm:$0xf]
      %v270 = vld [vmem:[%s165 + $0x188] sm:$0xf]
      %v271 = vld [vmem:[%s165 + $0x18c] sm:$0xf]
      %v272 = vld [vmem:[%s1] sm:$0xf]
      %v273 = vld [vmem:[%s1 + $0x4] sm:$0x1]
      %v374 = vunpack.c.l.b16 %v172
      %v375 = vunpack.c.l.b16 %v173
      %v376 = vunpack.c.l.b16 %v174
      %v377 = vunpack.c.l.b16 %v175
      %v378 = vunpack.c.l.b16 %v176
      %v379 = vunpack.c.l.b16 %v177
      %v380 = vunpack.c.l.b16 %v178
      %v381 = vunpack.c.l.b16 %v179
      %v382 = vunpack.c.l.b16 %v180
      %v383 = vunpack.c.l.b16 %v181
      %v384 = vunpack.c.l.b16 %v182
      %v385 = vunpack.c.l.b16 %v183
      %v386 = vunpack.c.l.b16 %v184
      %v387 = vunpack.c.l.b16 %v185
      %v388 = vunpack.c.l.b16 %v186
      %v389 = vunpack.c.l.b16 %v187
      %v390 = vunpack.c.l.b16 %v188
      %v391 = vunpack.c.l.b16 %v189
      %v392 = vunpack.c.l.b16 %v190
      %v393 = vunpack.c.l.b16 %v191
      %v394 = vunpack.c.l.b16 %v192
      %v395 = vunpack.c.l.b16 %v193
      %v396 = vunpack.c.l.b16 %v194
      %v397 = vunpack.c.l.b16 %v195
      %v398 = vunpack.c.l.b16 %v196
      %v399 = vunpack.c.l.b16 %v197
      %v400 = vunpack.c.l.b16 %v198
      %v401 = vunpack.c.l.b16 %v199
      %v402 = vunpack.c.l.b16 %v200
      %v403 = vunpack.c.l.b16 %v201
      %v404 = vunpack.c.l.b16 %v202
      %v405 = vunpack.c.l.b16 %v203
      %v406 = vunpack.c.l.b16 %v204
      %v407 = vunpack.c.l.b16 %v205
      %v408 = vunpack.c.l.b16 %v206
      %v409 = vunpack.c.l.b16 %v207
      %v410 = vunpack.c.l.b16 %v208
      %v411 = vunpack.c.l.b16 %v209
      %v412 = vunpack.c.l.b16 %v210
      %v413 = vunpack.c.l.b16 %v211
      %v414 = vunpack.c.l.b16 %v212
      %v415 = vunpack.c.l.b16 %v213
      %v416 = vunpack.c.l.b16 %v214
      %v417 = vunpack.c.l.b16 %v215
      %v418 = vunpack.c.l.b16 %v216
      %v419 = vunpack.c.l.b16 %v217
      %v420 = vunpack.c.l.b16 %v218
      %v421 = vunpack.c.l.b16 %v219
      %v422 = vunpack.c.l.b16 %v220
      %v423 = vunpack.c.l.b16 %v221
      %v424 = vunpack.c.l.b16 %v222
      %v425 = vunpack.c.l.b16 %v223
      %v426 = vunpack.c.l.b16 %v224
      %v427 = vunpack.c.l.b16 %v225
      %v428 = vunpack.c.l.b16 %v226
      %v429 = vunpack.c.l.b16 %v227
      %v430 = vunpack.c.l.b16 %v228
      %v431 = vunpack.c.l.b16 %v229
      %v432 = vunpack.c.l.b16 %v230
      %v433 = vunpack.c.l.b16 %v231
      %v434 = vunpack.c.l.b16 %v232
      %v435 = vunpack.c.l.b16 %v233
      %v436 = vunpack.c.l.b16 %v234
      %v437 = vunpack.c.l.b16 %v235
      %v438 = vunpack.c.l.b16 %v236
      %v439 = vunpack.c.l.b16 %v237
      %v440 = vunpack.c.l.b16 %v238
      %v441 = vunpack.c.l.b16 %v239
      %v442 = vunpack.c.l.b16 %v240
      %v443 = vunpack.c.l.b16 %v241
      %v444 = vunpack.c.l.b16 %v242
      %v445 = vunpack.c.l.b16 %v243
      %v446 = vunpack.c.l.b16 %v244
      %v447 = vunpack.c.l.b16 %v245
      %v448 = vunpack.c.l.b16 %v246
      %v449 = vunpack.c.l.b16 %v247
      %v450 = vunpack.c.l.b16 %v248
      %v451 = vunpack.c.l.b16 %v249
      %v452 = vunpack.c.l.b16 %v250
      %v453 = vunpack.c.l.b16 %v251
      %v454 = vunpack.c.l.b16 %v252
      %v455 = vunpack.c.l.b16 %v253
      %v456 = vunpack.c.l.b16 %v254
      %v457 = vunpack.c.l.b16 %v255
      %v458 = vunpack.c.l.b16 %v256
      %v459 = vunpack.c.l.b16 %v257
      %v460 = vunpack.c.l.b16 %v258
      %v461 = vunpack.c.l.b16 %v259
      %v462 = vunpack.c.l.b16 %v260
      %v463 = vunpack.c.l.b16 %v261
      %v464 = vunpack.c.l.b16 %v262
      %v465 = vunpack.c.l.b16 %v263
      %v466 = vunpack.c.l.b16 %v264
      %v467 = vunpack.c.l.b16 %v265
      %v468 = vunpack.c.l.b16 %v266
      %v469 = vunpack.c.l.b16 %v267
      %v470 = vunpack.c.l.b16 %v268
      %v471 = vunpack.c.l.b16 %v269
      %v472 = vunpack.c.l.b16 %v270
      %v473 = vunpack.c.l.b16 %v271
      %v474 = vpack.c.b16 %v375, %v374
      %v475 = vpack.c.b16 %v377, %v376
      %v476 = vpack.c.b16 %v379, %v378
      %v477 = vpack.c.b16 %v381, %v380
      %v478 = vpack.c.b16 %v383, %v382
      %v479 = vpack.c.b16 %v385, %v384
      %v480 = vpack.c.b16 %v387, %v386
      %v481 = vpack.c.b16 %v389, %v388
      %v482 = vpack.c.b16 %v391, %v390
      %v483 = vpack.c.b16 %v393, %v392
      %v484 = vpack.c.b16 %v395, %v394
      %v485 = vpack.c.b16 %v397, %v396
      %v486 = vpack.c.b16 %v399, %v398
      %v487 = vpack.c.b16 %v401, %v400
      %v488 = vpack.c.b16 %v403, %v402
      %v489 = vpack.c.b16 %v405, %v404
      %v490 = vpack.c.b16 %v407, %v406
      %v491 = vpack.c.b16 %v409, %v408
      %v492 = vpack.c.b16 %v411, %v410
      %v493 = vpack.c.b16 %v413, %v412
      %v494 = vpack.c.b16 %v415, %v414
      %v495 = vpack.c.b16 %v417, %v416
      %v496 = vpack.c.b16 %v419, %v418
      %v497 = vpack.c.b16 %v421, %v420
      %v498 = vpack.c.b16 %v423, %v422
      %v499 = vpack.c.b16 %v425, %v424
      %v500 = vpack.c.b16 %v427, %v426
      %v501 = vpack.c.b16 %v429, %v428
      %v502 = vpack.c.b16 %v431, %v430
      %v503 = vpack.c.b16 %v433, %v432
      %v504 = vpack.c.b16 %v435, %v434
      %v505 = vpack.c.b16 %v437, %v436
      %v506 = vpack.c.b16 %v439, %v438
      %v507 = vpack.c.b16 %v441, %v440
      %v508 = vpack.c.b16 %v443, %v442
      %v509 = vpack.c.b16 %v445, %v444
      %v510 = vpack.c.b16 %v447, %v446
      %v511 = vpack.c.b16 %v449, %v448
      %v512 = vpack.c.b16 %v451, %v450
      %v513 = vpack.c.b16 %v453, %v452
      %v514 = vpack.c.b16 %v455, %v454
      %v515 = vpack.c.b16 %v457, %v456
      %v516 = vpack.c.b16 %v459, %v458
      %v517 = vpack.c.b16 %v461, %v460
      %v518 = vpack.c.b16 %v463, %v462
      %v519 = vpack.c.b16 %v465, %v464
      %v520 = vpack.c.b16 %v467, %v466
      %v521 = vpack.c.b16 %v469, %v468
      %v522 = vpack.c.b16 %v471, %v470
      %v523 = vpack.c.b16 %v473, %v472
      %v526 = vunpack.c.l.b16 %v272
      %v527 = vunpack.c.l.b16 %v273
      %v528 = vpack.c.b16 %v527, %v526
      %vm529 = vcmask 72704
      %v531 = vsel %vm529, %v474, 0
      %v534 = vsel %vm529, %v475, 0
      %v537 = vsel %vm529, %v476, 0
      %v540 = vsel %vm529, %v477, 0
      %v543 = vsel %vm529, %v478, 0
      %v546 = vsel %vm529, %v479, 0
      %v549 = vsel %vm529, %v480, 0
      %v552 = vsel %vm529, %v481, 0
      %v555 = vsel %vm529, %v482, 0
      %v558 = vsel %vm529, %v483, 0
      %v561 = vsel %vm529, %v484, 0
      %v564 = vsel %vm529, %v485, 0
      %v567 = vsel %vm529, %v486, 0
      %v570 = vsel %vm529, %v487, 0
      %v573 = vsel %vm529, %v488, 0
      %v576 = vsel %vm529, %v489, 0
      %v579 = vsel %vm529, %v490, 0
      %v582 = vsel %vm529, %v491, 0
      %v585 = vsel %vm529, %v492, 0
      %v588 = vsel %vm529, %v493, 0
      %v591 = vsel %vm529, %v494, 0
      %v594 = vsel %vm529, %v495, 0
      %v597 = vsel %vm529, %v496, 0
      %v600 = vsel %vm529, %v497, 0
      %v603 = vsel %vm529, %v498, 0
      %v606 = vsel %vm529, %v499, 0
      %v609 = vsel %vm529, %v500, 0
      %v612 = vsel %vm529, %v501, 0
      %v615 = vsel %vm529, %v502, 0
      %v618 = vsel %vm529, %v503, 0
      %v621 = vsel %vm529, %v504, 0
      %v624 = vsel %vm529, %v505, 0
      %v627 = vsel %vm529, %v506, 0
      %v630 = vsel %vm529, %v507, 0
      %v633 = vsel %vm529, %v508, 0
      %v636 = vsel %vm529, %v509, 0
      %v639 = vsel %vm529, %v510, 0
      %v642 = vsel %vm529, %v511, 0
      %v645 = vsel %vm529, %v512, 0
      %v648 = vsel %vm529, %v513, 0
      %v651 = vsel %vm529, %v514, 0
      %v654 = vsel %vm529, %v515, 0
      %v657 = vsel %vm529, %v516, 0
      %v660 = vsel %vm529, %v517, 0
      %v663 = vsel %vm529, %v518, 0
      %v666 = vsel %vm529, %v519, 0
      %v669 = vsel %vm529, %v520, 0
      %v672 = vsel %vm529, %v521, 0
      %v675 = vsel %vm529, %v522, 0
      %v678 = vsel %vm529, %v523, 0
      %vm680 = vcmask 1043456
      %vm681 = vcmask 1044480
      %v682 = vsel %vm680, 4294967295, 65535
      %v683 = vsel %vm681, %v682, 0
      %v685 = vand.u32 %v528, %v683
      %687 = vmatprep.subr.bf16.mxu0 0
      %688 = vmatpush1.bf16.msra.mxu0 %v685
      %689 = vmatprep.subr.bf16.mxu0 0
      %690 = vmatpush1.bf16.msra.mxu0 0
      %691 = vmatprep.subr.bf16.mxu0 0
      %692 = vmatpush1.bf16.msra.mxu0 0
      %693 = vmatprep.subr.bf16.mxu0 0
      %694 = vmatpush1.bf16.msra.mxu0 0
      %695 = vmatprep.subr.bf16.mxu0 0
      %696 = vmatpush1.bf16.msra.mxu0 0
      %697 = vmatprep.subr.bf16.mxu0 0
      %698 = vmatpush1.bf16.msra.mxu0 0
      %699 = vmatprep.subr.bf16.mxu0 0
      %700 = vmatpush1.bf16.msra.mxu0 0
      %701 = vmatprep.subr.bf16.mxu0 0
      %702 = vmatpush1.bf16.msra.mxu0 0
      %703 = vmatprep.subr.bf16.mxu0 0
      %704 = vmatpush1.bf16.msra.mxu0 0
      %705 = vmatprep.subr.bf16.mxu0 0
      %706 = vmatpush1.bf16.msra.mxu0 0
      %707 = vmatprep.subr.bf16.mxu0 0
      %708 = vmatpush1.bf16.msra.mxu0 0
      %709 = vmatprep.subr.bf16.mxu0 0
      %710 = vmatpush1.bf16.msra.mxu0 0
      %711 = vmatprep.subr.bf16.mxu0 0
      %712 = vmatpush1.bf16.msra.mxu0 0
      %713 = vmatprep.subr.bf16.mxu0 0
      %714 = vmatpush1.bf16.msra.mxu0 0
      %715 = vmatprep.subr.bf16.mxu0 0
      %716 = vmatpush1.bf16.msra.mxu0 0
      %717 = vmatprep.subr.bf16.mxu0 0
      %718 = vmatpush1.bf16.msra.mxu0 0
      %719 = vmatprep.mubr.bf16.mxu0 0
      %720 = vmatmul.mubr.bf16.gmra.mrb[0].mxu0 %v531
      %v721 = vpop.f32.mrb[0].mxu0
      %v722 = vadd.f32 0.0, %v721
      %v723 = vpop.f32.mrb[0].mxu0
      %v724 = vpop.f32.mrb[0].mxu0
      %v725 = vadd.f32 0.0, %v724
      %v726 = vpop.f32.mrb[0].mxu0
      %727 = vmatprep.mubr.bf16.mxu0 0
      %728 = vmatmul.mubr.bf16.gmra.mrb[0].mxu0 %v534
      %v729 = vpop.f32.mrb[0].mxu0
      %v730 = vadd.f32 0.0, %v729
      %v731 = vpop.f32.mrb[0].mxu0
      %v732 = vpop.f32.mrb[0].mxu0
      %v733 = vadd.f32 0.0, %v732
      %v734 = vpop.f32.mrb[0].mxu0
      %735 = vmatprep.mubr.bf16.mxu0 0
      %736 = vmatmul.mubr.bf16.gmra.mrb[0].mxu0 %v537
      %v737 = vpop.f32.mrb[0].mxu0
      %v738 = vadd.f32 0.0, %v737
      %v739 = vpop.f32.mrb[0].mxu0
      %v740 = vpop.f32.mrb[0].mxu0
      %v741 = vadd.f32 0.0, %v740
      %v742 = vpop.f32.mrb[0].mxu0
      %743 = vmatprep.mubr.bf16.mxu0 0
      %744 = vmatmul.mubr.bf16.gmra.mrb[0].mxu0 %v540
      %v745 = vpop.f32.mrb[0].mxu0
      %v746 = vadd.f32 0.0, %v745
      %v747 = vpop.f32.mrb[0].mxu0
      %v748 = vpop.f32.mrb[0].mxu0
      %v749 = vadd.f32 0.0, %v748
      %v750 = vpop.f32.mrb[0].mxu0
      %751 = vmatprep.mubr.bf16.mxu0 0
      %752 = vmatmul.mubr.bf16.gmra.mrb[0].mxu0 %v543
      %v753 = vpop.f32.mrb[0].mxu0
      %v754 = vadd.f32 0.0, %v753
      %v755 = vpop.f32.mrb[0].mxu0
      %v756 = vpop.f32.mrb[0].mxu0
      %v757 = vadd.f32 0.0, %v756
      %v758 = vpop.f32.mrb[0].mxu0
      %759 = vmatprep.mubr.bf16.mxu0 0
      %760 = vmatmul.mubr.bf16.gmra.mrb[0].mxu0 %v546
      %v761 = vpop.f32.mrb[0].mxu0
      %v762 = vadd.f32 0.0, %v761
      %v763 = vpop.f32.mrb[0].mxu0
      %v764 = vpop.f32.mrb[0].mxu0
      %v765 = vadd.f32 0.0, %v764
      %v766 = vpop.f32.mrb[0].mxu0
      %767 = vmatprep.mubr.bf16.mxu0 0
      %768 = vmatmul.mubr.bf16.gmra.mrb[0].mxu0 %v549
      %v769 = vpop.f32.mrb[0].mxu0
      %v770 = vadd.f32 0.0, %v769
      %v771 = vpop.f32.mrb[0].mxu0
      %v772 = vpop.f32.mrb[0].mxu0
      %v773 = vadd.f32 0.0, %v772
      %v774 = vpop.f32.mrb[0].mxu0
      %775 = vmatprep.mubr.bf16.mxu0 0
      %776 = vmatmul.mubr.bf16.gmra.mrb[0].mxu0 %v552
      %v777 = vpop.f32.mrb[0].mxu0
      %v778 = vadd.f32 0.0, %v777
      %v779 = vpop.f32.mrb[0].mxu0
      %v780 = vpop.f32.mrb[0].mxu0
      %v781 = vadd.f32 0.0, %v780
      %v782 = vpop.f32.mrb[0].mxu0
      %783 = vmatprep.mubr.bf16.mxu0 0
      %784 = vmatmul.mubr.bf16.gmra.mrb[0].mxu0 %v555
      %v785 = vpop.f32.mrb[0].mxu0
      %v786 = vadd.f32 0.0, %v785
      %v787 = vpop.f32.mrb[0].mxu0
      %v788 = vpop.f32.mrb[0].mxu0
      %v789 = vadd.f32 0.0, %v788
      %v790 = vpop.f32.mrb[0].mxu0
      %791 = vmatprep.mubr.bf16.mxu0 0
      %792 = vmatmul.mubr.bf16.gmra.mrb[0].mxu0 %v558
      %v793 = vpop.f32.mrb[0].mxu0
      %v794 = vadd.f32 0.0, %v793
      %v795 = vpop.f32.mrb[0].mxu0
      %v796 = vpop.f32.mrb[0].mxu0
      %v797 = vadd.f32 0.0, %v796
      %v798 = vpop.f32.mrb[0].mxu0
      %799 = vmatprep.mubr.bf16.mxu0 0
      %800 = vmatmul.mubr.bf16.gmra.mrb[0].mxu0 %v561
      %v801 = vpop.f32.mrb[0].mxu0
      %v802 = vadd.f32 0.0, %v801
      %v803 = vpop.f32.mrb[0].mxu0
      %v804 = vpop.f32.mrb[0].mxu0
      %v805 = vadd.f32 0.0, %v804
      %v806 = vpop.f32.mrb[0].mxu0
      %807 = vmatprep.mubr.bf16.mxu0 0
      %808 = vmatmul.mubr.bf16.gmra.mrb[0].mxu0 %v564
      %v809 = vpop.f32.mrb[0].mxu0
      %v810 = vadd.f32 0.0, %v809
      %v811 = vpop.f32.mrb[0].mxu0
      %v812 = vpop.f32.mrb[0].mxu0
      %v813 = vadd.f32 0.0, %v812
      %v814 = vpop.f32.mrb[0].mxu0
      %815 = vmatprep.mubr.bf16.mxu0 0
      %816 = vmatmul.mubr.bf16.gmra.mrb[0].mxu0 %v567
      %v817 = vpop.f32.mrb[0].mxu0
      %v818 = vadd.f32 0.0, %v817
      %v819 = vpop.f32.mrb[0].mxu0
      %v820 = vpop.f32.mrb[0].mxu0
      %v821 = vadd.f32 0.0, %v820
      %v822 = vpop.f32.mrb[0].mxu0
      %823 = vmatprep.mubr.bf16.mxu0 0
      %824 = vmatmul.mubr.bf16.gmra.mrb[0].mxu0 %v570
      %v825 = vpop.f32.mrb[0].mxu0
      %v826 = vadd.f32 0.0, %v825
      %v827 = vpop.f32.mrb[0].mxu0
      %v828 = vpop.f32.mrb[0].mxu0
      %v829 = vadd.f32 0.0, %v828
      %v830 = vpop.f32.mrb[0].mxu0
      %831 = vmatprep.mubr.bf16.mxu0 0
      %832 = vmatmul.mubr.bf16.gmra.mrb[0].mxu0 %v573
      %v833 = vpop.f32.mrb[0].mxu0
      %v834 = vadd.f32 0.0, %v833
      %v835 = vpop.f32.mrb[0].mxu0
      %v836 = vpop.f32.mrb[0].mxu0
      %v837 = vadd.f32 0.0, %v836
      %v838 = vpop.f32.mrb[0].mxu0
      %839 = vmatprep.mubr.bf16.mxu0 0
      %840 = vmatmul.mubr.bf16.gmra.mrb[0].mxu0 %v576
      %v841 = vpop.f32.mrb[0].mxu0
      %v842 = vadd.f32 0.0, %v841
      %v843 = vpop.f32.mrb[0].mxu0
      %v844 = vpop.f32.mrb[0].mxu0
      %v845 = vadd.f32 0.0, %v844
      %v846 = vpop.f32.mrb[0].mxu0
      %847 = vmatprep.mubr.bf16.mxu0 0
      %848 = vmatmul.mubr.bf16.gmra.mrb[0].mxu0 %v579
      %v849 = vpop.f32.mrb[0].mxu0
      %v850 = vadd.f32 0.0, %v849
      %v851 = vpop.f32.mrb[0].mxu0
      %v852 = vpop.f32.mrb[0].mxu0
      %v853 = vadd.f32 0.0, %v852
      %v854 = vpop.f32.mrb[0].mxu0
      %855 = vmatprep.mubr.bf16.mxu0 0
      %856 = vmatmul.mubr.bf16.gmra.mrb[0].mxu0 %v582
      %v857 = vpop.f32.mrb[0].mxu0
      %v858 = vadd.f32 0.0, %v857
      %v859 = vpop.f32.mrb[0].mxu0
      %v860 = vpop.f32.mrb[0].mxu0
      %v861 = vadd.f32 0.0, %v860
      %v862 = vpop.f32.mrb[0].mxu0
      %863 = vmatprep.mubr.bf16.mxu0 0
      %864 = vmatmul.mubr.bf16.gmra.mrb[0].mxu0 %v585
      %v865 = vpop.f32.mrb[0].mxu0
      %v866 = vadd.f32 0.0, %v865
      %v867 = vpop.f32.mrb[0].mxu0
      %v868 = vpop.f32.mrb[0].mxu0
      %v869 = vadd.f32 0.0, %v868
      %v870 = vpop.f32.mrb[0].mxu0
      %871 = vmatprep.mubr.bf16.mxu0 0
      %872 = vmatmul.mubr.bf16.gmra.mrb[0].mxu0 %v588
      %v873 = vpop.f32.mrb[0].mxu0
      %v874 = vadd.f32 0.0, %v873
      %v875 = vpop.f32.mrb[0].mxu0
      %v876 = vpop.f32.mrb[0].mxu0
      %v877 = vadd.f32 0.0, %v876
      %v878 = vpop.f32.mrb[0].mxu0
      %879 = vmatprep.mubr.bf16.mxu0 0
      %880 = vmatmul.mubr.bf16.gmra.mrb[0].mxu0 %v591
      %v881 = vpop.f32.mrb[0].mxu0
      %v882 = vadd.f32 0.0, %v881
      %v883 = vpop.f32.mrb[0].mxu0
      %v884 = vpop.f32.mrb[0].mxu0
      %v885 = vadd.f32 0.0, %v884
      %v886 = vpop.f32.mrb[0].mxu0
      %887 = vmatprep.mubr.bf16.mxu0 0
      %888 = vmatmul.mubr.bf16.gmra.mrb[0].mxu0 %v594
      %v889 = vpop.f32.mrb[0].mxu0
      %v890 = vadd.f32 0.0, %v889
      %v891 = vpop.f32.mrb[0].mxu0
      %v892 = vpop.f32.mrb[0].mxu0
      %v893 = vadd.f32 0.0, %v892
      %v894 = vpop.f32.mrb[0].mxu0
      %895 = vmatprep.mubr.bf16.mxu0 0
      %896 = vmatmul.mubr.bf16.gmra.mrb[0].mxu0 %v597
      %v897 = vpop.f32.mrb[0].mxu0
      %v898 = vadd.f32 0.0, %v897
      %v899 = vpop.f32.mrb[0].mxu0
      %v900 = vpop.f32.mrb[0].mxu0
      %v901 = vadd.f32 0.0, %v900
      %v902 = vpop.f32.mrb[0].mxu0
      %903 = vmatprep.mubr.bf16.mxu0 0
      %904 = vmatmul.mubr.bf16.gmra.mrb[0].mxu0 %v600
      %v905 = vpop.f32.mrb[0].mxu0
      %v906 = vadd.f32 0.0, %v905
      %v907 = vpop.f32.mrb[0].mxu0
      %v908 = vpop.f32.mrb[0].mxu0
      %v909 = vadd.f32 0.0, %v908
      %v910 = vpop.f32.mrb[0].mxu0
      %911 = vmatprep.mubr.bf16.mxu0 0
      %912 = vmatmul.mubr.bf16.gmra.mrb[0].mxu0 %v603
      %v913 = vpop.f32.mrb[0].mxu0
      %v914 = vadd.f32 0.0, %v913
      %v915 = vpop.f32.mrb[0].mxu0
      %v916 = vpop.f32.mrb[0].mxu0
      %v917 = vadd.f32 0.0, %v916
      %v918 = vpop.f32.mrb[0].mxu0
      %919 = vmatprep.mubr.bf16.mxu0 0
      %920 = vmatmul.mubr.bf16.gmra.mrb[0].mxu0 %v606
      %v921 = vpop.f32.mrb[0].mxu0
      %v922 = vadd.f32 0.0, %v921
      %v923 = vpop.f32.mrb[0].mxu0
      %v924 = vpop.f32.mrb[0].mxu0
      %v925 = vadd.f32 0.0, %v924
      %v926 = vpop.f32.mrb[0].mxu0
      %927 = vmatprep.mubr.bf16.mxu0 0
      %928 = vmatmul.mubr.bf16.gmra.mrb[0].mxu0 %v609
      %v929 = vpop.f32.mrb[0].mxu0
      %v930 = vadd.f32 0.0, %v929
      %v931 = vpop.f32.mrb[0].mxu0
      %v932 = vpop.f32.mrb[0].mxu0
      %v933 = vadd.f32 0.0, %v932
      %v934 = vpop.f32.mrb[0].mxu0
      %935 = vmatprep.mubr.bf16.mxu0 0
      %936 = vmatmul.mubr.bf16.gmra.mrb[0].mxu0 %v612
      %v937 = vpop.f32.mrb[0].mxu0
      %v938 = vadd.f32 0.0, %v937
      %v939 = vpop.f32.mrb[0].mxu0
      %v940 = vpop.f32.mrb[0].mxu0
      %v941 = vadd.f32 0.0, %v940
      %v942 = vpop.f32.mrb[0].mxu0
      %943 = vmatprep.mubr.bf16.mxu0 0
      %944 = vmatmul.mubr.bf16.gmra.mrb[0].mxu0 %v615
      %v945 = vpop.f32.mrb[0].mxu0
      %v946 = vadd.f32 0.0, %v945
      %v947 = vpop.f32.mrb[0].mxu0
      %v948 = vpop.f32.mrb[0].mxu0
      %v949 = vadd.f32 0.0, %v948
      %v950 = vpop.f32.mrb[0].mxu0
      %951 = vmatprep.mubr.bf16.mxu0 0
      %952 = vmatmul.mubr.bf16.gmra.mrb[0].mxu0 %v618
      %v953 = vpop.f32.mrb[0].mxu0
      %v954 = vadd.f32 0.0, %v953
      %v955 = vpop.f32.mrb[0].mxu0
      %v956 = vpop.f32.mrb[0].mxu0
      %v957 = vadd.f32 0.0, %v956
      %v958 = vpop.f32.mrb[0].mxu0
      %959 = vmatprep.mubr.bf16.mxu0 0
      %960 = vmatmul.mubr.bf16.gmra.mrb[0].mxu0 %v621
      %v961 = vpop.f32.mrb[0].mxu0
      %v962 = vadd.f32 0.0, %v961
      %v963 = vpop.f32.mrb[0].mxu0
      %v964 = vpop.f32.mrb[0].mxu0
      %v965 = vadd.f32 0.0, %v964
      %v966 = vpop.f32.mrb[0].mxu0
      %967 = vmatprep.mubr.bf16.mxu0 0
      %968 = vmatmul.mubr.bf16.gmra.mrb[0].mxu0 %v624
      %v969 = vpop.f32.mrb[0].mxu0
      %v970 = vadd.f32 0.0, %v969
      %v971 = vpop.f32.mrb[0].mxu0
      %v972 = vpop.f32.mrb[0].mxu0
      %v973 = vadd.f32 0.0, %v972
      %v974 = vpop.f32.mrb[0].mxu0
      %975 = vmatprep.mubr.bf16.mxu0 0
      %976 = vmatmul.mubr.bf16.gmra.mrb[0].mxu0 %v627
      %v977 = vpop.f32.mrb[0].mxu0
      %v978 = vadd.f32 0.0, %v977
      %v979 = vpop.f32.mrb[0].mxu0
      %v980 = vpop.f32.mrb[0].mxu0
      %v981 = vadd.f32 0.0, %v980
      %v982 = vpop.f32.mrb[0].mxu0
      %983 = vmatprep.mubr.bf16.mxu0 0
      %984 = vmatmul.mubr.bf16.gmra.mrb[0].mxu0 %v630
      %v985 = vpop.f32.mrb[0].mxu0
      %v986 = vadd.f32 0.0, %v985
      %v987 = vpop.f32.mrb[0].mxu0
      %v988 = vpop.f32.mrb[0].mxu0
      %v989 = vadd.f32 0.0, %v988
      %v990 = vpop.f32.mrb[0].mxu0
      %991 = vmatprep.mubr.bf16.mxu0 0
      %992 = vmatmul.mubr.bf16.gmra.mrb[0].mxu0 %v633
      %v993 = vpop.f32.mrb[0].mxu0
      %v994 = vadd.f32 0.0, %v993
      %v995 = vpop.f32.mrb[0].mxu0
      %v996 = vpop.f32.mrb[0].mxu0
      %v997 = vadd.f32 0.0, %v996
      %v998 = vpop.f32.mrb[0].mxu0
      %999 = vmatprep.mubr.bf16.mxu0 0
      %1000 = vmatmul.mubr.bf16.gmra.mrb[0].mxu0 %v636
      %v1001 = vpop.f32.mrb[0].mxu0
      %v1002 = vadd.f32 0.0, %v1001
      %v1003 = vpop.f32.mrb[0].mxu0
      %v1004 = vpop.f32.mrb[0].mxu0
      %v1005 = vadd.f32 0.0, %v1004
      %v1006 = vpop.f32.mrb[0].mxu0
      %1007 = vmatprep.mubr.bf16.mxu0 0
      %1008 = vmatmul.mubr.bf16.gmra.mrb[0].mxu0 %v639
      %v1009 = vpop.f32.mrb[0].mxu0
      %v1010 = vadd.f32 0.0, %v1009
      %v1011 = vpop.f32.mrb[0].mxu0
      %v1012 = vpop.f32.mrb[0].mxu0
      %v1013 = vadd.f32 0.0, %v1012
      %v1014 = vpop.f32.mrb[0].mxu0
      %1015 = vmatprep.mubr.bf16.mxu0 0
      %1016 = vmatmul.mubr.bf16.gmra.mrb[0].mxu0 %v642
      %v1017 = vpop.f32.mrb[0].mxu0
      %v1018 = vadd.f32 0.0, %v1017
      %v1019 = vpop.f32.mrb[0].mxu0
      %v1020 = vpop.f32.mrb[0].mxu0
      %v1021 = vadd.f32 0.0, %v1020
      %v1022 = vpop.f32.mrb[0].mxu0
      %1023 = vmatprep.mubr.bf16.mxu0 0
      %1024 = vmatmul.mubr.bf16.gmra.mrb[0].mxu0 %v645
      %v1025 = vpop.f32.mrb[0].mxu0
      %v1026 = vadd.f32 0.0, %v1025
      %v1027 = vpop.f32.mrb[0].mxu0
      %v1028 = vpop.f32.mrb[0].mxu0
      %v1029 = vadd.f32 0.0, %v1028
      %v1030 = vpop.f32.mrb[0].mxu0
      %1031 = vmatprep.mubr.bf16.mxu0 0
      %1032 = vmatmul.mubr.bf16.gmra.mrb[0].mxu0 %v648
      %v1033 = vpop.f32.mrb[0].mxu0
      %v1034 = vadd.f32 0.0, %v1033
      %v1035 = vpop.f32.mrb[0].mxu0
      %v1036 = vpop.f32.mrb[0].mxu0
      %v1037 = vadd.f32 0.0, %v1036
      %v1038 = vpop.f32.mrb[0].mxu0
      %1039 = vmatprep.mubr.bf16.mxu0 0
      %1040 = vmatmul.mubr.bf16.gmra.mrb[0].mxu0 %v651
      %v1041 = vpop.f32.mrb[0].mxu0
      %v1042 = vadd.f32 0.0, %v1041
      %v1043 = vpop.f32.mrb[0].mxu0
      %v1044 = vpop.f32.mrb[0].mxu0
      %v1045 = vadd.f32 0.0, %v1044
      %v1046 = vpop.f32.mrb[0].mxu0
      %1047 = vmatprep.mubr.bf16.mxu0 0
      %1048 = vmatmul.mubr.bf16.gmra.mrb[0].mxu0 %v654
      %v1049 = vpop.f32.mrb[0].mxu0
      %v1050 = vadd.f32 0.0, %v1049
      %v1051 = vpop.f32.mrb[0].mxu0
      %v1052 = vpop.f32.mrb[0].mxu0
      %v1053 = vadd.f32 0.0, %v1052
      %v1054 = vpop.f32.mrb[0].mxu0
      %1055 = vmatprep.mubr.bf16.mxu0 0
      %1056 = vmatmul.mubr.bf16.gmra.mrb[0].mxu0 %v657
      %v1057 = vpop.f32.mrb[0].mxu0
      %v1058 = vadd.f32 0.0, %v1057
      %v1059 = vpop.f32.mrb[0].mxu0
      %v1060 = vpop.f32.mrb[0].mxu0
      %v1061 = vadd.f32 0.0, %v1060
      %v1062 = vpop.f32.mrb[0].mxu0
      %1063 = vmatprep.mubr.bf16.mxu0 0
      %1064 = vmatmul.mubr.bf16.gmra.mrb[0].mxu0 %v660
      %v1065 = vpop.f32.mrb[0].mxu0
      %v1066 = vadd.f32 0.0, %v1065
      %v1067 = vpop.f32.mrb[0].mxu0
      %v1068 = vpop.f32.mrb[0].mxu0
      %v1069 = vadd.f32 0.0, %v1068
      %v1070 = vpop.f32.mrb[0].mxu0
      %1071 = vmatprep.mubr.bf16.mxu0 0
      %1072 = vmatmul.mubr.bf16.gmra.mrb[0].mxu0 %v663
      %v1073 = vpop.f32.mrb[0].mxu0
      %v1074 = vadd.f32 0.0, %v1073
      %v1075 = vpop.f32.mrb[0].mxu0
      %v1076 = vpop.f32.mrb[0].mxu0
      %v1077 = vadd.f32 0.0, %v1076
      %v1078 = vpop.f32.mrb[0].mxu0
      %1079 = vmatprep.mubr.bf16.mxu0 0
      %1080 = vmatmul.mubr.bf16.gmra.mrb[0].mxu0 %v666
      %v1081 = vpop.f32.mrb[0].mxu0
      %v1082 = vadd.f32 0.0, %v1081
      %v1083 = vpop.f32.mrb[0].mxu0
      %v1084 = vpop.f32.mrb[0].mxu0
      %v1085 = vadd.f32 0.0, %v1084
      %v1086 = vpop.f32.mrb[0].mxu0
      %1087 = vmatprep.mubr.bf16.mxu0 0
      %1088 = vmatmul.mubr.bf16.gmra.mrb[0].mxu0 %v669
      %v1089 = vpop.f32.mrb[0].mxu0
      %v1090 = vadd.f32 0.0, %v1089
      %v1091 = vpop.f32.mrb[0].mxu0
      %v1092 = vpop.f32.mrb[0].mxu0
      %v1093 = vadd.f32 0.0, %v1092
      %v1094 = vpop.f32.mrb[0].mxu0
      %1095 = vmatprep.mubr.bf16.mxu0 0
      %1096 = vmatmul.mubr.bf16.gmra.mrb[0].mxu0 %v672
      %v1097 = vpop.f32.mrb[0].mxu0
      %v1098 = vadd.f32 0.0, %v1097
      %v1099 = vpop.f32.mrb[0].mxu0
      %v1100 = vpop.f32.mrb[0].mxu0
      %v1101 = vadd.f32 0.0, %v1100
      %v1102 = vpop.f32.mrb[0].mxu0
      %1103 = vmatprep.mubr.bf16.mxu0 0
      %1104 = vmatmul.mubr.bf16.gmra.mrb[0].mxu0 %v675
      %v1105 = vpop.f32.mrb[0].mxu0
      %v1106 = vadd.f32 0.0, %v1105
      %v1107 = vpop.f32.mrb[0].mxu0
      %v1108 = vpop.f32.mrb[0].mxu0
      %v1109 = vadd.f32 0.0, %v1108
      %v1110 = vpop.f32.mrb[0].mxu0
      %1111 = vmatprep.mubr.bf16.mxu0 0
      %1112 = vmatmul.mubr.bf16.gmra.mrb[0].mxu0 %v678
      %v1113 = vpop.f32.mrb[0].mxu0
      %v1114 = vadd.f32 0.0, %v1113
      %v1115 = vpop.f32.mrb[0].mxu0
      %v1116 = vpop.f32.mrb[0].mxu0
      %v1117 = vadd.f32 0.0, %v1116
      %v1118 = vpop.f32.mrb[0].mxu0
      %1119 = vdwg.mxu0
      %v1120 = vmax.f32 %v722, %v821
      %v1121 = vmax.f32 %v725, %v826
      %v1122 = vmax.f32 %v730, %v829
      %v1123 = vmax.f32 %v733, %v834
      %v1124 = vmax.f32 %v738, %v837
      %v1125 = vmax.f32 %v741, %v842
      %v1126 = vmax.f32 %v746, %v845
      %v1127 = vmax.f32 %v749, %v850
      %v1128 = vmax.f32 %v754, %v853
      %v1129 = vmax.f32 %v757, %v858
      %v1130 = vmax.f32 %v762, %v861
      %v1131 = vmax.f32 %v765, %v866
      %v1132 = vmax.f32 %v770, %v869
      %v1133 = vmax.f32 %v773, %v874
      %v1134 = vmax.f32 %v778, %v877
      %v1135 = vmax.f32 %v781, %v882
      %v1136 = vmax.f32 %v786, %v885
      %v1137 = vmax.f32 %v789, %v890
      %v1138 = vmax.f32 %v794, %v893
      %v1139 = vmax.f32 %v797, %v898
      %v1140 = vmax.f32 %v802, %v901
      %v1141 = vmax.f32 %v805, %v906
      %v1142 = vmax.f32 %v810, %v909
      %v1143 = vmax.f32 %v813, %v914
      %v1144 = vmax.f32 %v818, %v917
      %v1145 = vmax.f32 %v922, %v1021
      %v1146 = vmax.f32 %v925, %v1026
      %v1147 = vmax.f32 %v930, %v1029
      %v1148 = vmax.f32 %v933, %v1034
      %v1149 = vmax.f32 %v938, %v1037
      %v1150 = vmax.f32 %v941, %v1042
      %v1151 = vmax.f32 %v946, %v1045
      %v1152 = vmax.f32 %v949, %v1050
      %v1153 = vmax.f32 %v954, %v1053
      %v1154 = vmax.f32 %v957, %v1058
      %v1155 = vmax.f32 %v962, %v1061
      %v1156 = vmax.f32 %v965, %v1066
      %v1157 = vmax.f32 %v970, %v1069
      %v1158 = vmax.f32 %v973, %v1074
      %v1159 = vmax.f32 %v978, %v1077
      %v1160 = vmax.f32 %v981, %v1082
      %v1161 = vmax.f32 %v986, %v1085
      %v1162 = vmax.f32 %v989, %v1090
      %v1163 = vmax.f32 %v994, %v1093
      %v1164 = vmax.f32 %v997, %v1098
      %v1165 = vmax.f32 %v1002, %v1101
      %v1166 = vmax.f32 %v1005, %v1106
      %v1167 = vmax.f32 %v1010, %v1109
      %v1168 = vmax.f32 %v1013, %v1114
      %v1169 = vmax.f32 %v1018, %v1117
      %v1170 = vmax.f32 %v1120, %v1145
      %v1171 = vmax.f32 %v1121, %v1146
      %v1172 = vmax.f32 %v1122, %v1147
      %v1173 = vmax.f32 %v1123, %v1148
      %v1174 = vmax.f32 %v1124, %v1149
      %v1175 = vmax.f32 %v1125, %v1150
      %v1176 = vmax.f32 %v1126, %v1151
      %v1177 = vmax.f32 %v1127, %v1152
      %v1178 = vmax.f32 %v1128, %v1153
      %v1179 = vmax.f32 %v1129, %v1154
      %v1180 = vmax.f32 %v1130, %v1155
      %v1181 = vmax.f32 %v1131, %v1156
      %v1182 = vmax.f32 %v1132, %v1157
      %v1183 = vmax.f32 %v1133, %v1158
      %v1184 = vmax.f32 %v1134, %v1159
      %v1185 = vmax.f32 %v1135, %v1160
      %v1186 = vmax.f32 %v1136, %v1161
      %v1187 = vmax.f32 %v1137, %v1162
      %v1188 = vmax.f32 %v1138, %v1163
      %v1189 = vmax.f32 %v1139, %v1164
      %v1190 = vmax.f32 %v1140, %v1165
      %v1191 = vmax.f32 %v1141, %v1166
      %v1192 = vmax.f32 %v1142, %v1167
      %v1193 = vmax.f32 %v1143, %v1168
      %v1194 = vmax.f32 %v1144, %v1169
      %v1195 = vld [vmem:[%s2] sm:$0x1]
      %v1197 = vlaneseq
      %v1198 = vshrl.u32 %v1197, 7
      %v1199 = vsub.s32 0, %v1198
      %v1200 = vrot.slane %v1195, %v1199
      %v1202 = vadd.f32 %v1170, %v1200
      %v1203 = vadd.f32 %v1171, %v1200
      %v1204 = vadd.f32 %v1172, %v1200
      %v1205 = vadd.f32 %v1173, %v1200
      %v1206 = vadd.f32 %v1174, %v1200
      %v1207 = vadd.f32 %v1175, %v1200
      %v1208 = vadd.f32 %v1176, %v1200
      %v1209 = vadd.f32 %v1177, %v1200
      %v1210 = vadd.f32 %v1178, %v1200
      %v1211 = vadd.f32 %v1179, %v1200
      %v1212 = vadd.f32 %v1180, %v1200
      %v1213 = vadd.f32 %v1181, %v1200
      %v1214 = vadd.f32 %v1182, %v1200
      %v1215 = vadd.f32 %v1183, %v1200
      %v1216 = vadd.f32 %v1184, %v1200
      %v1217 = vadd.f32 %v1185, %v1200
      %v1218 = vadd.f32 %v1186, %v1200
      %v1219 = vadd.f32 %v1187, %v1200
      %v1220 = vadd.f32 %v1188, %v1200
      %v1221 = vadd.f32 %v1189, %v1200
      %v1222 = vadd.f32 %v1190, %v1200
      %v1223 = vadd.f32 %v1191, %v1200
      %v1224 = vadd.f32 %v1192, %v1200
      %v1225 = vadd.f32 %v1193, %v1200
      %v1226 = vadd.f32 %v1194, %v1200
      %v1227 = vmax.f32 %v1202, 0.0
      %v1228 = vmax.f32 %v1203, 0.0
      %v1229 = vmax.f32 %v1204, 0.0
      %v1230 = vmax.f32 %v1205, 0.0
      %v1231 = vmax.f32 %v1206, 0.0
      %v1232 = vmax.f32 %v1207, 0.0
      %v1233 = vmax.f32 %v1208, 0.0
      %v1234 = vmax.f32 %v1209, 0.0
      %v1235 = vmax.f32 %v1210, 0.0
      %v1236 = vmax.f32 %v1211, 0.0
      %v1237 = vmax.f32 %v1212, 0.0
      %v1238 = vmax.f32 %v1213, 0.0
      %v1239 = vmax.f32 %v1214, 0.0
      %v1240 = vmax.f32 %v1215, 0.0
      %v1241 = vmax.f32 %v1216, 0.0
      %v1242 = vmax.f32 %v1217, 0.0
      %v1243 = vmax.f32 %v1218, 0.0
      %v1244 = vmax.f32 %v1219, 0.0
      %v1245 = vmax.f32 %v1220, 0.0
      %v1246 = vmax.f32 %v1221, 0.0
      %v1247 = vmax.f32 %v1222, 0.0
      %v1248 = vmax.f32 %v1223, 0.0
      %v1249 = vmax.f32 %v1224, 0.0
      %v1250 = vmax.f32 %v1225, 0.0
      %v1251 = vmax.f32 %v1226, 0.0
      %v1252 = vpack.c.bf16 %v1228, %v1227
      %v1253 = vpack.c.bf16 %v1230, %v1229
      %v1254 = vpack.c.bf16 %v1232, %v1231
      %v1255 = vpack.c.bf16 %v1234, %v1233
      %v1256 = vpack.c.bf16 %v1236, %v1235
      %v1257 = vpack.c.bf16 %v1238, %v1237
      %v1258 = vpack.c.bf16 %v1240, %v1239
      %v1259 = vpack.c.bf16 %v1242, %v1241
      %v1260 = vpack.c.bf16 %v1244, %v1243
      %v1261 = vpack.c.bf16 %v1246, %v1245
      %v1262 = vpack.c.bf16 %v1248, %v1247
      %v1263 = vpack.c.bf16 %v1250, %v1249
      %v1264 = vpack.c.bf16 %v1251, %v1251
      %v1278 = vunpack.c.l.b16 %v1252
      %v1279 = vunpack.c.h.b16 %v1252
      %v1280 = vunpack.c.l.b16 %v1253
      %v1281 = vunpack.c.h.b16 %v1253
      %v1282 = vunpack.c.l.b16 %v1254
      %v1283 = vunpack.c.h.b16 %v1254
      %v1284 = vunpack.c.l.b16 %v1255
      %v1285 = vunpack.c.h.b16 %v1255
      %v1286 = vunpack.c.l.b16 %v1256
      %v1287 = vunpack.c.h.b16 %v1256
      %v1288 = vunpack.c.l.b16 %v1257
      %v1289 = vunpack.c.h.b16 %v1257
      %v1290 = vunpack.c.l.b16 %v1258
      %v1291 = vunpack.c.h.b16 %v1258
      %v1292 = vunpack.c.l.b16 %v1259
      %v1293 = vunpack.c.h.b16 %v1259
      %v1294 = vunpack.c.l.b16 %v1260
      %v1295 = vunpack.c.h.b16 %v1260
      %v1296 = vunpack.c.l.b16 %v1261
      %v1297 = vunpack.c.h.b16 %v1261
      %v1298 = vunpack.c.l.b16 %v1262
      %v1299 = vunpack.c.h.b16 %v1262
      %v1300 = vunpack.c.l.b16 %v1263
      %v1301 = vunpack.c.h.b16 %v1263
      %v1302 = vunpack.c.l.b16 %v1264
      %v1303 = vpack.c.b16 %v1278, %v1278
      %v1304 = vpack.c.b16 %v1279, %v1279
      %v1305 = vpack.c.b16 %v1280, %v1280
      %v1306 = vpack.c.b16 %v1281, %v1281
      %v1307 = vpack.c.b16 %v1282, %v1282
      %v1308 = vpack.c.b16 %v1283, %v1283
      %v1309 = vpack.c.b16 %v1284, %v1284
      %v1310 = vpack.c.b16 %v1285, %v1285
      %v1311 = vpack.c.b16 %v1286, %v1286
      %v1312 = vpack.c.b16 %v1287, %v1287
      %v1313 = vpack.c.b16 %v1288, %v1288
      %v1314 = vpack.c.b16 %v1289, %v1289
      %v1315 = vpack.c.b16 %v1290, %v1290
      %v1316 = vpack.c.b16 %v1291, %v1291
      %v1317 = vpack.c.b16 %v1292, %v1292
      %v1318 = vpack.c.b16 %v1293, %v1293
      %v1319 = vpack.c.b16 %v1294, %v1294
      %v1320 = vpack.c.b16 %v1295, %v1295
      %v1321 = vpack.c.b16 %v1296, %v1296
      %v1322 = vpack.c.b16 %v1297, %v1297
      %v1323 = vpack.c.b16 %v1298, %v1298
      %v1324 = vpack.c.b16 %v1299, %v1299
      %v1325 = vpack.c.b16 %v1300, %v1300
      %v1326 = vpack.c.b16 %v1301, %v1301
      %v1327 = vpack.c.b16 %v1302, %v1302
      %vm1353 = vcmask 257024
      %1354 = vst.msk [vmem:[%s170] sm:$0xf] %vm1353, %v1303
      %1355 = vst.msk [vmem:[%s170 + $0x4] sm:$0xf] %vm1353, %v1304
      %1356 = vst.msk [vmem:[%s170 + $0x8] sm:$0xf] %vm1353, %v1305
      %1357 = vst.msk [vmem:[%s170 + $0xc] sm:$0xf] %vm1353, %v1306
      %1358 = vst.msk [vmem:[%s170 + $0x10] sm:$0xf] %vm1353, %v1307
      %1359 = vst.msk [vmem:[%s170 + $0x14] sm:$0xf] %vm1353, %v1308
      %1360 = vst.msk [vmem:[%s170 + $0x18] sm:$0xf] %vm1353, %v1309
      %1361 = vst.msk [vmem:[%s170 + $0x1c] sm:$0xf] %vm1353, %v1310
      %1362 = vst.msk [vmem:[%s170 + $0x20] sm:$0xf] %vm1353, %v1311
      %1363 = vst.msk [vmem:[%s170 + $0x24] sm:$0xf] %vm1353, %v1312
      %1364 = vst.msk [vmem:[%s170 + $0x28] sm:$0xf] %vm1353, %v1313
      %1365 = vst.msk [vmem:[%s170 + $0x2c] sm:$0xf] %vm1353, %v1314
      %1366 = vst.msk [vmem:[%s170 + $0x30] sm:$0xf] %vm1353, %v1315
      %1367 = vst.msk [vmem:[%s170 + $0x34] sm:$0xf] %vm1353, %v1316
      %1368 = vst.msk [vmem:[%s170 + $0x38] sm:$0xf] %vm1353, %v1317
      %1369 = vst.msk [vmem:[%s170 + $0x3c] sm:$0xf] %vm1353, %v1318
      %1370 = vst.msk [vmem:[%s170 + $0x40] sm:$0xf] %vm1353, %v1319
      %1371 = vst.msk [vmem:[%s170 + $0x44] sm:$0xf] %vm1353, %v1320
      %1372 = vst.msk [vmem:[%s170 + $0x48] sm:$0xf] %vm1353, %v1321
      %1373 = vst.msk [vmem:[%s170 + $0x4c] sm:$0xf] %vm1353, %v1322
      %1374 = vst.msk [vmem:[%s170 + $0x50] sm:$0xf] %vm1353, %v1323
      %1375 = vst.msk [vmem:[%s170 + $0x54] sm:$0xf] %vm1353, %v1324
      %1376 = vst.msk [vmem:[%s170 + $0x58] sm:$0xf] %vm1353, %v1325
      %1377 = vst.msk [vmem:[%s170 + $0x5c] sm:$0xf] %vm1353, %v1326
      %1378 = vst.msk [vmem:[%s170 + $0x60] sm:$0xf] %vm1353, %v1327
      %p1379 = scmp.lt.s32.totalorder %s14, 1
      %s1380 = scalar_select %p1379, %s14, 1
      %s1381 = smul.addr %s1380, 25
      %s1382 = smul.addr %s1381, 4
      %s1383 = scalar_lea.vmem %s3, %s1382
      // Predicated region
      $region33: #{forward.3} parent=31 // pred_check
        %p1384 = pneg %p100
      $region34: #{forward.3} parent=31 // pred_check_branch
        %1386 = sbr.rel (%p1384) target = $region36
      $region35: #{forward.3} parent=31 // pred_region
        _
      $region36: #{forward.3} parent=31 // pred_fallthru
        _
    $region32: #{forward.3} parent=5 // pred_fallthru
      _
    %p1387 = scmp.le.s32.totalorder 2, %s9
    // Predicated region
    $region37: #{forward.3} parent=5 // pred_check
      %p1388 = pneg %p1387
    $region38: #{forward.3} parent=5 // pred_check_branch
      %1390 = sbr.rel (%p1388) target = $region40
    $region39: #{forward.3} parent=5 // pred_region
      %s1391 = ssub.s32 %s9, 2
      // Predicated region
      $region41: #{forward.3} parent=39 // pred_check
        %p1392 = pneg %p106
      $region42: #{forward.3} parent=39 // pred_check_branch
        %1394 = sbr.rel (%p1392) target = $region44
      $region43: #{forward.3} parent=39 // pred_region
        %p1395 = scmp.lt.s32.totalorder %s15, 1
        %s1396 = scalar_select %p1395, %s15, 1
        %s1397 = smul.addr %s1396, 25
        %s1398 = smul.addr %s1397, 4
        %s1399 = scalar_lea.vmem %s3, %s1398
      $region44: #{forward.3} parent=39 // pred_fallthru
        _
    $region40: #{forward.3} parent=5 // pred_fallthru
      _
  $region6: #{forward.3} parent=0 // loop_footer
    %s13 = sadd.s32 1, %s9
  $region7: #{forward.3} parent=0 // loop_footer_branch
    %8 = sbr.rel target = $region3
  $region8: #{forward.3} parent=0 // loop_exit
    _

// kernel: forward.4
$region0: #{forward.4}
  #allocation0 [shape = 'u32[]', space=smem, size = 0x4, offset = 0x4, fixed_abs, tag = 'smem constant byte address 0x4 - core index']
  #allocation1 [shape = 'u32[144,128]{1,0:T(1,128)}', space=vmem, size = 0x12000, scoped, tag = 'internal scratch']
  %s0 = inlined_call_operand.vmem [shape: bf16[2,4,56,288], index: 0, kind: input, shape index: {}]
  %s1 = inlined_call_operand.vmem [shape: bf16[288,64], index: 1, kind: input, shape index: {}]
  %s2 = inlined_call_operand.vmem [shape: f32[1,64], index: 2, kind: input, shape index: {}]
  %s3 = inlined_call_operand.vmem [shape: bf16[2,56,64], index: 3, kind: output, shape index: {}]
  %s4 = sld [smem:[#allocation0]]
  $region45: #{forward.4} parent=0
    _
  %s6 = ssub.s32 1, %s4
  %s7 = scalar_select 0, %s6, %s4
  loop: start=0, step=1, limit=4
  $region2: #{forward.4} parent=0 // loop_pre_header
    _
  $region3: #{forward.4} parent=0 // loop_header
    %s9 = sphi 0, %s13
    %p10 = scmp.ge.s32.totalorder %s9, 4
    %s19 = sphi 0, %s21
    %s22 = sphi 0, %s19
    %s23 = sphi 0, %s22
    %s39 = sphi 0, %s23
    %s43 = sphi 0, %s43
    %s45 = sphi 0, %s43
    %s46 = sphi 0, %s45
    %s60 = sphi 0, %s46
    %s64 = sphi 0, %s64
    %s66 = sphi 0, %s64
    %s67 = sphi 0, %s66
    %s81 = sphi 0, %s67
    %s87 = sphi 0, %s89
    %s90 = sphi 0, %s87
    %s91 = sphi 0, %s90
    %s107 = sphi 0, %s91
  $region4: #{forward.4} parent=0 // loop_header_branch
    %12 = sbr.rel (%p10) target = $region8
  $region5: #{forward.4} parent=0 // loop_body
    %s14 = ssub.s32 %s9, 1
    %s15 = ssub.s32 %s9, 2
    %s16 = sadd.s32 %s9, 1
    %s17 = ssub.s32 %s9, %s16
    %p18 = scmp.eq.s32.totalorder %s17, 0
    %s20 = sadd.s32 %s19, 1
    %s21 = scalar_select %p18, %s19, %s20
    %p24 = pneg %p18
    %p25 = scmp.eq.s32.totalorder %s9, 1
    %p26 = por %p24, %p25
    %p27 = scmp.ne.s32.totalorder %s19, %s22
    %p28 = scmp.eq.s32.totalorder %s9, 0
    %p29 = por %p27, %p28
    %p30 = scmp.ne.s32.totalorder %s19, %s22
    %p31 = scmp.eq.s32.totalorder %s14, 1
    %p32 = por %p30, %p31
    %p33 = scmp.ne.s32.totalorder %s22, %s23
    %p34 = scmp.eq.s32.totalorder %s14, 0
    %p35 = por %p33, %p34
    %p36 = scmp.ne.s32.totalorder %s22, %s23
    %p37 = scmp.eq.s32.totalorder %s15, 1
    %p38 = por %p36, %p37
    %p40 = scmp.ne.s32.totalorder %s23, %s39
    %p41 = scmp.eq.s32.totalorder %s15, 0
    %p42 = por %p40, %p41
    %s44 = sadd.s32 %s43, 1
    %p47 = scmp.eq.s32.totalorder %s9, 1
    %p48 = scmp.ne.s32.totalorder %s43, %s45
    %p49 = scmp.eq.s32.totalorder %s9, 0
    %p50 = por %p48, %p49
    %p51 = scmp.ne.s32.totalorder %s43, %s45
    %p52 = scmp.eq.s32.totalorder %s14, 1
    %p53 = por %p51, %p52
    %p54 = scmp.ne.s32.totalorder %s45, %s46
    %p55 = scmp.eq.s32.totalorder %s14, 0
    %p56 = por %p54, %p55
    %p57 = scmp.ne.s32.totalorder %s45, %s46
    %p58 = scmp.eq.s32.totalorder %s15, 1
    %p59 = por %p57, %p58
    %p61 = scmp.ne.s32.totalorder %s46, %s60
    %p62 = scmp.eq.s32.totalorder %s15, 0
    %p63 = por %p61, %p62
    %s65 = sadd.s32 %s64, 1
    %p68 = scmp.eq.s32.totalorder %s9, 1
    %p69 = scmp.ne.s32.totalorder %s64, %s66
    %p70 = scmp.eq.s32.totalorder %s9, 0
    %p71 = por %p69, %p70
    %p72 = scmp.ne.s32.totalorder %s64, %s66
    %p73 = scmp.eq.s32.totalorder %s14, 1
    %p74 = por %p72, %p73
    %p75 = scmp.ne.s32.totalorder %s66, %s67
    %p76 = scmp.eq.s32.totalorder %s14, 0
    %p77 = por %p75, %p76
    %p78 = scmp.ne.s32.totalorder %s66, %s67
    %p79 = scmp.eq.s32.totalorder %s15, 1
    %p80 = por %p78, %p79
    %p82 = scmp.ne.s32.totalorder %s67, %s81
    %p83 = scmp.eq.s32.totalorder %s15, 0
    %p84 = por %p82, %p83
    %s85 = ssub.s32 %s9, %s16
    %p86 = scmp.eq.s32.totalorder %s85, 0
    %s88 = sadd.s32 %s87, 1
    %s89 = scalar_select %p86, %s87, %s88
    %p92 = pneg %p86
    %p93 = scmp.eq.s32.totalorder %s9, 1
    %p94 = por %p92, %p93
    %p95 = scmp.ne.s32.totalorder %s87, %s90
    %p96 = scmp.eq.s32.totalorder %s9, 0
    %p97 = por %p95, %p96
    %p98 = scmp.ne.s32.totalorder %s87, %s90
    %p99 = scmp.eq.s32.totalorder %s14, 1
    %p100 = por %p98, %p99
    %p101 = scmp.ne.s32.totalorder %s90, %s91
    %p102 = scmp.eq.s32.totalorder %s14, 0
    %p103 = por %p101, %p102
    %p104 = scmp.ne.s32.totalorder %s90, %s91
    %p105 = scmp.eq.s32.totalorder %s15, 1
    %p106 = por %p104, %p105
    %p108 = scmp.ne.s32.totalorder %s91, %s107
    %p109 = scmp.eq.s32.totalorder %s15, 0
    %p110 = por %p108, %p109
    %p111 = scmp.le.s32.totalorder 1, %s9
    %p112 = scmp.lt.s32.totalorder %s9, 3
    %p113 = pnand %p111, %p112
    %p114 = pneg %p113
    // Predicated region
    $region9: #{forward.4} parent=5 // pred_check
      _
    $region10: #{forward.4} parent=5 // pred_check_branch
      %116 = sbr.rel (%p113) target = $region12
    $region11: #{forward.4} parent=5 // pred_region
      %s117 = ssub.s32 %s9, 1
      // Predicated region
      $region13: #{forward.4} parent=11 // pred_check
        %p118 = pneg %p56
      $region14: #{forward.4} parent=11 // pred_check_branch
        %120 = sbr.rel (%p118) target = $region16
      $region15: #{forward.4} parent=11 // pred_region
        _
      $region16: #{forward.4} parent=11 // pred_fallthru
        _
      // Predicated region
      $region17: #{forward.4} parent=11 // pred_check
        %p121 = pneg %p77
      $region18: #{forward.4} parent=11 // pred_check_branch
        %123 = sbr.rel (%p121) target = $region20
      $region19: #{forward.4} parent=11 // pred_region
        _
      $region20: #{forward.4} parent=11 // pred_fallthru
        _
    $region12: #{forward.4} parent=5 // pred_fallthru
      _
    %p124 = scmp.lt.s32.totalorder %s9, 2
    // Predicated region
    $region21: #{forward.4} parent=5 // pred_check
      %p125 = pneg %p124
    $region22: #{forward.4} parent=5 // pred_check_branch
      %127 = sbr.rel (%p125) target = $region24
    $region23: #{forward.4} parent=5 // pred_region
      // Predicated region
      $region25: #{forward.4} parent=23 // pred_check
        %p128 = pneg %p29
      $region26: #{forward.4} parent=23 // pred_check_branch
        %130 = sbr.rel (%p128) target = $region28
      $region27: #{forward.4} parent=23 // pred_region
        %p131 = scmp.lt.s32.totalorder %s9, 1
        %s132 = scalar_select %p131, %s9, 1
        %s133 = smul.addr %s132, 84
        %s134 = smul.addr %s133, 4
        %s135 = scalar_lea.vmem %s0, %s134
      $region28: #{forward.4} parent=23 // pred_fallthru
        _
    $region24: #{forward.4} parent=5 // pred_fallthru
      _
    %p136 = scmp.le.s32.totalorder 1, %s9
    %p137 = scmp.lt.s32.totalorder %s9, 3
    %p138 = pnand %p136, %p137
    %p139 = pneg %p138
    // Predicated region
    $region29: #{forward.4} parent=5 // pred_check
      _
    $region30: #{forward.4} parent=5 // pred_check_branch
      %141 = sbr.rel (%p138) target = $region32
    $region31: #{forward.4} parent=5 // pred_region
      %s142 = ssub.s32 %s9, 1
      %p143 = scmp.lt.s32.totalorder %s14, 1
      %s144 = scalar_select %p143, %s14, 1
      %s145 = smul.addr %s144, 84
      %s146 = smul.addr %s145, 4
      %s147 = scalar_lea.vmem %s0, %s146
      %p148 = pneg %p35
      %p149 = pneg %p32
      %p150 = pneg %p56
      %p151 = pneg %p53
      %p152 = pneg %p77
      %p153 = pneg %p74
      %p154 = pneg %p103
      %p155 = pneg %p100
      %p156 = scmp.lt.s32.totalorder %s14, 1
      %s157 = scalar_select %p156, %s14, 1
      %s158 = smul.addr %s157, 7
      %s159 = smul.addr %s158, 4
      %s160 = scalar_lea.vmem %s3, %s159
      %p161 = scmp.lt.s32.totalorder %s14, 1
      %s162 = scalar_select %p161, %s14, 1
      %s163 = smul.addr %s162, 84
      %s164 = smul.addr %s163, 4
      %s165 = scalar_lea.vmem %s0, %s164
      %p166 = scmp.lt.s32.totalorder %s14, 1
      %s167 = scalar_select %p166, %s14, 1
      %s168 = smul.addr %s167, 7
      %s169 = smul.addr %s168, 4
      %s170 = scalar_lea.vmem %s3, %s169
      %v172 = vld [vmem:[%s165] sm:$0xff]
      %v173 = vld [vmem:[%s165 + $0x8] sm:$0xf]
      %v174 = vld [vmem:[%s165 + $0xc] sm:$0xff]
      %v175 = vld [vmem:[%s165 + $0x14] sm:$0xf]
      %v176 = vld [vmem:[%s165 + $0x18] sm:$0xff]
      %v177 = vld [vmem:[%s165 + $0x20] sm:$0xf]
      %v178 = vld [vmem:[%s165 + $0x24] sm:$0xff]
      %v179 = vld [vmem:[%s165 + $0x2c] sm:$0xf]
      %v180 = vld [vmem:[%s165 + $0x30] sm:$0xff]
      %v181 = vld [vmem:[%s165 + $0x38] sm:$0xf]
      %v182 = vld [vmem:[%s165 + $0x3c] sm:$0xff]
      %v183 = vld [vmem:[%s165 + $0x44] sm:$0xf]
      %v184 = vld [vmem:[%s165 + $0x48] sm:$0xff]
      %v185 = vld [vmem:[%s165 + $0x50] sm:$0xf]
      %v186 = vld [vmem:[%s165 + $0x54] sm:$0xff]
      %v187 = vld [vmem:[%s165 + $0x5c] sm:$0xf]
      %v188 = vld [vmem:[%s165 + $0x60] sm:$0xff]
      %v189 = vld [vmem:[%s165 + $0x68] sm:$0xf]
      %v190 = vld [vmem:[%s165 + $0x6c] sm:$0xff]
      %v191 = vld [vmem:[%s165 + $0x74] sm:$0xf]
      %v192 = vld [vmem:[%s165 + $0x78] sm:$0xff]
      %v193 = vld [vmem:[%s165 + $0x80] sm:$0xf]
      %v194 = vld [vmem:[%s165 + $0x84] sm:$0xff]
      %v195 = vld [vmem:[%s165 + $0x8c] sm:$0xf]
      %v196 = vld [vmem:[%s165 + $0x90] sm:$0xff]
      %v197 = vld [vmem:[%s165 + $0x98] sm:$0xf]
      %v198 = vld [vmem:[%s165 + $0x9c] sm:$0xff]
      %v199 = vld [vmem:[%s165 + $0xa4] sm:$0xf]
      %v200 = vld [vmem:[%s165 + $0xa8] sm:$0xff]
      %v201 = vld [vmem:[%s165 + $0xb0] sm:$0xf]
      %v202 = vld [vmem:[%s165 + $0xb4] sm:$0xff]
      %v203 = vld [vmem:[%s165 + $0xbc] sm:$0xf]
      %v204 = vld [vmem:[%s165 + $0xc0] sm:$0xff]
      %v205 = vld [vmem:[%s165 + $0xc8] sm:$0xf]
      %v206 = vld [vmem:[%s165 + $0xcc] sm:$0xff]
      %v207 = vld [vmem:[%s165 + $0xd4] sm:$0xf]
      %v208 = vld [vmem:[%s165 + $0xd8] sm:$0xff]
      %v209 = vld [vmem:[%s165 + $0xe0] sm:$0xf]
      %v210 = vld [vmem:[%s165 + $0xe4] sm:$0xff]
      %v211 = vld [vmem:[%s165 + $0xec] sm:$0xf]
      %v212 = vld [vmem:[%s165 + $0xf0] sm:$0xff]
      %v213 = vld [vmem:[%s165 + $0xf8] sm:$0xf]
      %v214 = vld [vmem:[%s165 + $0xfc] sm:$0xff]
      %v215 = vld [vmem:[%s165 + $0x104] sm:$0xf]
      %v216 = vld [vmem:[%s165 + $0x108] sm:$0xff]
      %v217 = vld [vmem:[%s165 + $0x110] sm:$0xf]
      %v218 = vld [vmem:[%s165 + $0x114] sm:$0xff]
      %v219 = vld [vmem:[%s165 + $0x11c] sm:$0xf]
      %v220 = vld [vmem:[%s165 + $0x120] sm:$0xff]
      %v221 = vld [vmem:[%s165 + $0x128] sm:$0xf]
      %v222 = vld [vmem:[%s165 + $0x12c] sm:$0xff]
      %v223 = vld [vmem:[%s165 + $0x134] sm:$0xf]
      %v224 = vld [vmem:[%s165 + $0x138] sm:$0xff]
      %v225 = vld [vmem:[%s165 + $0x140] sm:$0xf]
      %v226 = vld [vmem:[%s165 + $0x144] sm:$0xff]
      %v227 = vld [vmem:[%s165 + $0x14c] sm:$0xf]
      %v228 = vld [vmem:[%s1] sm:$0xf]
      %v229 = vld [vmem:[%s1 + $0x4] sm:$0xf]
      %v230 = vld [vmem:[%s1 + $0x8] sm:$0xf]
      %v231 = vld [vmem:[%s1 + $0xc] sm:$0xf]
      %v232 = vld [vmem:[%s1 + $0x10] sm:$0xf]
      %v233 = vld [vmem:[%s1 + $0x14] sm:$0xf]
      %v234 = vld [vmem:[%s1 + $0x18] sm:$0xf]
      %v235 = vld [vmem:[%s1 + $0x1c] sm:$0xf]
      %v236 = vld [vmem:[%s1 + $0x20] sm:$0xf]
      %v237 = vld [vmem:[%s1 + $0x24] sm:$0xf]
      %v238 = vld [vmem:[%s1 + $0x28] sm:$0xf]
      %v239 = vld [vmem:[%s1 + $0x2c] sm:$0xf]
      %v240 = vld [vmem:[%s1 + $0x30] sm:$0xf]
      %v241 = vld [vmem:[%s1 + $0x34] sm:$0xf]
      %v242 = vld [vmem:[%s1 + $0x38] sm:$0xf]
      %v243 = vld [vmem:[%s1 + $0x3c] sm:$0xf]
      %v244 = vld [vmem:[%s1 + $0x40] sm:$0xf]
      %v245 = vld [vmem:[%s1 + $0x44] sm:$0xf]
      %v246 = vld [vmem:[%s1 + $0x48] sm:$0xf]
      %v247 = vld [vmem:[%s1 + $0x4c] sm:$0xf]
      %v248 = vld [vmem:[%s1 + $0x50] sm:$0xf]
      %v249 = vld [vmem:[%s1 + $0x54] sm:$0xf]
      %v250 = vld [vmem:[%s1 + $0x58] sm:$0xf]
      %v251 = vld [vmem:[%s1 + $0x5c] sm:$0xf]
      %v252 = vld [vmem:[%s1 + $0x60] sm:$0xf]
      %v253 = vld [vmem:[%s1 + $0x64] sm:$0xf]
      %v254 = vld [vmem:[%s1 + $0x68] sm:$0xf]
      %v255 = vld [vmem:[%s1 + $0x6c] sm:$0xf]
      %v256 = vld [vmem:[%s1 + $0x70] sm:$0xf]
      %v257 = vld [vmem:[%s1 + $0x74] sm:$0xf]
      %v258 = vld [vmem:[%s1 + $0x78] sm:$0xf]
      %v259 = vld [vmem:[%s1 + $0x7c] sm:$0xf]
      %v260 = vld [vmem:[%s1 + $0x80] sm:$0xf]
      %v261 = vld [vmem:[%s1 + $0x84] sm:$0xf]
      %v262 = vld [vmem:[%s1 + $0x88] sm:$0xf]
      %v263 = vld [vmem:[%s1 + $0x8c] sm:$0xf]
      %v320 = vunpack.c.l.b16 %v172
      %v321 = vunpack.c.h.b16 %v172
      %v322 = vunpack.c.l.b16 %v173
      %v323 = vunpack.c.l.b16 %v174
      %v324 = vunpack.c.h.b16 %v174
      %v325 = vunpack.c.l.b16 %v175
      %v326 = vunpack.c.l.b16 %v176
      %v327 = vunpack.c.h.b16 %v176
      %v328 = vunpack.c.l.b16 %v177
      %v329 = vunpack.c.l.b16 %v178
      %v330 = vunpack.c.h.b16 %v178
      %v331 = vunpack.c.l.b16 %v179
      %v332 = vunpack.c.l.b16 %v180
      %v333 = vunpack.c.h.b16 %v180
      %v334 = vunpack.c.l.b16 %v181
      %v335 = vunpack.c.l.b16 %v182
      %v336 = vunpack.c.h.b16 %v182
      %v337 = vunpack.c.l.b16 %v183
      %v338 = vunpack.c.l.b16 %v184
      %v339 = vunpack.c.h.b16 %v184
      %v340 = vunpack.c.l.b16 %v185
      %v341 = vunpack.c.l.b16 %v186
      %v342 = vunpack.c.h.b16 %v186
      %v343 = vunpack.c.l.b16 %v187
      %v344 = vunpack.c.l.b16 %v188
      %v345 = vunpack.c.h.b16 %v188
      %v346 = vunpack.c.l.b16 %v189
      %v347 = vunpack.c.l.b16 %v190
      %v348 = vunpack.c.h.b16 %v190
      %v349 = vunpack.c.l.b16 %v191
      %v350 = vunpack.c.l.b16 %v192
      %v351 = vunpack.c.h.b16 %v192
      %v352 = vunpack.c.l.b16 %v193
      %v353 = vunpack.c.l.b16 %v194
      %v354 = vunpack.c.h.b16 %v194
      %v355 = vunpack.c.l.b16 %v195
      %v356 = vunpack.c.l.b16 %v196
      %v357 = vunpack.c.h.b16 %v196
      %v358 = vunpack.c.l.b16 %v197
      %v359 = vunpack.c.l.b16 %v198
      %v360 = vunpack.c.h.b16 %v198
      %v361 = vunpack.c.l.b16 %v199
      %v362 = vunpack.c.l.b16 %v200
      %v363 = vunpack.c.h.b16 %v200
      %v364 = vunpack.c.l.b16 %v201
      %v365 = vunpack.c.l.b16 %v202
      %v366 = vunpack.c.h.b16 %v202
      %v367 = vunpack.c.l.b16 %v203
      %v368 = vunpack.c.l.b16 %v204
      %v369 = vunpack.c.h.b16 %v204
      %v370 = vunpack.c.l.b16 %v205
      %v371 = vunpack.c.l.b16 %v206
      %v372 = vunpack.c.h.b16 %v206
      %v373 = vunpack.c.l.b16 %v207
      %v374 = vunpack.c.l.b16 %v208
      %v375 = vunpack.c.h.b16 %v208
      %v376 = vunpack.c.l.b16 %v209
      %v377 = vunpack.c.l.b16 %v210
      %v378 = vunpack.c.h.b16 %v210
      %v379 = vunpack.c.l.b16 %v211
      %v380 = vunpack.c.l.b16 %v212
      %v381 = vunpack.c.h.b16 %v212
      %v382 = vunpack.c.l.b16 %v213
      %v383 = vunpack.c.l.b16 %v214
      %v384 = vunpack.c.h.b16 %v214
      %v385 = vunpack.c.l.b16 %v215
      %v386 = vunpack.c.l.b16 %v216
      %v387 = vunpack.c.h.b16 %v216
      %v388 = vunpack.c.l.b16 %v217
      %v389 = vunpack.c.l.b16 %v218
      %v390 = vunpack.c.h.b16 %v218
      %v391 = vunpack.c.l.b16 %v219
      %v392 = vunpack.c.l.b16 %v220
      %v393 = vunpack.c.h.b16 %v220
      %v394 = vunpack.c.l.b16 %v221
      %v395 = vunpack.c.l.b16 %v222
      %v396 = vunpack.c.h.b16 %v222
      %v397 = vunpack.c.l.b16 %v223
      %v398 = vunpack.c.l.b16 %v224
      %v399 = vunpack.c.h.b16 %v224
      %v400 = vunpack.c.l.b16 %v225
      %v401 = vunpack.c.l.b16 %v226
      %v402 = vunpack.c.h.b16 %v226
      %v403 = vunpack.c.l.b16 %v227
      %v404 = vpack.c.b16 %v323, %v320
      %v405 = vpack.c.b16 %v324, %v321
      %v406 = vpack.c.b16 %v325, %v322
      %v407 = vpack.c.b16 %v329, %v326
      %v408 = vpack.c.b16 %v330, %v327
      %v409 = vpack.c.b16 %v331, %v328
      %v410 = vpack.c.b16 %v335, %v332
      %v411 = vpack.c.b16 %v336, %v333
      %v412 = vpack.c.b16 %v337, %v334
      %v413 = vpack.c.b16 %v341, %v338
      %v414 = vpack.c.b16 %v342, %v339
      %v415 = vpack.c.b16 %v343, %v340
      %v416 = vpack.c.b16 %v347, %v344
      %v417 = vpack.c.b16 %v348, %v345
      %v418 = vpack.c.b16 %v349, %v346
      %v419 = vpack.c.b16 %v353, %v350
      %v420 = vpack.c.b16 %v354, %v351
      %v421 = vpack.c.b16 %v355, %v352
      %v422 = vpack.c.b16 %v359, %v356
      %v423 = vpack.c.b16 %v360, %v357
      %v424 = vpack.c.b16 %v361, %v358
      %v425 = vpack.c.b16 %v365, %v362
      %v426 = vpack.c.b16 %v366, %v363
      %v427 = vpack.c.b16 %v367, %v364
      %v428 = vpack.c.b16 %v371, %v368
      %v429 = vpack.c.b16 %v372, %v369
      %v430 = vpack.c.b16 %v373, %v370
      %v431 = vpack.c.b16 %v377, %v374
      %v432 = vpack.c.b16 %v378, %v375
      %v433 = vpack.c.b16 %v379, %v376
      %v434 = vpack.c.b16 %v383, %v380
      %v435 = vpack.c.b16 %v384, %v381
      %v436 = vpack.c.b16 %v385, %v382
      %v437 = vpack.c.b16 %v389, %v386
      %v438 = vpack.c.b16 %v390, %v387
      %v439 = vpack.c.b16 %v391, %v388
      %v440 = vpack.c.b16 %v395, %v392
      %v441 = vpack.c.b16 %v396, %v393
      %v442 = vpack.c.b16 %v397, %v394
      %v443 = vpack.c.b16 %v401, %v398
      %v444 = vpack.c.b16 %v402, %v399
      %v445 = vpack.c.b16 %v403, %v400
      %v510 = vunpack.c.l.b16 %v228
      %v511 = vunpack.c.l.b16 %v229
      %v512 = vunpack.c.l.b16 %v230
      %v513 = vunpack.c.l.b16 %v231
      %v514 = vunpack.c.l.b16 %v232
      %v515 = vunpack.c.l.b16 %v233
      %v516 = vunpack.c.l.b16 %v234
      %v517 = vunpack.c.l.b16 %v235
      %v518 = vunpack.c.l.b16 %v236
      %v519 = vunpack.c.l.b16 %v237
      %v520 = vunpack.c.l.b16 %v238
      %v521 = vunpack.c.l.b16 %v239
      %v522 = vunpack.c.l.b16 %v240
      %v523 = vunpack.c.l.b16 %v241
      %v524 = vunpack.c.l.b16 %v242
      %v525 = vunpack.c.l.b16 %v243
      %v526 = vunpack.c.l.b16 %v244
      %v527 = vunpack.c.l.b16 %v245
      %v528 = vunpack.c.l.b16 %v246
      %v529 = vunpack.c.l.b16 %v247
      %v530 = vunpack.c.l.b16 %v248
      %v531 = vunpack.c.l.b16 %v249
      %v532 = vunpack.c.l.b16 %v250
      %v533 = vunpack.c.l.b16 %v251
      %v534 = vunpack.c.l.b16 %v252
      %v535 = vunpack.c.l.b16 %v253
      %v536 = vunpack.c.l.b16 %v254
      %v537 = vunpack.c.l.b16 %v255
      %v538 = vunpack.c.l.b16 %v256
      %v539 = vunpack.c.l.b16 %v257
      %v540 = vunpack.c.l.b16 %v258
      %v541 = vunpack.c.l.b16 %v259
      %v542 = vunpack.c.l.b16 %v260
      %v543 = vunpack.c.l.b16 %v261
      %v544 = vunpack.c.l.b16 %v262
      %v545 = vunpack.c.l.b16 %v263
      %v546 = vpack.c.b16 %v511, %v510
      %v547 = vpack.c.b16 %v513, %v512
      %v548 = vpack.c.b16 %v515, %v514
      %v549 = vpack.c.b16 %v517, %v516
      %v550 = vpack.c.b16 %v519, %v518
      %v551 = vpack.c.b16 %v521, %v520
      %v552 = vpack.c.b16 %v523, %v522
      %v553 = vpack.c.b16 %v525, %v524
      %v554 = vpack.c.b16 %v527, %v526
      %v555 = vpack.c.b16 %v529, %v528
      %v556 = vpack.c.b16 %v531, %v530
      %v557 = vpack.c.b16 %v533, %v532
      %v558 = vpack.c.b16 %v535, %v534
      %v559 = vpack.c.b16 %v537, %v536
      %v560 = vpack.c.b16 %v539, %v538
      %v561 = vpack.c.b16 %v541, %v540
      %v562 = vpack.c.b16 %v543, %v542
      %v563 = vpack.c.b16 %v545, %v544
      %vm582 = vcmask 261120
      %v584 = vsel %vm582, %v406, 0
      %v587 = vsel %vm582, %v409, 0
      %v590 = vsel %vm582, %v412, 0
      %v593 = vsel %vm582, %v415, 0
      %v596 = vsel %vm582, %v418, 0
      %v599 = vsel %vm582, %v421, 0
      %v602 = vsel %vm582, %v424, 0
      %v605 = vsel %vm582, %v427, 0
      %v608 = vsel %vm582, %v430, 0
      %v611 = vsel %vm582, %v433, 0
      %v614 = vsel %vm582, %v436, 0
      %v617 = vsel %vm582, %v439, 0
      %v620 = vsel %vm582, %v442, 0
      %v623 = vsel %vm582, %v445, 0
      %625 = vmatprep.subr.bf16.mxu0 0
      %626 = vmatpush1.bf16.msra.mxu0 %v546
      %627 = vmatprep.subr.bf16.mxu0 0
      %628 = vmatpush1.bf16.msra.mxu0 %v547
      %629 = vmatprep.subr.bf16.mxu0 0
      %630 = vmatpush1.bf16.msra.mxu0 %v548
      %631 = vmatprep.subr.bf16.mxu0 0
      %632 = vmatpush1.bf16.msra.mxu0 %v549
      %633 = vmatprep.subr.bf16.mxu0 0
      %634 = vmatpush1.bf16.msra.mxu0 %v550
      %635 = vmatprep.subr.bf16.mxu0 0
      %636 = vmatpush1.bf16.msra.mxu0 %v551
      %637 = vmatprep.subr.bf16.mxu0 0
      %638 = vmatpush1.bf16.msra.mxu0 %v552
      %639 = vmatprep.subr.bf16.mxu0 0
      %640 = vmatpush1.bf16.msra.mxu0 %v553
      %641 = vmatprep.subr.bf16.mxu0 0
      %642 = vmatpush1.bf16.msra.mxu0 %v554
      %643 = vmatprep.subr.bf16.mxu0 0
      %644 = vmatpush1.bf16.msra.mxu0 %v555
      %645 = vmatprep.subr.bf16.mxu0 0
      %646 = vmatpush1.bf16.msra.mxu0 %v556
      %647 = vmatprep.subr.bf16.mxu0 0
      %648 = vmatpush1.bf16.msra.mxu0 %v557
      %649 = vmatprep.subr.bf16.mxu0 0
      %650 = vmatpush1.bf16.msra.mxu0 %v558
      %651 = vmatprep.subr.bf16.mxu0 0
      %652 = vmatpush1.bf16.msra.mxu0 %v559
      %653 = vmatprep.subr.bf16.mxu0 0
      %654 = vmatpush1.bf16.msra.mxu0 %v560
      %655 = vmatprep.subr.bf16.mxu0 0
      %656 = vmatpush1.bf16.msra.mxu0 %v561
      %657 = vmatprep.mubr.bf16.mxu0 %v405
      %658 = vmatmul.mubr.bf16.gmra.mrb[0].mxu0 %v404
      %v659 = vpop.f32.mrb[0].mxu0
      %v660 = vadd.f32 0.0, %v659
      %v661 = vpop.f32.mrb[0].mxu0
      %v662 = vpop.f32.mrb[0].mxu0
      %v663 = vadd.f32 0.0, %v662
      %v664 = vpop.f32.mrb[0].mxu0
      %665 = vmatprep.mubr.bf16.mxu0 %v408
      %666 = vmatmul.mubr.bf16.gmra.mrb[0].mxu0 %v407
      %v667 = vpop.f32.mrb[0].mxu0
      %v668 = vadd.f32 0.0, %v667
      %v669 = vpop.f32.mrb[0].mxu0
      %v670 = vpop.f32.mrb[0].mxu0
      %v671 = vadd.f32 0.0, %v670
      %v672 = vpop.f32.mrb[0].mxu0
      %673 = vmatprep.mubr.bf16.mxu0 %v411
      %674 = vmatmul.mubr.bf16.gmra.mrb[0].mxu0 %v410
      %v675 = vpop.f32.mrb[0].mxu0
      %v676 = vadd.f32 0.0, %v675
      %v677 = vpop.f32.mrb[0].mxu0
      %v678 = vpop.f32.mrb[0].mxu0
      %v679 = vadd.f32 0.0, %v678
      %v680 = vpop.f32.mrb[0].mxu0
      %681 = vmatprep.mubr.bf16.mxu0 %v414
      %682 = vmatmul.mubr.bf16.gmra.mrb[0].mxu0 %v413
      %v683 = vpop.f32.mrb[0].mxu0
      %v684 = vadd.f32 0.0, %v683
      %v685 = vpop.f32.mrb[0].mxu0
      %v686 = vpop.f32.mrb[0].mxu0
      %v687 = vadd.f32 0.0, %v686
      %v688 = vpop.f32.mrb[0].mxu0
      %689 = vmatprep.mubr.bf16.mxu0 %v417
      %690 = vmatmul.mubr.bf16.gmra.mrb[0].mxu0 %v416
      %v691 = vpop.f32.mrb[0].mxu0
      %v692 = vadd.f32 0.0, %v691
      %v693 = vpop.f32.mrb[0].mxu0
      %v694 = vpop.f32.mrb[0].mxu0
      %v695 = vadd.f32 0.0, %v694
      %v696 = vpop.f32.mrb[0].mxu0
      %697 = vmatprep.mubr.bf16.mxu0 %v420
      %698 = vmatmul.mubr.bf16.gmra.mrb[0].mxu0 %v419
      %v699 = vpop.f32.mrb[0].mxu0
      %v700 = vadd.f32 0.0, %v699
      %v701 = vpop.f32.mrb[0].mxu0
      %v702 = vpop.f32.mrb[0].mxu0
      %v703 = vadd.f32 0.0, %v702
      %v704 = vpop.f32.mrb[0].mxu0
      %705 = vmatprep.mubr.bf16.mxu0 %v423
      %706 = vmatmul.mubr.bf16.gmra.mrb[0].mxu0 %v422
      %v707 = vpop.f32.mrb[0].mxu0
      %v708 = vadd.f32 0.0, %v707
      %v709 = vpop.f32.mrb[0].mxu0
      %v710 = vpop.f32.mrb[0].mxu0
      %v711 = vadd.f32 0.0, %v710
      %v712 = vpop.f32.mrb[0].mxu0
      %713 = vmatprep.mubr.bf16.mxu0 %v426
      %714 = vmatmul.mubr.bf16.gmra.mrb[0].mxu0 %v425
      %v715 = vpop.f32.mrb[0].mxu0
      %v716 = vadd.f32 0.0, %v715
      %v717 = vpop.f32.mrb[0].mxu0
      %v718 = vpop.f32.mrb[0].mxu0
      %v719 = vadd.f32 0.0, %v718
      %v720 = vpop.f32.mrb[0].mxu0
      %721 = vmatprep.mubr.bf16.mxu0 %v429
      %722 = vmatmul.mubr.bf16.gmra.mrb[0].mxu0 %v428
      %v723 = vpop.f32.mrb[0].mxu0
      %v724 = vadd.f32 0.0, %v723
      %v725 = vpop.f32.mrb[0].mxu0
      %v726 = vpop.f32.mrb[0].mxu0
      %v727 = vadd.f32 0.0, %v726
      %v728 = vpop.f32.mrb[0].mxu0
      %729 = vmatprep.mubr.bf16.mxu0 %v432
      %730 = vmatmul.mubr.bf16.gmra.mrb[0].mxu0 %v431
      %v731 = vpop.f32.mrb[0].mxu0
      %v732 = vadd.f32 0.0, %v731
      %v733 = vpop.f32.mrb[0].mxu0
      %v734 = vpop.f32.mrb[0].mxu0
      %v735 = vadd.f32 0.0, %v734
      %v736 = vpop.f32.mrb[0].mxu0
      %737 = vmatprep.mubr.bf16.mxu0 %v435
      %738 = vmatmul.mubr.bf16.gmra.mrb[0].mxu0 %v434
      %v739 = vpop.f32.mrb[0].mxu0
      %v740 = vadd.f32 0.0, %v739
      %v741 = vpop.f32.mrb[0].mxu0
      %v742 = vpop.f32.mrb[0].mxu0
      %v743 = vadd.f32 0.0, %v742
      %v744 = vpop.f32.mrb[0].mxu0
      %745 = vmatprep.mubr.bf16.mxu0 %v438
      %746 = vmatmul.mubr.bf16.gmra.mrb[0].mxu0 %v437
      %v747 = vpop.f32.mrb[0].mxu0
      %v748 = vadd.f32 0.0, %v747
      %v749 = vpop.f32.mrb[0].mxu0
      %v750 = vpop.f32.mrb[0].mxu0
      %v751 = vadd.f32 0.0, %v750
      %v752 = vpop.f32.mrb[0].mxu0
      %753 = vmatprep.mubr.bf16.mxu0 %v441
      %754 = vmatmul.mubr.bf16.gmra.mrb[0].mxu0 %v440
      %v755 = vpop.f32.mrb[0].mxu0
      %v756 = vadd.f32 0.0, %v755
      %v757 = vpop.f32.mrb[0].mxu0
      %v758 = vpop.f32.mrb[0].mxu0
      %v759 = vadd.f32 0.0, %v758
      %v760 = vpop.f32.mrb[0].mxu0
      %761 = vmatprep.mubr.bf16.mxu0 %v444
      %762 = vmatmul.mubr.bf16.gmra.mrb[0].mxu0 %v443
      %v763 = vpop.f32.mrb[0].mxu0
      %v764 = vadd.f32 0.0, %v763
      %v765 = vpop.f32.mrb[0].mxu0
      %v766 = vpop.f32.mrb[0].mxu0
      %v767 = vadd.f32 0.0, %v766
      %v768 = vpop.f32.mrb[0].mxu0
      %769 = vdwg.mxu0
      %770 = vmatprep.subr.bf16.mxu0 0
      %771 = vmatpush1.bf16.msra.mxu0 %v562
      %772 = vmatprep.subr.bf16.mxu0 0
      %773 = vmatpush1.bf16.msra.mxu0 %v563
      %774 = vmatprep.subr.bf16.mxu0 0
      %775 = vmatpush1.bf16.msra.mxu0 0
      %776 = vmatprep.subr.bf16.mxu0 0
      %777 = vmatpush1.bf16.msra.mxu0 0
      %778 = vmatprep.subr.bf16.mxu0 0
      %779 = vmatpush1.bf16.msra.mxu0 0
      %780 = vmatprep.subr.bf16.mxu0 0
      %781 = vmatpush1.bf16.msra.mxu0 0
      %782 = vmatprep.subr.bf16.mxu0 0
      %783 = vmatpush1.bf16.msra.mxu0 0
      %784 = vmatprep.subr.bf16.mxu0 0
      %785 = vmatpush1.bf16.msra.mxu0 0
      %786 = vmatprep.subr.bf16.mxu0 0
      %787 = vmatpush1.bf16.msra.mxu0 0
      %788 = vmatprep.subr.bf16.mxu0 0
      %789 = vmatpush1.bf16.msra.mxu0 0
      %790 = vmatprep.subr.bf16.mxu0 0
      %791 = vmatpush1.bf16.msra.mxu0 0
      %792 = vmatprep.subr.bf16.mxu0 0
      %793 = vmatpush1.bf16.msra.mxu0 0
      %794 = vmatprep.subr.bf16.mxu0 0
      %795 = vmatpush1.bf16.msra.mxu0 0
      %796 = vmatprep.subr.bf16.mxu0 0
      %797 = vmatpush1.bf16.msra.mxu0 0
      %798 = vmatprep.subr.bf16.mxu0 0
      %799 = vmatpush1.bf16.msra.mxu0 0
      %800 = vmatprep.subr.bf16.mxu0 0
      %801 = vmatpush1.bf16.msra.mxu0 0
      %802 = vmatprep.mubr.bf16.mxu0 0
      %803 = vmatmul.mubr.bf16.gmra.mrb[0].mxu0 %v584
      %v804 = vpop.f32.mrb[0].mxu0
      %v805 = vadd.f32 %v660, %v804
      %v806 = vpop.f32.mrb[0].mxu0
      %v807 = vpop.f32.mrb[0].mxu0
      %v808 = vadd.f32 %v663, %v807
      %v809 = vpop.f32.mrb[0].mxu0
      %810 = vmatprep.mubr.bf16.mxu0 0
      %811 = vmatmul.mubr.bf16.gmra.mrb[0].mxu0 %v587
      %v812 = vpop.f32.mrb[0].mxu0
      %v813 = vadd.f32 %v668, %v812
      %v814 = vpop.f32.mrb[0].mxu0
      %v815 = vpop.f32.mrb[0].mxu0
      %v816 = vadd.f32 %v671, %v815
      %v817 = vpop.f32.mrb[0].mxu0
      %818 = vmatprep.mubr.bf16.mxu0 0
      %819 = vmatmul.mubr.bf16.gmra.mrb[0].mxu0 %v590
      %v820 = vpop.f32.mrb[0].mxu0
      %v821 = vadd.f32 %v676, %v820
      %v822 = vpop.f32.mrb[0].mxu0
      %v823 = vpop.f32.mrb[0].mxu0
      %v824 = vadd.f32 %v679, %v823
      %v825 = vpop.f32.mrb[0].mxu0
      %826 = vmatprep.mubr.bf16.mxu0 0
      %827 = vmatmul.mubr.bf16.gmra.mrb[0].mxu0 %v593
      %v828 = vpop.f32.mrb[0].mxu0
      %v829 = vadd.f32 %v684, %v828
      %v830 = vpop.f32.mrb[0].mxu0
      %v831 = vpop.f32.mrb[0].mxu0
      %v832 = vadd.f32 %v687, %v831
      %v833 = vpop.f32.mrb[0].mxu0
      %834 = vmatprep.mubr.bf16.mxu0 0
      %835 = vmatmul.mubr.bf16.gmra.mrb[0].mxu0 %v596
      %v836 = vpop.f32.mrb[0].mxu0
      %v837 = vadd.f32 %v692, %v836
      %v838 = vpop.f32.mrb[0].mxu0
      %v839 = vpop.f32.mrb[0].mxu0
      %v840 = vadd.f32 %v695, %v839
      %v841 = vpop.f32.mrb[0].mxu0
      %842 = vmatprep.mubr.bf16.mxu0 0
      %843 = vmatmul.mubr.bf16.gmra.mrb[0].mxu0 %v599
      %v844 = vpop.f32.mrb[0].mxu0
      %v845 = vadd.f32 %v700, %v844
      %v846 = vpop.f32.mrb[0].mxu0
      %v847 = vpop.f32.mrb[0].mxu0
      %v848 = vadd.f32 %v703, %v847
      %v849 = vpop.f32.mrb[0].mxu0
      %850 = vmatprep.mubr.bf16.mxu0 0
      %851 = vmatmul.mubr.bf16.gmra.mrb[0].mxu0 %v602
      %v852 = vpop.f32.mrb[0].mxu0
      %v853 = vadd.f32 %v708, %v852
      %v854 = vpop.f32.mrb[0].mxu0
      %v855 = vpop.f32.mrb[0].mxu0
      %v856 = vadd.f32 %v711, %v855
      %v857 = vpop.f32.mrb[0].mxu0
      %858 = vmatprep.mubr.bf16.mxu0 0
      %859 = vmatmul.mubr.bf16.gmra.mrb[0].mxu0 %v605
      %v860 = vpop.f32.mrb[0].mxu0
      %v861 = vadd.f32 %v716, %v860
      %v862 = vpop.f32.mrb[0].mxu0
      %v863 = vpop.f32.mrb[0].mxu0
      %v864 = vadd.f32 %v719, %v863
      %v865 = vpop.f32.mrb[0].mxu0
      %866 = vmatprep.mubr.bf16.mxu0 0
      %867 = vmatmul.mubr.bf16.gmra.mrb[0].mxu0 %v608
      %v868 = vpop.f32.mrb[0].mxu0
      %v869 = vadd.f32 %v724, %v868
      %v870 = vpop.f32.mrb[0].mxu0
      %v871 = vpop.f32.mrb[0].mxu0
      %v872 = vadd.f32 %v727, %v871
      %v873 = vpop.f32.mrb[0].mxu0
      %874 = vmatprep.mubr.bf16.mxu0 0
      %875 = vmatmul.mubr.bf16.gmra.mrb[0].mxu0 %v611
      %v876 = vpop.f32.mrb[0].mxu0
      %v877 = vadd.f32 %v732, %v876
      %v878 = vpop.f32.mrb[0].mxu0
      %v879 = vpop.f32.mrb[0].mxu0
      %v880 = vadd.f32 %v735, %v879
      %v881 = vpop.f32.mrb[0].mxu0
      %882 = vmatprep.mubr.bf16.mxu0 0
      %883 = vmatmul.mubr.bf16.gmra.mrb[0].mxu0 %v614
      %v884 = vpop.f32.mrb[0].mxu0
      %v885 = vadd.f32 %v740, %v884
      %v886 = vpop.f32.mrb[0].mxu0
      %v887 = vpop.f32.mrb[0].mxu0
      %v888 = vadd.f32 %v743, %v887
      %v889 = vpop.f32.mrb[0].mxu0
      %890 = vmatprep.mubr.bf16.mxu0 0
      %891 = vmatmul.mubr.bf16.gmra.mrb[0].mxu0 %v617
      %v892 = vpop.f32.mrb[0].mxu0
      %v893 = vadd.f32 %v748, %v892
      %v894 = vpop.f32.mrb[0].mxu0
      %v895 = vpop.f32.mrb[0].mxu0
      %v896 = vadd.f32 %v751, %v895
      %v897 = vpop.f32.mrb[0].mxu0
      %898 = vmatprep.mubr.bf16.mxu0 0
      %899 = vmatmul.mubr.bf16.gmra.mrb[0].mxu0 %v620
      %v900 = vpop.f32.mrb[0].mxu0
      %v901 = vadd.f32 %v756, %v900
      %v902 = vpop.f32.mrb[0].mxu0
      %v903 = vpop.f32.mrb[0].mxu0
      %v904 = vadd.f32 %v759, %v903
      %v905 = vpop.f32.mrb[0].mxu0
      %906 = vmatprep.mubr.bf16.mxu0 0
      %907 = vmatmul.mubr.bf16.gmra.mrb[0].mxu0 %v623
      %v908 = vpop.f32.mrb[0].mxu0
      %v909 = vadd.f32 %v764, %v908
      %v910 = vpop.f32.mrb[0].mxu0
      %v911 = vpop.f32.mrb[0].mxu0
      %v912 = vadd.f32 %v767, %v911
      %v913 = vpop.f32.mrb[0].mxu0
      %914 = vdwg.mxu0
      %v915 = vmax.f32 %v805, %v832
      %v916 = vmax.f32 %v808, %v837
      %v917 = vmax.f32 %v813, %v840
      %v918 = vmax.f32 %v816, %v845
      %v919 = vmax.f32 %v821, %v848
      %v920 = vmax.f32 %v824, %v853
      %v921 = vmax.f32 %v829, %v856
      %v922 = vmax.f32 %v861, %v888
      %v923 = vmax.f32 %v864, %v893
      %v924 = vmax.f32 %v869, %v896
      %v925 = vmax.f32 %v872, %v901
      %v926 = vmax.f32 %v877, %v904
      %v927 = vmax.f32 %v880, %v909
      %v928 = vmax.f32 %v885, %v912
      %v929 = vmax.f32 %v915, %v922
      %v930 = vmax.f32 %v916, %v923
      %v931 = vmax.f32 %v917, %v924
      %v932 = vmax.f32 %v918, %v925
      %v933 = vmax.f32 %v919, %v926
      %v934 = vmax.f32 %v920, %v927
      %v935 = vmax.f32 %v921, %v928
      %v936 = vld [vmem:[%s2] sm:$0x1]
      %v938 = vlaneseq
      %v939 = vshrl.u32 %v938, 7
      %v940 = vsub.s32 0, %v939
      %v941 = vrot.slane %v936, %v940
      %v943 = vadd.f32 %v929, %v941
      %v944 = vadd.f32 %v930, %v941
      %v945 = vadd.f32 %v931, %v941
      %v946 = vadd.f32 %v932, %v941
      %v947 = vadd.f32 %v933, %v941
      %v948 = vadd.f32 %v934, %v941
      %v949 = vadd.f32 %v935, %v941
      %v950 = vmax.f32 %v943, 0.0
      %v951 = vmax.f32 %v944, 0.0
      %v952 = vmax.f32 %v945, 0.0
      %v953 = vmax.f32 %v946, 0.0
      %v954 = vmax.f32 %v947, 0.0
      %v955 = vmax.f32 %v948, 0.0
      %v956 = vmax.f32 %v949, 0.0
      %v957 = vpack.c.bf16 %v951, %v950
      %v958 = vpack.c.bf16 %v953, %v952
      %v959 = vpack.c.bf16 %v955, %v954
      %v960 = vpack.c.bf16 %v956, %v956
      %v965 = vunpack.c.l.b16 %v957
      %v966 = vunpack.c.h.b16 %v957
      %v967 = vunpack.c.l.b16 %v958
      %v968 = vunpack.c.h.b16 %v958
      %v969 = vunpack.c.l.b16 %v959
      %v970 = vunpack.c.h.b16 %v959
      %v971 = vunpack.c.l.b16 %v960
      %v972 = vpack.c.b16 %v965, %v965
      %v973 = vpack.c.b16 %v966, %v966
      %v974 = vpack.c.b16 %v967, %v967
      %v975 = vpack.c.b16 %v968, %v968
      %v976 = vpack.c.b16 %v969, %v969
      %v977 = vpack.c.b16 %v970, %v970
      %v978 = vpack.c.b16 %v971, %v971
      %vm986 = vcmask 519168
      %987 = vst.msk [vmem:[%s170] sm:$0xf] %vm986, %v972
      %988 = vst.msk [vmem:[%s170 + $0x4] sm:$0xf] %vm986, %v973
      %989 = vst.msk [vmem:[%s170 + $0x8] sm:$0xf] %vm986, %v974
      %990 = vst.msk [vmem:[%s170 + $0xc] sm:$0xf] %vm986, %v975
      %991 = vst.msk [vmem:[%s170 + $0x10] sm:$0xf] %vm986, %v976
      %992 = vst.msk [vmem:[%s170 + $0x14] sm:$0xf] %vm986, %v977
      %993 = vst.msk [vmem:[%s170 + $0x18] sm:$0xf] %vm986, %v978
      %p994 = scmp.lt.s32.totalorder %s14, 1
      %s995 = scalar_select %p994, %s14, 1
      %s996 = smul.addr %s995, 7
      %s997 = smul.addr %s996, 4
      %s998 = scalar_lea.vmem %s3, %s997
      // Predicated region
      $region33: #{forward.4} parent=31 // pred_check
        %p999 = pneg %p100
      $region34: #{forward.4} parent=31 // pred_check_branch
        %1001 = sbr.rel (%p999) target = $region36
      $region35: #{forward.4} parent=31 // pred_region
        _
      $region36: #{forward.4} parent=31 // pred_fallthru
        _
    $region32: #{forward.4} parent=5 // pred_fallthru
      _
    %p1002 = scmp.le.s32.totalorder 2, %s9
    // Predicated region
    $region37: #{forward.4} parent=5 // pred_check
      %p1003 = pneg %p1002
    $region38: #{forward.4} parent=5 // pred_check_branch
      %1005 = sbr.rel (%p1003) target = $region40
    $region39: #{forward.4} parent=5 // pred_region
      %s1006 = ssub.s32 %s9, 2
      // Predicated region
      $region41: #{forward.4} parent=39 // pred_check
        %p1007 = pneg %p106
      $region42: #{forward.4} parent=39 // pred_check_branch
        %1009 = sbr.rel (%p1007) target = $region44
      $region43: #{forward.4} parent=39 // pred_region
        %p1010 = scmp.lt.s32.totalorder %s15, 1
        %s1011 = scalar_select %p1010, %s15, 1
        %s1012 = smul.addr %s1011, 7
        %s1013 = smul.addr %s1012, 4
        %s1014 = scalar_lea.vmem %s3, %s1013
      $region44: #{forward.4} parent=39 // pred_fallthru
        _
    $region40: #{forward.4} parent=5 // pred_fallthru
      _
  $region6: #{forward.4} parent=0 // loop_footer
    %s13 = sadd.s32 1, %s9
  $region7: #{forward.4} parent=0 // loop_footer_branch
    %8 = sbr.rel target = $region3
  $region8: #{forward.4} parent=0 // loop_exit
    _

// kernel: forward.5
$region0: #{forward.5}
  #allocation0 [shape = 'u32[]', space=smem, size = 0x4, offset = 0x4, fixed_abs, tag = 'smem constant byte address 0x4 - core index']
  #allocation1 [shape = 'u32[144,128]{1,0:T(1,128)}', space=vmem, size = 0x12000, scoped, tag = 'internal scratch']
  %s0 = inlined_call_operand.vmem [shape: bf16[2,3584], index: 0, kind: input, shape index: {}]
  %s1 = inlined_call_operand.vmem [shape: bf16[3584,128], index: 1, kind: input, shape index: {}]
  %s2 = inlined_call_operand.vmem [shape: f32[1,128], index: 2, kind: input, shape index: {}]
  %s3 = inlined_call_operand.hbm [shape: f32[2,128], index: 3, kind: output, shape index: {}]
  %s4 = sld [smem:[#allocation0]]
  $region22: #{forward.5} parent=0
    _
  %s6 = ssub.s32 1, %s4
  %s7 = scalar_select 0, %s6, %s4
  $region1: #{forward.5} parent=0
    #allocation2 [shape = 'u8[1024]{0}', space=vmem, size = 0x400, scoped, tag = 'output window, operand 0, single buffered']
    #allocation3 [shape = 's32[1]{0}', space=sflag, size = 0x4, scoped, tag = 'scoped memory for forward.5']
    %8 = vsyncpa [#allocation3], 0
    // Predicated region
    $region2: #{forward.5} parent=1 // pred_check
      _
    $region3: #{forward.5} parent=1 // pred_check_branch
      %10 = sbr.rel (0) target = $region5
    $region4: #{forward.5} parent=1 // pred_region
      _
    $region5: #{forward.5} parent=1 // pred_fallthru
      _
    // Predicated region
    $region6: #{forward.5} parent=1 // pred_check
      _
    $region7: #{forward.5} parent=1 // pred_check_branch
      %12 = sbr.rel (0) target = $region9
    $region8: #{forward.5} parent=1 // pred_region
      _
    $region9: #{forward.5} parent=1 // pred_fallthru
      _
    // Predicated region
    $region10: #{forward.5} parent=1 // pred_check
      _
    $region11: #{forward.5} parent=1 // pred_check_branch
      %14 = sbr.rel (0) target = $region13
    $region12: #{forward.5} parent=1 // pred_region
      _
    $region13: #{forward.5} parent=1 // pred_fallthru
      _
    %v16 = vld [vmem:[%s0] sm:$0xff]
    %v17 = vld [vmem:[%s0 + $0x8] sm:$0xff]
    %v18 = vld [vmem:[%s0 + $0x10] sm:$0xff]
    %v19 = vld [vmem:[%s0 + $0x18] sm:$0xf]
    %v20 = vld [vmem:[%s1] sm:$0xf]
    %v21 = vld [vmem:[%s1 + $0x4] sm:$0xf]
    %v22 = vld [vmem:[%s1 + $0x8] sm:$0xf]
    %v23 = vld [vmem:[%s1 + $0xc] sm:$0xf]
    %v24 = vld [vmem:[%s1 + $0x10] sm:$0xf]
    %v25 = vld [vmem:[%s1 + $0x14] sm:$0xf]
    %v26 = vld [vmem:[%s1 + $0x18] sm:$0xf]
    %v27 = vld [vmem:[%s1 + $0x1c] sm:$0xf]
    %v28 = vld [vmem:[%s1 + $0x20] sm:$0xf]
    %v29 = vld [vmem:[%s1 + $0x24] sm:$0xf]
    %v30 = vld [vmem:[%s1 + $0x28] sm:$0xf]
    %v31 = vld [vmem:[%s1 + $0x2c] sm:$0xf]
    %v32 = vld [vmem:[%s1 + $0x30] sm:$0xf]
    %v33 = vld [vmem:[%s1 + $0x34] sm:$0xf]
    %v34 = vld [vmem:[%s1 + $0x38] sm:$0xf]
    %v35 = vld [vmem:[%s1 + $0x3c] sm:$0xf]
    %v36 = vld [vmem:[%s1 + $0x40] sm:$0xf]
    %v37 = vld [vmem:[%s1 + $0x44] sm:$0xf]
    %v38 = vld [vmem:[%s1 + $0x48] sm:$0xf]
    %v39 = vld [vmem:[%s1 + $0x4c] sm:$0xf]
    %v40 = vld [vmem:[%s1 + $0x50] sm:$0xf]
    %v41 = vld [vmem:[%s1 + $0x54] sm:$0xf]
    %v42 = vld [vmem:[%s1 + $0x58] sm:$0xf]
    %v43 = vld [vmem:[%s1 + $0x5c] sm:$0xf]
    %v44 = vld [vmem:[%s1 + $0x60] sm:$0xf]
    %v45 = vld [vmem:[%s1 + $0x64] sm:$0xf]
    %v46 = vld [vmem:[%s1 + $0x68] sm:$0xf]
    %v47 = vld [vmem:[%s1 + $0x6c] sm:$0xf]
    %v48 = vld [vmem:[%s1 + $0x70] sm:$0xf]
    %v49 = vld [vmem:[%s1 + $0x74] sm:$0xf]
    %v50 = vld [vmem:[%s1 + $0x78] sm:$0xf]
    %v51 = vld [vmem:[%s1 + $0x7c] sm:$0xf]
    %v52 = vld [vmem:[%s1 + $0x80] sm:$0xf]
    %v53 = vld [vmem:[%s1 + $0x84] sm:$0xf]
    %v54 = vld [vmem:[%s1 + $0x88] sm:$0xf]
    %v55 = vld [vmem:[%s1 + $0x8c] sm:$0xf]
    %v56 = vld [vmem:[%s1 + $0x90] sm:$0xf]
    %v57 = vld [vmem:[%s1 + $0x94] sm:$0xf]
    %v58 = vld [vmem:[%s1 + $0x98] sm:$0xf]
    %v59 = vld [vmem:[%s1 + $0x9c] sm:$0xf]
    %v60 = vld [vmem:[%s1 + $0xa0] sm:$0xf]
    %v61 = vld [vmem:[%s1 + $0xa4] sm:$0xf]
    %v62 = vld [vmem:[%s1 + $0xa8] sm:$0xf]
    %v63 = vld [vmem:[%s1 + $0xac] sm:$0xf]
    %v64 = vld [vmem:[%s1 + $0xb0] sm:$0xf]
    %v65 = vld [vmem:[%s1 + $0xb4] sm:$0xf]
    %v66 = vld [vmem:[%s1 + $0xb8] sm:$0xf]
    %v67 = vld [vmem:[%s1 + $0xbc] sm:$0xf]
    %v68 = vld [vmem:[%s1 + $0xc0] sm:$0xf]
    %v69 = vld [vmem:[%s1 + $0xc4] sm:$0xf]
    %v70 = vld [vmem:[%s1 + $0xc8] sm:$0xf]
    %v71 = vld [vmem:[%s1 + $0xcc] sm:$0xf]
    %v72 = vld [vmem:[%s1 + $0xd0] sm:$0xf]
    %v73 = vld [vmem:[%s1 + $0xd4] sm:$0xf]
    %v74 = vld [vmem:[%s1 + $0xd8] sm:$0xf]
    %v75 = vld [vmem:[%s1 + $0xdc] sm:$0xf]
    %v76 = vld [vmem:[%s1 + $0xe0] sm:$0xf]
    %v77 = vld [vmem:[%s1 + $0xe4] sm:$0xf]
    %v78 = vld [vmem:[%s1 + $0xe8] sm:$0xf]
    %v79 = vld [vmem:[%s1 + $0xec] sm:$0xf]
    %v80 = vld [vmem:[%s1 + $0xf0] sm:$0xf]
    %v81 = vld [vmem:[%s1 + $0xf4] sm:$0xf]
    %v82 = vld [vmem:[%s1 + $0xf8] sm:$0xf]
    %v83 = vld [vmem:[%s1 + $0xfc] sm:$0xf]
    %v84 = vld [vmem:[%s1 + $0x100] sm:$0xf]
    %v85 = vld [vmem:[%s1 + $0x104] sm:$0xf]
    %v86 = vld [vmem:[%s1 + $0x108] sm:$0xf]
    %v87 = vld [vmem:[%s1 + $0x10c] sm:$0xf]
    %v88 = vld [vmem:[%s1 + $0x110] sm:$0xf]
    %v89 = vld [vmem:[%s1 + $0x114] sm:$0xf]
    %v90 = vld [vmem:[%s1 + $0x118] sm:$0xf]
    %v91 = vld [vmem:[%s1 + $0x11c] sm:$0xf]
    %v92 = vld [vmem:[%s1 + $0x120] sm:$0xf]
    %v93 = vld [vmem:[%s1 + $0x124] sm:$0xf]
    %v94 = vld [vmem:[%s1 + $0x128] sm:$0xf]
    %v95 = vld [vmem:[%s1 + $0x12c] sm:$0xf]
    %v96 = vld [vmem:[%s1 + $0x130] sm:$0xf]
    %v97 = vld [vmem:[%s1 + $0x134] sm:$0xf]
    %v98 = vld [vmem:[%s1 + $0x138] sm:$0xf]
    %v99 = vld [vmem:[%s1 + $0x13c] sm:$0xf]
    %v100 = vld [vmem:[%s1 + $0x140] sm:$0xf]
    %v101 = vld [vmem:[%s1 + $0x144] sm:$0xf]
    %v102 = vld [vmem:[%s1 + $0x148] sm:$0xf]
    %v103 = vld [vmem:[%s1 + $0x14c] sm:$0xf]
    %v104 = vld [vmem:[%s1 + $0x150] sm:$0xf]
    %v105 = vld [vmem:[%s1 + $0x154] sm:$0xf]
    %v106 = vld [vmem:[%s1 + $0x158] sm:$0xf]
    %v107 = vld [vmem:[%s1 + $0x15c] sm:$0xf]
    %v108 = vld [vmem:[%s1 + $0x160] sm:$0xf]
    %v109 = vld [vmem:[%s1 + $0x164] sm:$0xf]
    %v110 = vld [vmem:[%s1 + $0x168] sm:$0xf]
    %v111 = vld [vmem:[%s1 + $0x16c] sm:$0xf]
    %v112 = vld [vmem:[%s1 + $0x170] sm:$0xf]
    %v113 = vld [vmem:[%s1 + $0x174] sm:$0xf]
    %v114 = vld [vmem:[%s1 + $0x178] sm:$0xf]
    %v115 = vld [vmem:[%s1 + $0x17c] sm:$0xf]
    %v116 = vld [vmem:[%s1 + $0x180] sm:$0xf]
    %v117 = vld [vmem:[%s1 + $0x184] sm:$0xf]
    %v118 = vld [vmem:[%s1 + $0x188] sm:$0xf]
    %v119 = vld [vmem:[%s1 + $0x18c] sm:$0xf]
    %v120 = vld [vmem:[%s1 + $0x190] sm:$0xf]
    %v121 = vld [vmem:[%s1 + $0x194] sm:$0xf]
    %v122 = vld [vmem:[%s1 + $0x198] sm:$0xf]
    %v123 = vld [vmem:[%s1 + $0x19c] sm:$0xf]
    %v124 = vld [vmem:[%s1 + $0x1a0] sm:$0xf]
    %v125 = vld [vmem:[%s1 + $0x1a4] sm:$0xf]
    %v126 = vld [vmem:[%s1 + $0x1a8] sm:$0xf]
    %v127 = vld [vmem:[%s1 + $0x1ac] sm:$0xf]
    %v128 = vld [vmem:[%s1 + $0x1b0] sm:$0xf]
    %v129 = vld [vmem:[%s1 + $0x1b4] sm:$0xf]
    %v130 = vld [vmem:[%s1 + $0x1b8] sm:$0xf]
    %v131 = vld [vmem:[%s1 + $0x1bc] sm:$0xf]
    %v132 = vld [vmem:[%s1 + $0x1c0] sm:$0xf]
    %v133 = vld [vmem:[%s1 + $0x1c4] sm:$0xf]
    %v134 = vld [vmem:[%s1 + $0x1c8] sm:$0xf]
    %v135 = vld [vmem:[%s1 + $0x1cc] sm:$0xf]
    %v136 = vld [vmem:[%s1 + $0x1d0] sm:$0xf]
    %v137 = vld [vmem:[%s1 + $0x1d4] sm:$0xf]
    %v138 = vld [vmem:[%s1 + $0x1d8] sm:$0xf]
    %v139 = vld [vmem:[%s1 + $0x1dc] sm:$0xf]
    %v140 = vld [vmem:[%s1 + $0x1e0] sm:$0xf]
    %v141 = vld [vmem:[%s1 + $0x1e4] sm:$0xf]
    %v142 = vld [vmem:[%s1 + $0x1e8] sm:$0xf]
    %v143 = vld [vmem:[%s1 + $0x1ec] sm:$0xf]
    %v144 = vld [vmem:[%s1 + $0x1f0] sm:$0xf]
    %v145 = vld [vmem:[%s1 + $0x1f4] sm:$0xf]
    %v146 = vld [vmem:[%s1 + $0x1f8] sm:$0xf]
    %v147 = vld [vmem:[%s1 + $0x1fc] sm:$0xf]
    %v148 = vld [vmem:[%s1 + $0x200] sm:$0xf]
    %v149 = vld [vmem:[%s1 + $0x204] sm:$0xf]
    %v150 = vld [vmem:[%s1 + $0x208] sm:$0xf]
    %v151 = vld [vmem:[%s1 + $0x20c] sm:$0xf]
    %v152 = vld [vmem:[%s1 + $0x210] sm:$0xf]
    %v153 = vld [vmem:[%s1 + $0x214] sm:$0xf]
    %v154 = vld [vmem:[%s1 + $0x218] sm:$0xf]
    %v155 = vld [vmem:[%s1 + $0x21c] sm:$0xf]
    %v156 = vld [vmem:[%s1 + $0x220] sm:$0xf]
    %v157 = vld [vmem:[%s1 + $0x224] sm:$0xf]
    %v158 = vld [vmem:[%s1 + $0x228] sm:$0xf]
    %v159 = vld [vmem:[%s1 + $0x22c] sm:$0xf]
    %v160 = vld [vmem:[%s1 + $0x230] sm:$0xf]
    %v161 = vld [vmem:[%s1 + $0x234] sm:$0xf]
    %v162 = vld [vmem:[%s1 + $0x238] sm:$0xf]
    %v163 = vld [vmem:[%s1 + $0x23c] sm:$0xf]
    %v164 = vld [vmem:[%s1 + $0x240] sm:$0xf]
    %v165 = vld [vmem:[%s1 + $0x244] sm:$0xf]
    %v166 = vld [vmem:[%s1 + $0x248] sm:$0xf]
    %v167 = vld [vmem:[%s1 + $0x24c] sm:$0xf]
    %v168 = vld [vmem:[%s1 + $0x250] sm:$0xf]
    %v169 = vld [vmem:[%s1 + $0x254] sm:$0xf]
    %v170 = vld [vmem:[%s1 + $0x258] sm:$0xf]
    %v171 = vld [vmem:[%s1 + $0x25c] sm:$0xf]
    %v172 = vld [vmem:[%s1 + $0x260] sm:$0xf]
    %v173 = vld [vmem:[%s1 + $0x264] sm:$0xf]
    %v174 = vld [vmem:[%s1 + $0x268] sm:$0xf]
    %v175 = vld [vmem:[%s1 + $0x26c] sm:$0xf]
    %v176 = vld [vmem:[%s1 + $0x270] sm:$0xf]
    %v177 = vld [vmem:[%s1 + $0x274] sm:$0xf]
    %v178 = vld [vmem:[%s1 + $0x278] sm:$0xf]
    %v179 = vld [vmem:[%s1 + $0x27c] sm:$0xf]
    %v180 = vld [vmem:[%s1 + $0x280] sm:$0xf]
    %v181 = vld [vmem:[%s1 + $0x284] sm:$0xf]
    %v182 = vld [vmem:[%s1 + $0x288] sm:$0xf]
    %v183 = vld [vmem:[%s1 + $0x28c] sm:$0xf]
    %v184 = vld [vmem:[%s1 + $0x290] sm:$0xf]
    %v185 = vld [vmem:[%s1 + $0x294] sm:$0xf]
    %v186 = vld [vmem:[%s1 + $0x298] sm:$0xf]
    %v187 = vld [vmem:[%s1 + $0x29c] sm:$0xf]
    %v188 = vld [vmem:[%s1 + $0x2a0] sm:$0xf]
    %v189 = vld [vmem:[%s1 + $0x2a4] sm:$0xf]
    %v190 = vld [vmem:[%s1 + $0x2a8] sm:$0xf]
    %v191 = vld [vmem:[%s1 + $0x2ac] sm:$0xf]
    %v192 = vld [vmem:[%s1 + $0x2b0] sm:$0xf]
    %v193 = vld [vmem:[%s1 + $0x2b4] sm:$0xf]
    %v194 = vld [vmem:[%s1 + $0x2b8] sm:$0xf]
    %v195 = vld [vmem:[%s1 + $0x2bc] sm:$0xf]
    %v196 = vld [vmem:[%s1 + $0x2c0] sm:$0xf]
    %v197 = vld [vmem:[%s1 + $0x2c4] sm:$0xf]
    %v198 = vld [vmem:[%s1 + $0x2c8] sm:$0xf]
    %v199 = vld [vmem:[%s1 + $0x2cc] sm:$0xf]
    %v200 = vld [vmem:[%s1 + $0x2d0] sm:$0xf]
    %v201 = vld [vmem:[%s1 + $0x2d4] sm:$0xf]
    %v202 = vld [vmem:[%s1 + $0x2d8] sm:$0xf]
    %v203 = vld [vmem:[%s1 + $0x2dc] sm:$0xf]
    %v204 = vld [vmem:[%s1 + $0x2e0] sm:$0xf]
    %v205 = vld [vmem:[%s1 + $0x2e4] sm:$0xf]
    %v206 = vld [vmem:[%s1 + $0x2e8] sm:$0xf]
    %v207 = vld [vmem:[%s1 + $0x2ec] sm:$0xf]
    %v208 = vld [vmem:[%s1 + $0x2f0] sm:$0xf]
    %v209 = vld [vmem:[%s1 + $0x2f4] sm:$0xf]
    %v210 = vld [vmem:[%s1 + $0x2f8] sm:$0xf]
    %v211 = vld [vmem:[%s1 + $0x2fc] sm:$0xf]
    %v212 = vld [vmem:[%s1 + $0x300] sm:$0xf]
    %v213 = vld [vmem:[%s1 + $0x304] sm:$0xf]
    %v214 = vld [vmem:[%s1 + $0x308] sm:$0xf]
    %v215 = vld [vmem:[%s1 + $0x30c] sm:$0xf]
    %v216 = vld [vmem:[%s1 + $0x310] sm:$0xf]
    %v217 = vld [vmem:[%s1 + $0x314] sm:$0xf]
    %v218 = vld [vmem:[%s1 + $0x318] sm:$0xf]
    %v219 = vld [vmem:[%s1 + $0x31c] sm:$0xf]
    %v220 = vld [vmem:[%s1 + $0x320] sm:$0xf]
    %v221 = vld [vmem:[%s1 + $0x324] sm:$0xf]
    %v222 = vld [vmem:[%s1 + $0x328] sm:$0xf]
    %v223 = vld [vmem:[%s1 + $0x32c] sm:$0xf]
    %v224 = vld [vmem:[%s1 + $0x330] sm:$0xf]
    %v225 = vld [vmem:[%s1 + $0x334] sm:$0xf]
    %v226 = vld [vmem:[%s1 + $0x338] sm:$0xf]
    %v227 = vld [vmem:[%s1 + $0x33c] sm:$0xf]
    %v228 = vld [vmem:[%s1 + $0x340] sm:$0xf]
    %v229 = vld [vmem:[%s1 + $0x344] sm:$0xf]
    %v230 = vld [vmem:[%s1 + $0x348] sm:$0xf]
    %v231 = vld [vmem:[%s1 + $0x34c] sm:$0xf]
    %v232 = vld [vmem:[%s1 + $0x350] sm:$0xf]
    %v233 = vld [vmem:[%s1 + $0x354] sm:$0xf]
    %v234 = vld [vmem:[%s1 + $0x358] sm:$0xf]
    %v235 = vld [vmem:[%s1 + $0x35c] sm:$0xf]
    %v236 = vld [vmem:[%s1 + $0x360] sm:$0xf]
    %v237 = vld [vmem:[%s1 + $0x364] sm:$0xf]
    %v238 = vld [vmem:[%s1 + $0x368] sm:$0xf]
    %v239 = vld [vmem:[%s1 + $0x36c] sm:$0xf]
    %v240 = vld [vmem:[%s1 + $0x370] sm:$0xf]
    %v241 = vld [vmem:[%s1 + $0x374] sm:$0xf]
    %v242 = vld [vmem:[%s1 + $0x378] sm:$0xf]
    %v243 = vld [vmem:[%s1 + $0x37c] sm:$0xf]
    %v244 = vld [vmem:[%s1 + $0x380] sm:$0xf]
    %v245 = vld [vmem:[%s1 + $0x384] sm:$0xf]
    %v246 = vld [vmem:[%s1 + $0x388] sm:$0xf]
    %v247 = vld [vmem:[%s1 + $0x38c] sm:$0xf]
    %v248 = vld [vmem:[%s1 + $0x390] sm:$0xf]
    %v249 = vld [vmem:[%s1 + $0x394] sm:$0xf]
    %v250 = vld [vmem:[%s1 + $0x398] sm:$0xf]
    %v251 = vld [vmem:[%s1 + $0x39c] sm:$0xf]
    %v252 = vld [vmem:[%s1 + $0x3a0] sm:$0xf]
    %v253 = vld [vmem:[%s1 + $0x3a4] sm:$0xf]
    %v254 = vld [vmem:[%s1 + $0x3a8] sm:$0xf]
    %v255 = vld [vmem:[%s1 + $0x3ac] sm:$0xf]
    %v256 = vld [vmem:[%s1 + $0x3b0] sm:$0xf]
    %v257 = vld [vmem:[%s1 + $0x3b4] sm:$0xf]
    %v258 = vld [vmem:[%s1 + $0x3b8] sm:$0xf]
    %v259 = vld [vmem:[%s1 + $0x3bc] sm:$0xf]
    %v260 = vld [vmem:[%s1 + $0x3c0] sm:$0xf]
    %v261 = vld [vmem:[%s1 + $0x3c4] sm:$0xf]
    %v262 = vld [vmem:[%s1 + $0x3c8] sm:$0xf]
    %v263 = vld [vmem:[%s1 + $0x3cc] sm:$0xf]
    %v264 = vld [vmem:[%s1 + $0x3d0] sm:$0xf]
    %v265 = vld [vmem:[%s1 + $0x3d4] sm:$0xf]
    %v266 = vld [vmem:[%s1 + $0x3d8] sm:$0xf]
    %v267 = vld [vmem:[%s1 + $0x3dc] sm:$0xf]
    %v268 = vld [vmem:[%s1 + $0x3e0] sm:$0xf]
    %v269 = vld [vmem:[%s1 + $0x3e4] sm:$0xf]
    %v270 = vld [vmem:[%s1 + $0x3e8] sm:$0xf]
    %v271 = vld [vmem:[%s1 + $0x3ec] sm:$0xf]
    %v272 = vld [vmem:[%s1 + $0x3f0] sm:$0xf]
    %v273 = vld [vmem:[%s1 + $0x3f4] sm:$0xf]
    %v274 = vld [vmem:[%s1 + $0x3f8] sm:$0xf]
    %v275 = vld [vmem:[%s1 + $0x3fc] sm:$0xf]
    %v276 = vld [vmem:[%s1 + $0x400] sm:$0xf]
    %v277 = vld [vmem:[%s1 + $0x404] sm:$0xf]
    %v278 = vld [vmem:[%s1 + $0x408] sm:$0xf]
    %v279 = vld [vmem:[%s1 + $0x40c] sm:$0xf]
    %v280 = vld [vmem:[%s1 + $0x410] sm:$0xf]
    %v281 = vld [vmem:[%s1 + $0x414] sm:$0xf]
    %v282 = vld [vmem:[%s1 + $0x418] sm:$0xf]
    %v283 = vld [vmem:[%s1 + $0x41c] sm:$0xf]
    %v284 = vld [vmem:[%s1 + $0x420] sm:$0xf]
    %v285 = vld [vmem:[%s1 + $0x424] sm:$0xf]
    %v286 = vld [vmem:[%s1 + $0x428] sm:$0xf]
    %v287 = vld [vmem:[%s1 + $0x42c] sm:$0xf]
    %v288 = vld [vmem:[%s1 + $0x430] sm:$0xf]
    %v289 = vld [vmem:[%s1 + $0x434] sm:$0xf]
    %v290 = vld [vmem:[%s1 + $0x438] sm:$0xf]
    %v291 = vld [vmem:[%s1 + $0x43c] sm:$0xf]
    %v292 = vld [vmem:[%s1 + $0x440] sm:$0xf]
    %v293 = vld [vmem:[%s1 + $0x444] sm:$0xf]
    %v294 = vld [vmem:[%s1 + $0x448] sm:$0xf]
    %v295 = vld [vmem:[%s1 + $0x44c] sm:$0xf]
    %v296 = vld [vmem:[%s1 + $0x450] sm:$0xf]
    %v297 = vld [vmem:[%s1 + $0x454] sm:$0xf]
    %v298 = vld [vmem:[%s1 + $0x458] sm:$0xf]
    %v299 = vld [vmem:[%s1 + $0x45c] sm:$0xf]
    %v300 = vld [vmem:[%s1 + $0x460] sm:$0xf]
    %v301 = vld [vmem:[%s1 + $0x464] sm:$0xf]
    %v302 = vld [vmem:[%s1 + $0x468] sm:$0xf]
    %v303 = vld [vmem:[%s1 + $0x46c] sm:$0xf]
    %v304 = vld [vmem:[%s1 + $0x470] sm:$0xf]
    %v305 = vld [vmem:[%s1 + $0x474] sm:$0xf]
    %v306 = vld [vmem:[%s1 + $0x478] sm:$0xf]
    %v307 = vld [vmem:[%s1 + $0x47c] sm:$0xf]
    %v308 = vld [vmem:[%s1 + $0x480] sm:$0xf]
    %v309 = vld [vmem:[%s1 + $0x484] sm:$0xf]
    %v310 = vld [vmem:[%s1 + $0x488] sm:$0xf]
    %v311 = vld [vmem:[%s1 + $0x48c] sm:$0xf]
    %v312 = vld [vmem:[%s1 + $0x490] sm:$0xf]
    %v313 = vld [vmem:[%s1 + $0x494] sm:$0xf]
    %v314 = vld [vmem:[%s1 + $0x498] sm:$0xf]
    %v315 = vld [vmem:[%s1 + $0x49c] sm:$0xf]
    %v316 = vld [vmem:[%s1 + $0x4a0] sm:$0xf]
    %v317 = vld [vmem:[%s1 + $0x4a4] sm:$0xf]
    %v318 = vld [vmem:[%s1 + $0x4a8] sm:$0xf]
    %v319 = vld [vmem:[%s1 + $0x4ac] sm:$0xf]
    %v320 = vld [vmem:[%s1 + $0x4b0] sm:$0xf]
    %v321 = vld [vmem:[%s1 + $0x4b4] sm:$0xf]
    %v322 = vld [vmem:[%s1 + $0x4b8] sm:$0xf]
    %v323 = vld [vmem:[%s1 + $0x4bc] sm:$0xf]
    %v324 = vld [vmem:[%s1 + $0x4c0] sm:$0xf]
    %v325 = vld [vmem:[%s1 + $0x4c4] sm:$0xf]
    %v326 = vld [vmem:[%s1 + $0x4c8] sm:$0xf]
    %v327 = vld [vmem:[%s1 + $0x4cc] sm:$0xf]
    %v328 = vld [vmem:[%s1 + $0x4d0] sm:$0xf]
    %v329 = vld [vmem:[%s1 + $0x4d4] sm:$0xf]
    %v330 = vld [vmem:[%s1 + $0x4d8] sm:$0xf]
    %v331 = vld [vmem:[%s1 + $0x4dc] sm:$0xf]
    %v332 = vld [vmem:[%s1 + $0x4e0] sm:$0xf]
    %v333 = vld [vmem:[%s1 + $0x4e4] sm:$0xf]
    %v334 = vld [vmem:[%s1 + $0x4e8] sm:$0xf]
    %v335 = vld [vmem:[%s1 + $0x4ec] sm:$0xf]
    %v336 = vld [vmem:[%s1 + $0x4f0] sm:$0xf]
    %v337 = vld [vmem:[%s1 + $0x4f4] sm:$0xf]
    %v338 = vld [vmem:[%s1 + $0x4f8] sm:$0xf]
    %v339 = vld [vmem:[%s1 + $0x4fc] sm:$0xf]
    %v340 = vld [vmem:[%s1 + $0x500] sm:$0xf]
    %v341 = vld [vmem:[%s1 + $0x504] sm:$0xf]
    %v342 = vld [vmem:[%s1 + $0x508] sm:$0xf]
    %v343 = vld [vmem:[%s1 + $0x50c] sm:$0xf]
    %v344 = vld [vmem:[%s1 + $0x510] sm:$0xf]
    %v345 = vld [vmem:[%s1 + $0x514] sm:$0xf]
    %v346 = vld [vmem:[%s1 + $0x518] sm:$0xf]
    %v347 = vld [vmem:[%s1 + $0x51c] sm:$0xf]
    %v348 = vld [vmem:[%s1 + $0x520] sm:$0xf]
    %v349 = vld [vmem:[%s1 + $0x524] sm:$0xf]
    %v350 = vld [vmem:[%s1 + $0x528] sm:$0xf]
    %v351 = vld [vmem:[%s1 + $0x52c] sm:$0xf]
    %v352 = vld [vmem:[%s1 + $0x530] sm:$0xf]
    %v353 = vld [vmem:[%s1 + $0x534] sm:$0xf]
    %v354 = vld [vmem:[%s1 + $0x538] sm:$0xf]
    %v355 = vld [vmem:[%s1 + $0x53c] sm:$0xf]
    %v356 = vld [vmem:[%s1 + $0x540] sm:$0xf]
    %v357 = vld [vmem:[%s1 + $0x544] sm:$0xf]
    %v358 = vld [vmem:[%s1 + $0x548] sm:$0xf]
    %v359 = vld [vmem:[%s1 + $0x54c] sm:$0xf]
    %v360 = vld [vmem:[%s1 + $0x550] sm:$0xf]
    %v361 = vld [vmem:[%s1 + $0x554] sm:$0xf]
    %v362 = vld [vmem:[%s1 + $0x558] sm:$0xf]
    %v363 = vld [vmem:[%s1 + $0x55c] sm:$0xf]
    %v364 = vld [vmem:[%s1 + $0x560] sm:$0xf]
    %v365 = vld [vmem:[%s1 + $0x564] sm:$0xf]
    %v366 = vld [vmem:[%s1 + $0x568] sm:$0xf]
    %v367 = vld [vmem:[%s1 + $0x56c] sm:$0xf]
    %v368 = vld [vmem:[%s1 + $0x570] sm:$0xf]
    %v369 = vld [vmem:[%s1 + $0x574] sm:$0xf]
    %v370 = vld [vmem:[%s1 + $0x578] sm:$0xf]
    %v371 = vld [vmem:[%s1 + $0x57c] sm:$0xf]
    %v372 = vld [vmem:[%s1 + $0x580] sm:$0xf]
    %v373 = vld [vmem:[%s1 + $0x584] sm:$0xf]
    %v374 = vld [vmem:[%s1 + $0x588] sm:$0xf]
    %v375 = vld [vmem:[%s1 + $0x58c] sm:$0xf]
    %v376 = vld [vmem:[%s1 + $0x590] sm:$0xf]
    %v377 = vld [vmem:[%s1 + $0x594] sm:$0xf]
    %v378 = vld [vmem:[%s1 + $0x598] sm:$0xf]
    %v379 = vld [vmem:[%s1 + $0x59c] sm:$0xf]
    %v380 = vld [vmem:[%s1 + $0x5a0] sm:$0xf]
    %v381 = vld [vmem:[%s1 + $0x5a4] sm:$0xf]
    %v382 = vld [vmem:[%s1 + $0x5a8] sm:$0xf]
    %v383 = vld [vmem:[%s1 + $0x5ac] sm:$0xf]
    %v384 = vld [vmem:[%s1 + $0x5b0] sm:$0xf]
    %v385 = vld [vmem:[%s1 + $0x5b4] sm:$0xf]
    %v386 = vld [vmem:[%s1 + $0x5b8] sm:$0xf]
    %v387 = vld [vmem:[%s1 + $0x5bc] sm:$0xf]
    %v388 = vld [vmem:[%s1 + $0x5c0] sm:$0xf]
    %v389 = vld [vmem:[%s1 + $0x5c4] sm:$0xf]
    %v390 = vld [vmem:[%s1 + $0x5c8] sm:$0xf]
    %v391 = vld [vmem:[%s1 + $0x5cc] sm:$0xf]
    %v392 = vld [vmem:[%s1 + $0x5d0] sm:$0xf]
    %v393 = vld [vmem:[%s1 + $0x5d4] sm:$0xf]
    %v394 = vld [vmem:[%s1 + $0x5d8] sm:$0xf]
    %v395 = vld [vmem:[%s1 + $0x5dc] sm:$0xf]
    %v396 = vld [vmem:[%s1 + $0x5e0] sm:$0xf]
    %v397 = vld [vmem:[%s1 + $0x5e4] sm:$0xf]
    %v398 = vld [vmem:[%s1 + $0x5e8] sm:$0xf]
    %v399 = vld [vmem:[%s1 + $0x5ec] sm:$0xf]
    %v400 = vld [vmem:[%s1 + $0x5f0] sm:$0xf]
    %v401 = vld [vmem:[%s1 + $0x5f4] sm:$0xf]
    %v402 = vld [vmem:[%s1 + $0x5f8] sm:$0xf]
    %v403 = vld [vmem:[%s1 + $0x5fc] sm:$0xf]
    %v404 = vld [vmem:[%s1 + $0x600] sm:$0xf]
    %v405 = vld [vmem:[%s1 + $0x604] sm:$0xf]
    %v406 = vld [vmem:[%s1 + $0x608] sm:$0xf]
    %v407 = vld [vmem:[%s1 + $0x60c] sm:$0xf]
    %v408 = vld [vmem:[%s1 + $0x610] sm:$0xf]
    %v409 = vld [vmem:[%s1 + $0x614] sm:$0xf]
    %v410 = vld [vmem:[%s1 + $0x618] sm:$0xf]
    %v411 = vld [vmem:[%s1 + $0x61c] sm:$0xf]
    %v412 = vld [vmem:[%s1 + $0x620] sm:$0xf]
    %v413 = vld [vmem:[%s1 + $0x624] sm:$0xf]
    %v414 = vld [vmem:[%s1 + $0x628] sm:$0xf]
    %v415 = vld [vmem:[%s1 + $0x62c] sm:$0xf]
    %v416 = vld [vmem:[%s1 + $0x630] sm:$0xf]
    %v417 = vld [vmem:[%s1 + $0x634] sm:$0xf]
    %v418 = vld [vmem:[%s1 + $0x638] sm:$0xf]
    %v419 = vld [vmem:[%s1 + $0x63c] sm:$0xf]
    %v420 = vld [vmem:[%s1 + $0x640] sm:$0xf]
    %v421 = vld [vmem:[%s1 + $0x644] sm:$0xf]
    %v422 = vld [vmem:[%s1 + $0x648] sm:$0xf]
    %v423 = vld [vmem:[%s1 + $0x64c] sm:$0xf]
    %v424 = vld [vmem:[%s1 + $0x650] sm:$0xf]
    %v425 = vld [vmem:[%s1 + $0x654] sm:$0xf]
    %v426 = vld [vmem:[%s1 + $0x658] sm:$0xf]
    %v427 = vld [vmem:[%s1 + $0x65c] sm:$0xf]
    %v428 = vld [vmem:[%s1 + $0x660] sm:$0xf]
    %v429 = vld [vmem:[%s1 + $0x664] sm:$0xf]
    %v430 = vld [vmem:[%s1 + $0x668] sm:$0xf]
    %v431 = vld [vmem:[%s1 + $0x66c] sm:$0xf]
    %v432 = vld [vmem:[%s1 + $0x670] sm:$0xf]
    %v433 = vld [vmem:[%s1 + $0x674] sm:$0xf]
    %v434 = vld [vmem:[%s1 + $0x678] sm:$0xf]
    %v435 = vld [vmem:[%s1 + $0x67c] sm:$0xf]
    %v436 = vld [vmem:[%s1 + $0x680] sm:$0xf]
    %v437 = vld [vmem:[%s1 + $0x684] sm:$0xf]
    %v438 = vld [vmem:[%s1 + $0x688] sm:$0xf]
    %v439 = vld [vmem:[%s1 + $0x68c] sm:$0xf]
    %v440 = vld [vmem:[%s1 + $0x690] sm:$0xf]
    %v441 = vld [vmem:[%s1 + $0x694] sm:$0xf]
    %v442 = vld [vmem:[%s1 + $0x698] sm:$0xf]
    %v443 = vld [vmem:[%s1 + $0x69c] sm:$0xf]
    %v444 = vld [vmem:[%s1 + $0x6a0] sm:$0xf]
    %v445 = vld [vmem:[%s1 + $0x6a4] sm:$0xf]
    %v446 = vld [vmem:[%s1 + $0x6a8] sm:$0xf]
    %v447 = vld [vmem:[%s1 + $0x6ac] sm:$0xf]
    %v448 = vld [vmem:[%s1 + $0x6b0] sm:$0xf]
    %v449 = vld [vmem:[%s1 + $0x6b4] sm:$0xf]
    %v450 = vld [vmem:[%s1 + $0x6b8] sm:$0xf]
    %v451 = vld [vmem:[%s1 + $0x6bc] sm:$0xf]
    %v452 = vld [vmem:[%s1 + $0x6c0] sm:$0xf]
    %v453 = vld [vmem:[%s1 + $0x6c4] sm:$0xf]
    %v454 = vld [vmem:[%s1 + $0x6c8] sm:$0xf]
    %v455 = vld [vmem:[%s1 + $0x6cc] sm:$0xf]
    %v456 = vld [vmem:[%s1 + $0x6d0] sm:$0xf]
    %v457 = vld [vmem:[%s1 + $0x6d4] sm:$0xf]
    %v458 = vld [vmem:[%s1 + $0x6d8] sm:$0xf]
    %v459 = vld [vmem:[%s1 + $0x6dc] sm:$0xf]
    %v460 = vld [vmem:[%s1 + $0x6e0] sm:$0xf]
    %v461 = vld [vmem:[%s1 + $0x6e4] sm:$0xf]
    %v462 = vld [vmem:[%s1 + $0x6e8] sm:$0xf]
    %v463 = vld [vmem:[%s1 + $0x6ec] sm:$0xf]
    %v464 = vld [vmem:[%s1 + $0x6f0] sm:$0xf]
    %v465 = vld [vmem:[%s1 + $0x6f4] sm:$0xf]
    %v466 = vld [vmem:[%s1 + $0x6f8] sm:$0xf]
    %v467 = vld [vmem:[%s1 + $0x6fc] sm:$0xf]
    %v468 = vld [vmem:[%s2] sm:$0x1]
    %v470 = vlaneseq
    %v471 = vshrl.u32 %v470, 7
    %v472 = vsub.s32 0, %v471
    %v473 = vrot.slane %v468, %v472
    %v479 = vcombine.high %v16, %v16
    %v481 = vunpack.c.l.s4 1966171168
    %v482 = vunpack.c.0.s8 %v481
    %v483 = vlaneseq
    %v484 = vshrl.u32 %v483, 7
    %v485 = vsub.s32 %v482, %v484
    %v486 = vrot.slane %v16, %v485
    %v488 = vunpack.c.l.s4 1966171168
    %v489 = vunpack.c.0.s8 %v488
    %v490 = vlaneseq
    %v491 = vshrl.u32 %v490, 7
    %v492 = vsub.s32 %v489, %v491
    %v493 = vrot.slane %v479, %v492
    %v494 = vcombine.high %v486, %v486
    %v495 = vcombine.high %v493, %v493
    %v497 = vunpack.c.l.s4 1966171168
    %v498 = vunpack.c.0.s8 %v497
    %v499 = vlaneseq
    %v500 = vshrl.u32 %v499, 7
    %v501 = vsub.s32 %v498, %v500
    %v502 = vrot.slane %v486, %v501
    %v504 = vunpack.c.l.s4 1966171168
    %v505 = vunpack.c.0.s8 %v504
    %v506 = vlaneseq
    %v507 = vshrl.u32 %v506, 7
    %v508 = vsub.s32 %v505, %v507
    %v509 = vrot.slane %v493, %v508
    %v511 = vunpack.c.l.s4 1966171168
    %v512 = vunpack.c.0.s8 %v511
    %v513 = vlaneseq
    %v514 = vshrl.u32 %v513, 7
    %v515 = vsub.s32 %v512, %v514
    %v516 = vrot.slane %v494, %v515
    %v518 = vunpack.c.l.s4 1966171168
    %v519 = vunpack.c.0.s8 %v518
    %v520 = vlaneseq
    %v521 = vshrl.u32 %v520, 7
    %v522 = vsub.s32 %v519, %v521
    %v523 = vrot.slane %v495, %v522
    %v524 = vcombine.high %v502, %v502
    %v525 = vcombine.high %v509, %v509
    %v526 = vcombine.high %v516, %v516
    %v527 = vcombine.high %v523, %v523
    %v528 = vcombine.high %v17, %v17
    %v530 = vunpack.c.l.s4 1966171168
    %v531 = vunpack.c.0.s8 %v530
    %v532 = vlaneseq
    %v533 = vshrl.u32 %v532, 7
    %v534 = vsub.s32 %v531, %v533
    %v535 = vrot.slane %v17, %v534
    %v537 = vunpack.c.l.s4 1966171168
    %v538 = vunpack.c.0.s8 %v537
    %v539 = vlaneseq
    %v540 = vshrl.u32 %v539, 7
    %v541 = vsub.s32 %v538, %v540
    %v542 = vrot.slane %v528, %v541
    %v543 = vcombine.high %v535, %v535
    %v544 = vcombine.high %v542, %v542
    %v546 = vunpack.c.l.s4 1966171168
    %v547 = vunpack.c.0.s8 %v546
    %v548 = vlaneseq
    %v549 = vshrl.u32 %v548, 7
    %v550 = vsub.s32 %v547, %v549
    %v551 = vrot.slane %v535, %v550
    %v553 = vunpack.c.l.s4 1966171168
    %v554 = vunpack.c.0.s8 %v553
    %v555 = vlaneseq
    %v556 = vshrl.u32 %v555, 7
    %v557 = vsub.s32 %v554, %v556
    %v558 = vrot.slane %v542, %v557
    %v560 = vunpack.c.l.s4 1966171168
    %v561 = vunpack.c.0.s8 %v560
    %v562 = vlaneseq
    %v563 = vshrl.u32 %v562, 7
    %v564 = vsub.s32 %v561, %v563
    %v565 = vrot.slane %v543, %v564
    %v567 = vunpack.c.l.s4 1966171168
    %v568 = vunpack.c.0.s8 %v567
    %v569 = vlaneseq
    %v570 = vshrl.u32 %v569, 7
    %v571 = vsub.s32 %v568, %v570
    %v572 = vrot.slane %v544, %v571
    %v573 = vcombine.high %v551, %v551
    %v574 = vcombine.high %v558, %v558
    %v575 = vcombine.high %v565, %v565
    %v576 = vcombine.high %v572, %v572
    %v577 = vcombine.high %v18, %v18
    %v579 = vunpack.c.l.s4 1966171168
    %v580 = vunpack.c.0.s8 %v579
    %v581 = vlaneseq
    %v582 = vshrl.u32 %v581, 7
    %v583 = vsub.s32 %v580, %v582
    %v584 = vrot.slane %v18, %v583
    %v586 = vunpack.c.l.s4 1966171168
    %v587 = vunpack.c.0.s8 %v586
    %v588 = vlaneseq
    %v589 = vshrl.u32 %v588, 7
    %v590 = vsub.s32 %v587, %v589
    %v591 = vrot.slane %v577, %v590
    %v592 = vcombine.high %v584, %v584
    %v593 = vcombine.high %v591, %v591
    %v595 = vunpack.c.l.s4 1966171168
    %v596 = vunpack.c.0.s8 %v595
    %v597 = vlaneseq
    %v598 = vshrl.u32 %v597, 7
    %v599 = vsub.s32 %v596, %v598
    %v600 = vrot.slane %v584, %v599
    %v602 = vunpack.c.l.s4 1966171168
    %v603 = vunpack.c.0.s8 %v602
    %v604 = vlaneseq
    %v605 = vshrl.u32 %v604, 7
    %v606 = vsub.s32 %v603, %v605
    %v607 = vrot.slane %v591, %v606
    %v609 = vunpack.c.l.s4 1966171168
    %v610 = vunpack.c.0.s8 %v609
    %v611 = vlaneseq
    %v612 = vshrl.u32 %v611, 7
    %v613 = vsub.s32 %v610, %v612
    %v614 = vrot.slane %v592, %v613
    %v616 = vunpack.c.l.s4 1966171168
    %v617 = vunpack.c.0.s8 %v616
    %v618 = vlaneseq
    %v619 = vshrl.u32 %v618, 7
    %v620 = vsub.s32 %v617, %v619
    %v621 = vrot.slane %v593, %v620
    %v622 = vcombine.high %v600, %v600
    %v623 = vcombine.high %v607, %v607
    %v624 = vcombine.high %v614, %v614
    %v625 = vcombine.high %v621, %v621
    %v627 = vunpack.c.l.s4 1966171168
    %v628 = vunpack.c.0.s8 %v627
    %v629 = vlaneseq
    %v630 = vshrl.u32 %v629, 7
    %v631 = vsub.s32 %v628, %v630
    %v632 = vrot.slane %v19, %v631
    %v633 = vcombine.high %v632, %v632
    %v635 = vunpack.c.l.s4 1966171168
    %v636 = vunpack.c.0.s8 %v635
    %v637 = vlaneseq
    %v638 = vshrl.u32 %v637, 7
    %v639 = vsub.s32 %v636, %v638
    %v640 = vrot.slane %v632, %v639
    %v642 = vunpack.c.l.s4 1966171168
    %v643 = vunpack.c.0.s8 %v642
    %v644 = vlaneseq
    %v645 = vshrl.u32 %v644, 7
    %v646 = vsub.s32 %v643, %v645
    %v647 = vrot.slane %v633, %v646
    %v648 = vcombine.high %v640, %v640
    %v649 = vcombine.high %v647, %v647
    %v1126 = vunpack.c.l.b16 %v20
    %v1127 = vunpack.c.l.b16 %v21
    %v1128 = vunpack.c.l.b16 %v22
    %v1129 = vunpack.c.l.b16 %v23
    %v1130 = vunpack.c.l.b16 %v24
    %v1131 = vunpack.c.l.b16 %v25
    %v1132 = vunpack.c.l.b16 %v26
    %v1133 = vunpack.c.l.b16 %v27
    %v1134 = vunpack.c.l.b16 %v28
    %v1135 = vunpack.c.l.b16 %v29
    %v1136 = vunpack.c.l.b16 %v30
    %v1137 = vunpack.c.l.b16 %v31
    %v1138 = vunpack.c.l.b16 %v32
    %v1139 = vunpack.c.l.b16 %v33
    %v1140 = vunpack.c.l.b16 %v34
    %v1141 = vunpack.c.l.b16 %v35
    %v1142 = vunpack.c.l.b16 %v36
    %v1143 = vunpack.c.l.b16 %v37
    %v1144 = vunpack.c.l.b16 %v38
    %v1145 = vunpack.c.l.b16 %v39
    %v1146 = vunpack.c.l.b16 %v40
    %v1147 = vunpack.c.l.b16 %v41
    %v1148 = vunpack.c.l.b16 %v42
    %v1149 = vunpack.c.l.b16 %v43
    %v1150 = vunpack.c.l.b16 %v44
    %v1151 = vunpack.c.l.b16 %v45
    %v1152 = vunpack.c.l.b16 %v46
    %v1153 = vunpack.c.l.b16 %v47
    %v1154 = vunpack.c.l.b16 %v48
    %v1155 = vunpack.c.l.b16 %v49
    %v1156 = vunpack.c.l.b16 %v50
    %v1157 = vunpack.c.l.b16 %v51
    %v1158 = vunpack.c.l.b16 %v52
    %v1159 = vunpack.c.l.b16 %v53
    %v1160 = vunpack.c.l.b16 %v54
    %v1161 = vunpack.c.l.b16 %v55
    %v1162 = vunpack.c.l.b16 %v56
    %v1163 = vunpack.c.l.b16 %v57
    %v1164 = vunpack.c.l.b16 %v58
    %v1165 = vunpack.c.l.b16 %v59
    %v1166 = vunpack.c.l.b16 %v60
    %v1167 = vunpack.c.l.b16 %v61
    %v1168 = vunpack.c.l.b16 %v62
    %v1169 = vunpack.c.l.b16 %v63
    %v1170 = vunpack.c.l.b16 %v64
    %v1171 = vunpack.c.l.b16 %v65
    %v1172 = vunpack.c.l.b16 %v66
    %v1173 = vunpack.c.l.b16 %v67
    %v1174 = vunpack.c.l.b16 %v68
    %v1175 = vunpack.c.l.b16 %v69
    %v1176 = vunpack.c.l.b16 %v70
    %v1177 = vunpack.c.l.b16 %v71
    %v1178 = vunpack.c.l.b16 %v72
    %v1179 = vunpack.c.l.b16 %v73
    %v1180 = vunpack.c.l.b16 %v74
    %v1181 = vunpack.c.l.b16 %v75
    %v1182 = vunpack.c.l.b16 %v76
    %v1183 = vunpack.c.l.b16 %v77
    %v1184 = vunpack.c.l.b16 %v78
    %v1185 = vunpack.c.l.b16 %v79
    %v1186 = vunpack.c.l.b16 %v80
    %v1187 = vunpack.c.l.b16 %v81
    %v1188 = vunpack.c.l.b16 %v82
    %v1189 = vunpack.c.l.b16 %v83
    %v1190 = vunpack.c.l.b16 %v84
    %v1191 = vunpack.c.l.b16 %v85
    %v1192 = vunpack.c.l.b16 %v86
    %v1193 = vunpack.c.l.b16 %v87
    %v1194 = vunpack.c.l.b16 %v88
    %v1195 = vunpack.c.l.b16 %v89
    %v1196 = vunpack.c.l.b16 %v90
    %v1197 = vunpack.c.l.b16 %v91
    %v1198 = vunpack.c.l.b16 %v92
    %v1199 = vunpack.c.l.b16 %v93
    %v1200 = vunpack.c.l.b16 %v94
    %v1201 = vunpack.c.l.b16 %v95
    %v1202 = vunpack.c.l.b16 %v96
    %v1203 = vunpack.c.l.b16 %v97
    %v1204 = vunpack.c.l.b16 %v98
    %v1205 = vunpack.c.l.b16 %v99
    %v1206 = vunpack.c.l.b16 %v100
    %v1207 = vunpack.c.l.b16 %v101
    %v1208 = vunpack.c.l.b16 %v102
    %v1209 = vunpack.c.l.b16 %v103
    %v1210 = vunpack.c.l.b16 %v104
    %v1211 = vunpack.c.l.b16 %v105
    %v1212 = vunpack.c.l.b16 %v106
    %v1213 = vunpack.c.l.b16 %v107
    %v1214 = vunpack.c.l.b16 %v108
    %v1215 = vunpack.c.l.b16 %v109
    %v1216 = vunpack.c.l.b16 %v110
    %v1217 = vunpack.c.l.b16 %v111
    %v1218 = vunpack.c.l.b16 %v112
    %v1219 = vunpack.c.l.b16 %v113
    %v1220 = vunpack.c.l.b16 %v114
    %v1221 = vunpack.c.l.b16 %v115
    %v1222 = vunpack.c.l.b16 %v116
    %v1223 = vunpack.c.l.b16 %v117
    %v1224 = vunpack.c.l.b16 %v118
    %v1225 = vunpack.c.l.b16 %v119
    %v1226 = vunpack.c.l.b16 %v120
    %v1227 = vunpack.c.l.b16 %v121
    %v1228 = vunpack.c.l.b16 %v122
    %v1229 = vunpack.c.l.b16 %v123
    %v1230 = vunpack.c.l.b16 %v124
    %v1231 = vunpack.c.l.b16 %v125
    %v1232 = vunpack.c.l.b16 %v126
    %v1233 = vunpack.c.l.b16 %v127
    %v1234 = vunpack.c.l.b16 %v128
    %v1235 = vunpack.c.l.b16 %v129
    %v1236 = vunpack.c.l.b16 %v130
    %v1237 = vunpack.c.l.b16 %v131
    %v1238 = vunpack.c.l.b16 %v132
    %v1239 = vunpack.c.l.b16 %v133
    %v1240 = vunpack.c.l.b16 %v134
    %v1241 = vunpack.c.l.b16 %v135
    %v1242 = vunpack.c.l.b16 %v136
    %v1243 = vunpack.c.l.b16 %v137
    %v1244 = vunpack.c.l.b16 %v138
    %v1245 = vunpack.c.l.b16 %v139
    %v1246 = vunpack.c.l.b16 %v140
    %v1247 = vunpack.c.l.b16 %v141
    %v1248 = vunpack.c.l.b16 %v142
    %v1249 = vunpack.c.l.b16 %v143
    %v1250 = vunpack.c.l.b16 %v144
    %v1251 = vunpack.c.l.b16 %v145
    %v1252 = vunpack.c.l.b16 %v146
    %v1253 = vunpack.c.l.b16 %v147
    %v1254 = vunpack.c.l.b16 %v148
    %v1255 = vunpack.c.l.b16 %v149
    %v1256 = vunpack.c.l.b16 %v150
    %v1257 = vunpack.c.l.b16 %v151
    %v1258 = vunpack.c.l.b16 %v152
    %v1259 = vunpack.c.l.b16 %v153
    %v1260 = vunpack.c.l.b16 %v154
    %v1261 = vunpack.c.l.b16 %v155
    %v1262 = vunpack.c.l.b16 %v156
    %v1263 = vunpack.c.l.b16 %v157
    %v1264 = vunpack.c.l.b16 %v158
    %v1265 = vunpack.c.l.b16 %v159
    %v1266 = vunpack.c.l.b16 %v160
    %v1267 = vunpack.c.l.b16 %v161
    %v1268 = vunpack.c.l.b16 %v162
    %v1269 = vunpack.c.l.b16 %v163
    %v1270 = vunpack.c.l.b16 %v164
    %v1271 = vunpack.c.l.b16 %v165
    %v1272 = vunpack.c.l.b16 %v166
    %v1273 = vunpack.c.l.b16 %v167
    %v1274 = vunpack.c.l.b16 %v168
    %v1275 = vunpack.c.l.b16 %v169
    %v1276 = vunpack.c.l.b16 %v170
    %v1277 = vunpack.c.l.b16 %v171
    %v1278 = vunpack.c.l.b16 %v172
    %v1279 = vunpack.c.l.b16 %v173
    %v1280 = vunpack.c.l.b16 %v174
    %v1281 = vunpack.c.l.b16 %v175
    %v1282 = vunpack.c.l.b16 %v176
    %v1283 = vunpack.c.l.b16 %v177
    %v1284 = vunpack.c.l.b16 %v178
    %v1285 = vunpack.c.l.b16 %v179
    %v1286 = vunpack.c.l.b16 %v180
    %v1287 = vunpack.c.l.b16 %v181
    %v1288 = vunpack.c.l.b16 %v182
    %v1289 = vunpack.c.l.b16 %v183
    %v1290 = vunpack.c.l.b16 %v184
    %v1291 = vunpack.c.l.b16 %v185
    %v1292 = vunpack.c.l.b16 %v186
    %v1293 = vunpack.c.l.b16 %v187
    %v1294 = vunpack.c.l.b16 %v188
    %v1295 = vunpack.c.l.b16 %v189
    %v1296 = vunpack.c.l.b16 %v190
    %v1297 = vunpack.c.l.b16 %v191
    %v1298 = vunpack.c.l.b16 %v192
    %v1299 = vunpack.c.l.b16 %v193
    %v1300 = vunpack.c.l.b16 %v194
    %v1301 = vunpack.c.l.b16 %v195
    %v1302 = vunpack.c.l.b16 %v196
    %v1303 = vunpack.c.l.b16 %v197
    %v1304 = vunpack.c.l.b16 %v198
    %v1305 = vunpack.c.l.b16 %v199
    %v1306 = vunpack.c.l.b16 %v200
    %v1307 = vunpack.c.l.b16 %v201
    %v1308 = vunpack.c.l.b16 %v202
    %v1309 = vunpack.c.l.b16 %v203
    %v1310 = vunpack.c.l.b16 %v204
    %v1311 = vunpack.c.l.b16 %v205
    %v1312 = vunpack.c.l.b16 %v206
    %v1313 = vunpack.c.l.b16 %v207
    %v1314 = vunpack.c.l.b16 %v208
    %v1315 = vunpack.c.l.b16 %v209
    %v1316 = vunpack.c.l.b16 %v210
    %v1317 = vunpack.c.l.b16 %v211
    %v1318 = vunpack.c.l.b16 %v212
    %v1319 = vunpack.c.l.b16 %v213
    %v1320 = vunpack.c.l.b16 %v214
    %v1321 = vunpack.c.l.b16 %v215
    %v1322 = vunpack.c.l.b16 %v216
    %v1323 = vunpack.c.l.b16 %v217
    %v1324 = vunpack.c.l.b16 %v218
    %v1325 = vunpack.c.l.b16 %v219
    %v1326 = vunpack.c.l.b16 %v220
    %v1327 = vunpack.c.l.b16 %v221
    %v1328 = vunpack.c.l.b16 %v222
    %v1329 = vunpack.c.l.b16 %v223
    %v1330 = vunpack.c.l.b16 %v224
    %v1331 = vunpack.c.l.b16 %v225
    %v1332 = vunpack.c.l.b16 %v226
    %v1333 = vunpack.c.l.b16 %v227
    %v1334 = vunpack.c.l.b16 %v228
    %v1335 = vunpack.c.l.b16 %v229
    %v1336 = vunpack.c.l.b16 %v230
    %v1337 = vunpack.c.l.b16 %v231
    %v1338 = vunpack.c.l.b16 %v232
    %v1339 = vunpack.c.l.b16 %v233
    %v1340 = vunpack.c.l.b16 %v234
    %v1341 = vunpack.c.l.b16 %v235
    %v1342 = vunpack.c.l.b16 %v236
    %v1343 = vunpack.c.l.b16 %v237
    %v1344 = vunpack.c.l.b16 %v238
    %v1345 = vunpack.c.l.b16 %v239
    %v1346 = vunpack.c.l.b16 %v240
    %v1347 = vunpack.c.l.b16 %v241
    %v1348 = vunpack.c.l.b16 %v242
    %v1349 = vunpack.c.l.b16 %v243
    %v1350 = vunpack.c.l.b16 %v244
    %v1351 = vunpack.c.l.b16 %v245
    %v1352 = vunpack.c.l.b16 %v246
    %v1353 = vunpack.c.l.b16 %v247
    %v1354 = vunpack.c.l.b16 %v248
    %v1355 = vunpack.c.l.b16 %v249
    %v1356 = vunpack.c.l.b16 %v250
    %v1357 = vunpack.c.l.b16 %v251
    %v1358 = vunpack.c.l.b16 %v252
    %v1359 = vunpack.c.l.b16 %v253
    %v1360 = vunpack.c.l.b16 %v254
    %v1361 = vunpack.c.l.b16 %v255
    %v1362 = vunpack.c.l.b16 %v256
    %v1363 = vunpack.c.l.b16 %v257
    %v1364 = vunpack.c.l.b16 %v258
    %v1365 = vunpack.c.l.b16 %v259
    %v1366 = vunpack.c.l.b16 %v260
    %v1367 = vunpack.c.l.b16 %v261
    %v1368 = vunpack.c.l.b16 %v262
    %v1369 = vunpack.c.l.b16 %v263
    %v1370 = vunpack.c.l.b16 %v264
    %v1371 = vunpack.c.l.b16 %v265
    %v1372 = vunpack.c.l.b16 %v266
    %v1373 = vunpack.c.l.b16 %v267
    %v1374 = vunpack.c.l.b16 %v268
    %v1375 = vunpack.c.l.b16 %v269
    %v1376 = vunpack.c.l.b16 %v270
    %v1377 = vunpack.c.l.b16 %v271
    %v1378 = vunpack.c.l.b16 %v272
    %v1379 = vunpack.c.l.b16 %v273
    %v1380 = vunpack.c.l.b16 %v274
    %v1381 = vunpack.c.l.b16 %v275
    %v1382 = vunpack.c.l.b16 %v276
    %v1383 = vunpack.c.l.b16 %v277
    %v1384 = vunpack.c.l.b16 %v278
    %v1385 = vunpack.c.l.b16 %v279
    %v1386 = vunpack.c.l.b16 %v280
    %v1387 = vunpack.c.l.b16 %v281
    %v1388 = vunpack.c.l.b16 %v282
    %v1389 = vunpack.c.l.b16 %v283
    %v1390 = vunpack.c.l.b16 %v284
    %v1391 = vunpack.c.l.b16 %v285
    %v1392 = vunpack.c.l.b16 %v286
    %v1393 = vunpack.c.l.b16 %v287
    %v1394 = vunpack.c.l.b16 %v288
    %v1395 = vunpack.c.l.b16 %v289
    %v1396 = vunpack.c.l.b16 %v290
    %v1397 = vunpack.c.l.b16 %v291
    %v1398 = vunpack.c.l.b16 %v292
    %v1399 = vunpack.c.l.b16 %v293
    %v1400 = vunpack.c.l.b16 %v294
    %v1401 = vunpack.c.l.b16 %v295
    %v1402 = vunpack.c.l.b16 %v296
    %v1403 = vunpack.c.l.b16 %v297
    %v1404 = vunpack.c.l.b16 %v298
    %v1405 = vunpack.c.l.b16 %v299
    %v1406 = vunpack.c.l.b16 %v300
    %v1407 = vunpack.c.l.b16 %v301
    %v1408 = vunpack.c.l.b16 %v302
    %v1409 = vunpack.c.l.b16 %v303
    %v1410 = vunpack.c.l.b16 %v304
    %v1411 = vunpack.c.l.b16 %v305
    %v1412 = vunpack.c.l.b16 %v306
    %v1413 = vunpack.c.l.b16 %v307
    %v1414 = vunpack.c.l.b16 %v308
    %v1415 = vunpack.c.l.b16 %v309
    %v1416 = vunpack.c.l.b16 %v310
    %v1417 = vunpack.c.l.b16 %v311
    %v1418 = vunpack.c.l.b16 %v312
    %v1419 = vunpack.c.l.b16 %v313
    %v1420 = vunpack.c.l.b16 %v314
    %v1421 = vunpack.c.l.b16 %v315
    %v1422 = vunpack.c.l.b16 %v316
    %v1423 = vunpack.c.l.b16 %v317
    %v1424 = vunpack.c.l.b16 %v318
    %v1425 = vunpack.c.l.b16 %v319
    %v1426 = vunpack.c.l.b16 %v320
    %v1427 = vunpack.c.l.b16 %v321
    %v1428 = vunpack.c.l.b16 %v322
    %v1429 = vunpack.c.l.b16 %v323
    %v1430 = vunpack.c.l.b16 %v324
    %v1431 = vunpack.c.l.b16 %v325
    %v1432 = vunpack.c.l.b16 %v326
    %v1433 = vunpack.c.l.b16 %v327
    %v1434 = vunpack.c.l.b16 %v328
    %v1435 = vunpack.c.l.b16 %v329
    %v1436 = vunpack.c.l.b16 %v330
    %v1437 = vunpack.c.l.b16 %v331
    %v1438 = vunpack.c.l.b16 %v332
    %v1439 = vunpack.c.l.b16 %v333
    %v1440 = vunpack.c.l.b16 %v334
    %v1441 = vunpack.c.l.b16 %v335
    %v1442 = vunpack.c.l.b16 %v336
    %v1443 = vunpack.c.l.b16 %v337
    %v1444 = vunpack.c.l.b16 %v338
    %v1445 = vunpack.c.l.b16 %v339
    %v1446 = vunpack.c.l.b16 %v340
    %v1447 = vunpack.c.l.b16 %v341
    %v1448 = vunpack.c.l.b16 %v342
    %v1449 = vunpack.c.l.b16 %v343
    %v1450 = vunpack.c.l.b16 %v344
    %v1451 = vunpack.c.l.b16 %v345
    %v1452 = vunpack.c.l.b16 %v346
    %v1453 = vunpack.c.l.b16 %v347
    %v1454 = vunpack.c.l.b16 %v348
    %v1455 = vunpack.c.l.b16 %v349
    %v1456 = vunpack.c.l.b16 %v350
    %v1457 = vunpack.c.l.b16 %v351
    %v1458 = vunpack.c.l.b16 %v352
    %v1459 = vunpack.c.l.b16 %v353
    %v1460 = vunpack.c.l.b16 %v354
    %v1461 = vunpack.c.l.b16 %v355
    %v1462 = vunpack.c.l.b16 %v356
    %v1463 = vunpack.c.l.b16 %v357
    %v1464 = vunpack.c.l.b16 %v358
    %v1465 = vunpack.c.l.b16 %v359
    %v1466 = vunpack.c.l.b16 %v360
    %v1467 = vunpack.c.l.b16 %v361
    %v1468 = vunpack.c.l.b16 %v362
    %v1469 = vunpack.c.l.b16 %v363
    %v1470 = vunpack.c.l.b16 %v364
    %v1471 = vunpack.c.l.b16 %v365
    %v1472 = vunpack.c.l.b16 %v366
    %v1473 = vunpack.c.l.b16 %v367
    %v1474 = vunpack.c.l.b16 %v368
    %v1475 = vunpack.c.l.b16 %v369
    %v1476 = vunpack.c.l.b16 %v370
    %v1477 = vunpack.c.l.b16 %v371
    %v1478 = vunpack.c.l.b16 %v372
    %v1479 = vunpack.c.l.b16 %v373
    %v1480 = vunpack.c.l.b16 %v374
    %v1481 = vunpack.c.l.b16 %v375
    %v1482 = vunpack.c.l.b16 %v376
    %v1483 = vunpack.c.l.b16 %v377
    %v1484 = vunpack.c.l.b16 %v378
    %v1485 = vunpack.c.l.b16 %v379
    %v1486 = vunpack.c.l.b16 %v380
    %v1487 = vunpack.c.l.b16 %v381
    %v1488 = vunpack.c.l.b16 %v382
    %v1489 = vunpack.c.l.b16 %v383
    %v1490 = vunpack.c.l.b16 %v384
    %v1491 = vunpack.c.l.b16 %v385
    %v1492 = vunpack.c.l.b16 %v386
    %v1493 = vunpack.c.l.b16 %v387
    %v1494 = vunpack.c.l.b16 %v388
    %v1495 = vunpack.c.l.b16 %v389
    %v1496 = vunpack.c.l.b16 %v390
    %v1497 = vunpack.c.l.b16 %v391
    %v1498 = vunpack.c.l.b16 %v392
    %v1499 = vunpack.c.l.b16 %v393
    %v1500 = vunpack.c.l.b16 %v394
    %v1501 = vunpack.c.l.b16 %v395
    %v1502 = vunpack.c.l.b16 %v396
    %v1503 = vunpack.c.l.b16 %v397
    %v1504 = vunpack.c.l.b16 %v398
    %v1505 = vunpack.c.l.b16 %v399
    %v1506 = vunpack.c.l.b16 %v400
    %v1507 = vunpack.c.l.b16 %v401
    %v1508 = vunpack.c.l.b16 %v402
    %v1509 = vunpack.c.l.b16 %v403
    %v1510 = vunpack.c.l.b16 %v404
    %v1511 = vunpack.c.l.b16 %v405
    %v1512 = vunpack.c.l.b16 %v406
    %v1513 = vunpack.c.l.b16 %v407
    %v1514 = vunpack.c.l.b16 %v408
    %v1515 = vunpack.c.l.b16 %v409
    %v1516 = vunpack.c.l.b16 %v410
    %v1517 = vunpack.c.l.b16 %v411
    %v1518 = vunpack.c.l.b16 %v412
    %v1519 = vunpack.c.l.b16 %v413
    %v1520 = vunpack.c.l.b16 %v414
    %v1521 = vunpack.c.l.b16 %v415
    %v1522 = vunpack.c.l.b16 %v416
    %v1523 = vunpack.c.l.b16 %v417
    %v1524 = vunpack.c.l.b16 %v418
    %v1525 = vunpack.c.l.b16 %v419
    %v1526 = vunpack.c.l.b16 %v420
    %v1527 = vunpack.c.l.b16 %v421
    %v1528 = vunpack.c.l.b16 %v422
    %v1529 = vunpack.c.l.b16 %v423
    %v1530 = vunpack.c.l.b16 %v424
    %v1531 = vunpack.c.l.b16 %v425
    %v1532 = vunpack.c.l.b16 %v426
    %v1533 = vunpack.c.l.b16 %v427
    %v1534 = vunpack.c.l.b16 %v428
    %v1535 = vunpack.c.l.b16 %v429
    %v1536 = vunpack.c.l.b16 %v430
    %v1537 = vunpack.c.l.b16 %v431
    %v1538 = vunpack.c.l.b16 %v432
    %v1539 = vunpack.c.l.b16 %v433
    %v1540 = vunpack.c.l.b16 %v434
    %v1541 = vunpack.c.l.b16 %v435
    %v1542 = vunpack.c.l.b16 %v436
    %v1543 = vunpack.c.l.b16 %v437
    %v1544 = vunpack.c.l.b16 %v438
    %v1545 = vunpack.c.l.b16 %v439
    %v1546 = vunpack.c.l.b16 %v440
    %v1547 = vunpack.c.l.b16 %v441
    %v1548 = vunpack.c.l.b16 %v442
    %v1549 = vunpack.c.l.b16 %v443
    %v1550 = vunpack.c.l.b16 %v444
    %v1551 = vunpack.c.l.b16 %v445
    %v1552 = vunpack.c.l.b16 %v446
    %v1553 = vunpack.c.l.b16 %v447
    %v1554 = vunpack.c.l.b16 %v448
    %v1555 = vunpack.c.l.b16 %v449
    %v1556 = vunpack.c.l.b16 %v450
    %v1557 = vunpack.c.l.b16 %v451
    %v1558 = vunpack.c.l.b16 %v452
    %v1559 = vunpack.c.l.b16 %v453
    %v1560 = vunpack.c.l.b16 %v454
    %v1561 = vunpack.c.l.b16 %v455
    %v1562 = vunpack.c.l.b16 %v456
    %v1563 = vunpack.c.l.b16 %v457
    %v1564 = vunpack.c.l.b16 %v458
    %v1565 = vunpack.c.l.b16 %v459
    %v1566 = vunpack.c.l.b16 %v460
    %v1567 = vunpack.c.l.b16 %v461
    %v1568 = vunpack.c.l.b16 %v462
    %v1569 = vunpack.c.l.b16 %v463
    %v1570 = vunpack.c.l.b16 %v464
    %v1571 = vunpack.c.l.b16 %v465
    %v1572 = vunpack.c.l.b16 %v466
    %v1573 = vunpack.c.l.b16 %v467
    %v1574 = vpack.c.b16 %v1127, %v1126
    %v1575 = vpack.c.b16 %v1129, %v1128
    %v1576 = vpack.c.b16 %v1131, %v1130
    %v1577 = vpack.c.b16 %v1133, %v1132
    %v1578 = vpack.c.b16 %v1135, %v1134
    %v1579 = vpack.c.b16 %v1137, %v1136
    %v1580 = vpack.c.b16 %v1139, %v1138
    %v1581 = vpack.c.b16 %v1141, %v1140
    %v1582 = vpack.c.b16 %v1143, %v1142
    %v1583 = vpack.c.b16 %v1145, %v1144
    %v1584 = vpack.c.b16 %v1147, %v1146
    %v1585 = vpack.c.b16 %v1149, %v1148
    %v1586 = vpack.c.b16 %v1151, %v1150
    %v1587 = vpack.c.b16 %v1153, %v1152
    %v1588 = vpack.c.b16 %v1155, %v1154
    %v1589 = vpack.c.b16 %v1157, %v1156
    %v1590 = vpack.c.b16 %v1159, %v1158
    %v1591 = vpack.c.b16 %v1161, %v1160
    %v1592 = vpack.c.b16 %v1163, %v1162
    %v1593 = vpack.c.b16 %v1165, %v1164
    %v1594 = vpack.c.b16 %v1167, %v1166
    %v1595 = vpack.c.b16 %v1169, %v1168
    %v1596 = vpack.c.b16 %v1171, %v1170
    %v1597 = vpack.c.b16 %v1173, %v1172
    %v1598 = vpack.c.b16 %v1175, %v1174
    %v1599 = vpack.c.b16 %v1177, %v1176
    %v1600 = vpack.c.b16 %v1179, %v1178
    %v1601 = vpack.c.b16 %v1181, %v1180
    %v1602 = vpack.c.b16 %v1183, %v1182
    %v1603 = vpack.c.b16 %v1185, %v1184
    %v1604 = vpack.c.b16 %v1187, %v1186
    %v1605 = vpack.c.b16 %v1189, %v1188
    %v1606 = vpack.c.b16 %v1191, %v1190
    %v1607 = vpack.c.b16 %v1193, %v1192
    %v1608 = vpack.c.b16 %v1195, %v1194
    %v1609 = vpack.c.b16 %v1197, %v1196
    %v1610 = vpack.c.b16 %v1199, %v1198
    %v1611 = vpack.c.b16 %v1201, %v1200
    %v1612 = vpack.c.b16 %v1203, %v1202
    %v1613 = vpack.c.b16 %v1205, %v1204
    %v1614 = vpack.c.b16 %v1207, %v1206
    %v1615 = vpack.c.b16 %v1209, %v1208
    %v1616 = vpack.c.b16 %v1211, %v1210
    %v1617 = vpack.c.b16 %v1213, %v1212
    %v1618 = vpack.c.b16 %v1215, %v1214
    %v1619 = vpack.c.b16 %v1217, %v1216
    %v1620 = vpack.c.b16 %v1219, %v1218
    %v1621 = vpack.c.b16 %v1221, %v1220
    %v1622 = vpack.c.b16 %v1223, %v1222
    %v1623 = vpack.c.b16 %v1225, %v1224
    %v1624 = vpack.c.b16 %v1227, %v1226
    %v1625 = vpack.c.b16 %v1229, %v1228
    %v1626 = vpack.c.b16 %v1231, %v1230
    %v1627 = vpack.c.b16 %v1233, %v1232
    %v1628 = vpack.c.b16 %v1235, %v1234
    %v1629 = vpack.c.b16 %v1237, %v1236
    %v1630 = vpack.c.b16 %v1239, %v1238
    %v1631 = vpack.c.b16 %v1241, %v1240
    %v1632 = vpack.c.b16 %v1243, %v1242
    %v1633 = vpack.c.b16 %v1245, %v1244
    %v1634 = vpack.c.b16 %v1247, %v1246
    %v1635 = vpack.c.b16 %v1249, %v1248
    %v1636 = vpack.c.b16 %v1251, %v1250
    %v1637 = vpack.c.b16 %v1253, %v1252
    %v1638 = vpack.c.b16 %v1255, %v1254
    %v1639 = vpack.c.b16 %v1257, %v1256
    %v1640 = vpack.c.b16 %v1259, %v1258
    %v1641 = vpack.c.b16 %v1261, %v1260
    %v1642 = vpack.c.b16 %v1263, %v1262
    %v1643 = vpack.c.b16 %v1265, %v1264
    %v1644 = vpack.c.b16 %v1267, %v1266
    %v1645 = vpack.c.b16 %v1269, %v1268
    %v1646 = vpack.c.b16 %v1271, %v1270
    %v1647 = vpack.c.b16 %v1273, %v1272
    %v1648 = vpack.c.b16 %v1275, %v1274
    %v1649 = vpack.c.b16 %v1277, %v1276
    %v1650 = vpack.c.b16 %v1279, %v1278
    %v1651 = vpack.c.b16 %v1281, %v1280
    %v1652 = vpack.c.b16 %v1283, %v1282
    %v1653 = vpack.c.b16 %v1285, %v1284
    %v1654 = vpack.c.b16 %v1287, %v1286
    %v1655 = vpack.c.b16 %v1289, %v1288
    %v1656 = vpack.c.b16 %v1291, %v1290
    %v1657 = vpack.c.b16 %v1293, %v1292
    %v1658 = vpack.c.b16 %v1295, %v1294
    %v1659 = vpack.c.b16 %v1297, %v1296
    %v1660 = vpack.c.b16 %v1299, %v1298
    %v1661 = vpack.c.b16 %v1301, %v1300
    %v1662 = vpack.c.b16 %v1303, %v1302
    %v1663 = vpack.c.b16 %v1305, %v1304
    %v1664 = vpack.c.b16 %v1307, %v1306
    %v1665 = vpack.c.b16 %v1309, %v1308
    %v1666 = vpack.c.b16 %v1311, %v1310
    %v1667 = vpack.c.b16 %v1313, %v1312
    %v1668 = vpack.c.b16 %v1315, %v1314
    %v1669 = vpack.c.b16 %v1317, %v1316
    %v1670 = vpack.c.b16 %v1319, %v1318
    %v1671 = vpack.c.b16 %v1321, %v1320
    %v1672 = vpack.c.b16 %v1323, %v1322
    %v1673 = vpack.c.b16 %v1325, %v1324
    %v1674 = vpack.c.b16 %v1327, %v1326
    %v1675 = vpack.c.b16 %v1329, %v1328
    %v1676 = vpack.c.b16 %v1331, %v1330
    %v1677 = vpack.c.b16 %v1333, %v1332
    %v1678 = vpack.c.b16 %v1335, %v1334
    %v1679 = vpack.c.b16 %v1337, %v1336
    %v1680 = vpack.c.b16 %v1339, %v1338
    %v1681 = vpack.c.b16 %v1341, %v1340
    %v1682 = vpack.c.b16 %v1343, %v1342
    %v1683 = vpack.c.b16 %v1345, %v1344
    %v1684 = vpack.c.b16 %v1347, %v1346
    %v1685 = vpack.c.b16 %v1349, %v1348
    %v1686 = vpack.c.b16 %v1351, %v1350
    %v1687 = vpack.c.b16 %v1353, %v1352
    %v1688 = vpack.c.b16 %v1355, %v1354
    %v1689 = vpack.c.b16 %v1357, %v1356
    %v1690 = vpack.c.b16 %v1359, %v1358
    %v1691 = vpack.c.b16 %v1361, %v1360
    %v1692 = vpack.c.b16 %v1363, %v1362
    %v1693 = vpack.c.b16 %v1365, %v1364
    %v1694 = vpack.c.b16 %v1367, %v1366
    %v1695 = vpack.c.b16 %v1369, %v1368
    %v1696 = vpack.c.b16 %v1371, %v1370
    %v1697 = vpack.c.b16 %v1373, %v1372
    %v1698 = vpack.c.b16 %v1375, %v1374
    %v1699 = vpack.c.b16 %v1377, %v1376
    %v1700 = vpack.c.b16 %v1379, %v1378
    %v1701 = vpack.c.b16 %v1381, %v1380
    %v1702 = vpack.c.b16 %v1383, %v1382
    %v1703 = vpack.c.b16 %v1385, %v1384
    %v1704 = vpack.c.b16 %v1387, %v1386
    %v1705 = vpack.c.b16 %v1389, %v1388
    %v1706 = vpack.c.b16 %v1391, %v1390
    %v1707 = vpack.c.b16 %v1393, %v1392
    %v1708 = vpack.c.b16 %v1395, %v1394
    %v1709 = vpack.c.b16 %v1397, %v1396
    %v1710 = vpack.c.b16 %v1399, %v1398
    %v1711 = vpack.c.b16 %v1401, %v1400
    %v1712 = vpack.c.b16 %v1403, %v1402
    %v1713 = vpack.c.b16 %v1405, %v1404
    %v1714 = vpack.c.b16 %v1407, %v1406
    %v1715 = vpack.c.b16 %v1409, %v1408
    %v1716 = vpack.c.b16 %v1411, %v1410
    %v1717 = vpack.c.b16 %v1413, %v1412
    %v1718 = vpack.c.b16 %v1415, %v1414
    %v1719 = vpack.c.b16 %v1417, %v1416
    %v1720 = vpack.c.b16 %v1419, %v1418
    %v1721 = vpack.c.b16 %v1421, %v1420
    %v1722 = vpack.c.b16 %v1423, %v1422
    %v1723 = vpack.c.b16 %v1425, %v1424
    %v1724 = vpack.c.b16 %v1427, %v1426
    %v1725 = vpack.c.b16 %v1429, %v1428
    %v1726 = vpack.c.b16 %v1431, %v1430
    %v1727 = vpack.c.b16 %v1433, %v1432
    %v1728 = vpack.c.b16 %v1435, %v1434
    %v1729 = vpack.c.b16 %v1437, %v1436
    %v1730 = vpack.c.b16 %v1439, %v1438
    %v1731 = vpack.c.b16 %v1441, %v1440
    %v1732 = vpack.c.b16 %v1443, %v1442
    %v1733 = vpack.c.b16 %v1445, %v1444
    %v1734 = vpack.c.b16 %v1447, %v1446
    %v1735 = vpack.c.b16 %v1449, %v1448
    %v1736 = vpack.c.b16 %v1451, %v1450
    %v1737 = vpack.c.b16 %v1453, %v1452
    %v1738 = vpack.c.b16 %v1455, %v1454
    %v1739 = vpack.c.b16 %v1457, %v1456
    %v1740 = vpack.c.b16 %v1459, %v1458
    %v1741 = vpack.c.b16 %v1461, %v1460
    %v1742 = vpack.c.b16 %v1463, %v1462
    %v1743 = vpack.c.b16 %v1465, %v1464
    %v1744 = vpack.c.b16 %v1467, %v1466
    %v1745 = vpack.c.b16 %v1469, %v1468
    %v1746 = vpack.c.b16 %v1471, %v1470
    %v1747 = vpack.c.b16 %v1473, %v1472
    %v1748 = vpack.c.b16 %v1475, %v1474
    %v1749 = vpack.c.b16 %v1477, %v1476
    %v1750 = vpack.c.b16 %v1479, %v1478
    %v1751 = vpack.c.b16 %v1481, %v1480
    %v1752 = vpack.c.b16 %v1483, %v1482
    %v1753 = vpack.c.b16 %v1485, %v1484
    %v1754 = vpack.c.b16 %v1487, %v1486
    %v1755 = vpack.c.b16 %v1489, %v1488
    %v1756 = vpack.c.b16 %v1491, %v1490
    %v1757 = vpack.c.b16 %v1493, %v1492
    %v1758 = vpack.c.b16 %v1495, %v1494
    %v1759 = vpack.c.b16 %v1497, %v1496
    %v1760 = vpack.c.b16 %v1499, %v1498
    %v1761 = vpack.c.b16 %v1501, %v1500
    %v1762 = vpack.c.b16 %v1503, %v1502
    %v1763 = vpack.c.b16 %v1505, %v1504
    %v1764 = vpack.c.b16 %v1507, %v1506
    %v1765 = vpack.c.b16 %v1509, %v1508
    %v1766 = vpack.c.b16 %v1511, %v1510
    %v1767 = vpack.c.b16 %v1513, %v1512
    %v1768 = vpack.c.b16 %v1515, %v1514
    %v1769 = vpack.c.b16 %v1517, %v1516
    %v1770 = vpack.c.b16 %v1519, %v1518
    %v1771 = vpack.c.b16 %v1521, %v1520
    %v1772 = vpack.c.b16 %v1523, %v1522
    %v1773 = vpack.c.b16 %v1525, %v1524
    %v1774 = vpack.c.b16 %v1527, %v1526
    %v1775 = vpack.c.b16 %v1529, %v1528
    %v1776 = vpack.c.b16 %v1531, %v1530
    %v1777 = vpack.c.b16 %v1533, %v1532
    %v1778 = vpack.c.b16 %v1535, %v1534
    %v1779 = vpack.c.b16 %v1537, %v1536
    %v1780 = vpack.c.b16 %v1539, %v1538
    %v1781 = vpack.c.b16 %v1541, %v1540
    %v1782 = vpack.c.b16 %v1543, %v1542
    %v1783 = vpack.c.b16 %v1545, %v1544
    %v1784 = vpack.c.b16 %v1547, %v1546
    %v1785 = vpack.c.b16 %v1549, %v1548
    %v1786 = vpack.c.b16 %v1551, %v1550
    %v1787 = vpack.c.b16 %v1553, %v1552
    %v1788 = vpack.c.b16 %v1555, %v1554
    %v1789 = vpack.c.b16 %v1557, %v1556
    %v1790 = vpack.c.b16 %v1559, %v1558
    %v1791 = vpack.c.b16 %v1561, %v1560
    %v1792 = vpack.c.b16 %v1563, %v1562
    %v1793 = vpack.c.b16 %v1565, %v1564
    %v1794 = vpack.c.b16 %v1567, %v1566
    %v1795 = vpack.c.b16 %v1569, %v1568
    %v1796 = vpack.c.b16 %v1571, %v1570
    %v1797 = vpack.c.b16 %v1573, %v1572
    %2022 = vmatprep.subr.bf16.mxu0 0
    %2023 = vmatpush1.bf16.msra.mxu0 %v1574
    %2024 = vmatprep.subr.bf16.mxu0 0
    %2025 = vmatpush1.bf16.msra.mxu0 %v1575
    %2026 = vmatprep.subr.bf16.mxu0 0
    %2027 = vmatpush1.bf16.msra.mxu0 %v1576
    %2028 = vmatprep.subr.bf16.mxu0 0
    %2029 = vmatpush1.bf16.msra.mxu0 %v1577
    %2030 = vmatprep.subr.bf16.mxu0 0
    %2031 = vmatpush1.bf16.msra.mxu0 %v1578
    %2032 = vmatprep.subr.bf16.mxu0 0
    %2033 = vmatpush1.bf16.msra.mxu0 %v1579
    %2034 = vmatprep.subr.bf16.mxu0 0
    %2035 = vmatpush1.bf16.msra.mxu0 %v1580
    %2036 = vmatprep.subr.bf16.mxu0 0
    %2037 = vmatpush1.bf16.msra.mxu0 %v1581
    %2038 = vmatprep.subr.bf16.mxu0 0
    %2039 = vmatpush1.bf16.msra.mxu0 %v1582
    %2040 = vmatprep.subr.bf16.mxu0 0
    %2041 = vmatpush1.bf16.msra.mxu0 %v1583
    %2042 = vmatprep.subr.bf16.mxu0 0
    %2043 = vmatpush1.bf16.msra.mxu0 %v1584
    %2044 = vmatprep.subr.bf16.mxu0 0
    %2045 = vmatpush1.bf16.msra.mxu0 %v1585
    %2046 = vmatprep.subr.bf16.mxu0 0
    %2047 = vmatpush1.bf16.msra.mxu0 %v1586
    %2048 = vmatprep.subr.bf16.mxu0 0
    %2049 = vmatpush1.bf16.msra.mxu0 %v1587
    %2050 = vmatprep.subr.bf16.mxu0 0
    %2051 = vmatpush1.bf16.msra.mxu0 %v1588
    %2052 = vmatprep.subr.bf16.mxu0 0
    %2053 = vmatpush1.bf16.msra.mxu0 %v1589
    %2054 = vmatprep.mubr.bf16.mxu0 %v516
    %2055 = vmatmul.mubr.bf16.gmra.mrb[0].mxu0 %v502
    %v2056 = vpop.f32.mrb[0].mxu0
    %v2057 = vadd.f32 %v473, %v2056
    %v2058 = vpop.f32.mrb[0].mxu0
    %v2059 = vpop.f32.mrb[0].mxu0
    %v2060 = vpop.f32.mrb[0].mxu0
    %2061 = vdwg.mxu0
    %2062 = vmatprep.subr.bf16.mxu0 0
    %2063 = vmatpush1.bf16.msra.mxu0 %v1590
    %2064 = vmatprep.subr.bf16.mxu0 0
    %2065 = vmatpush1.bf16.msra.mxu0 %v1591
    %2066 = vmatprep.subr.bf16.mxu0 0
    %2067 = vmatpush1.bf16.msra.mxu0 %v1592
    %2068 = vmatprep.subr.bf16.mxu0 0
    %2069 = vmatpush1.bf16.msra.mxu0 %v1593
    %2070 = vmatprep.subr.bf16.mxu0 0
    %2071 = vmatpush1.bf16.msra.mxu0 %v1594
    %2072 = vmatprep.subr.bf16.mxu0 0
    %2073 = vmatpush1.bf16.msra.mxu0 %v1595
    %2074 = vmatprep.subr.bf16.mxu0 0
    %2075 = vmatpush1.bf16.msra.mxu0 %v1596
    %2076 = vmatprep.subr.bf16.mxu0 0
    %2077 = vmatpush1.bf16.msra.mxu0 %v1597
    %2078 = vmatprep.subr.bf16.mxu0 0
    %2079 = vmatpush1.bf16.msra.mxu0 %v1598
    %2080 = vmatprep.subr.bf16.mxu0 0
    %2081 = vmatpush1.bf16.msra.mxu0 %v1599
    %2082 = vmatprep.subr.bf16.mxu0 0
    %2083 = vmatpush1.bf16.msra.mxu0 %v1600
    %2084 = vmatprep.subr.bf16.mxu0 0
    %2085 = vmatpush1.bf16.msra.mxu0 %v1601
    %2086 = vmatprep.subr.bf16.mxu0 0
    %2087 = vmatpush1.bf16.msra.mxu0 %v1602
    %2088 = vmatprep.subr.bf16.mxu0 0
    %2089 = vmatpush1.bf16.msra.mxu0 %v1603
    %2090 = vmatprep.subr.bf16.mxu0 0
    %2091 = vmatpush1.bf16.msra.mxu0 %v1604
    %2092 = vmatprep.subr.bf16.mxu0 0
    %2093 = vmatpush1.bf16.msra.mxu0 %v1605
    %2094 = vmatprep.mubr.bf16.mxu0 %v526
    %2095 = vmatmul.mubr.bf16.gmra.mrb[0].mxu0 %v524
    %v2096 = vpop.f32.mrb[0].mxu0
    %v2097 = vadd.f32 %v2057, %v2096
    %v2098 = vpop.f32.mrb[0].mxu0
    %v2099 = vpop.f32.mrb[0].mxu0
    %v2100 = vpop.f32.mrb[0].mxu0
    %2101 = vdwg.mxu0
    %2102 = vmatprep.subr.bf16.mxu0 0
    %2103 = vmatpush1.bf16.msra.mxu0 %v1606
    %2104 = vmatprep.subr.bf16.mxu0 0
    %2105 = vmatpush1.bf16.msra.mxu0 %v1607
    %2106 = vmatprep.subr.bf16.mxu0 0
    %2107 = vmatpush1.bf16.msra.mxu0 %v1608
    %2108 = vmatprep.subr.bf16.mxu0 0
    %2109 = vmatpush1.bf16.msra.mxu0 %v1609
    %2110 = vmatprep.subr.bf16.mxu0 0
    %2111 = vmatpush1.bf16.msra.mxu0 %v1610
    %2112 = vmatprep.subr.bf16.mxu0 0
    %2113 = vmatpush1.bf16.msra.mxu0 %v1611
    %2114 = vmatprep.subr.bf16.mxu0 0
    %2115 = vmatpush1.bf16.msra.mxu0 %v1612
    %2116 = vmatprep.subr.bf16.mxu0 0
    %2117 = vmatpush1.bf16.msra.mxu0 %v1613
    %2118 = vmatprep.subr.bf16.mxu0 0
    %2119 = vmatpush1.bf16.msra.mxu0 %v1614
    %2120 = vmatprep.subr.bf16.mxu0 0
    %2121 = vmatpush1.bf16.msra.mxu0 %v1615
    %2122 = vmatprep.subr.bf16.mxu0 0
    %2123 = vmatpush1.bf16.msra.mxu0 %v1616
    %2124 = vmatprep.subr.bf16.mxu0 0
    %2125 = vmatpush1.bf16.msra.mxu0 %v1617
    %2126 = vmatprep.subr.bf16.mxu0 0
    %2127 = vmatpush1.bf16.msra.mxu0 %v1618
    %2128 = vmatprep.subr.bf16.mxu0 0
    %2129 = vmatpush1.bf16.msra.mxu0 %v1619
    %2130 = vmatprep.subr.bf16.mxu0 0
    %2131 = vmatpush1.bf16.msra.mxu0 %v1620
    %2132 = vmatprep.subr.bf16.mxu0 0
    %2133 = vmatpush1.bf16.msra.mxu0 %v1621
    %2134 = vmatprep.mubr.bf16.mxu0 %v523
    %2135 = vmatmul.mubr.bf16.gmra.mrb[0].mxu0 %v509
    %v2136 = vpop.f32.mrb[0].mxu0
    %v2137 = vadd.f32 %v2097, %v2136
    %v2138 = vpop.f32.mrb[0].mxu0
    %v2139 = vpop.f32.mrb[0].mxu0
    %v2140 = vpop.f32.mrb[0].mxu0
    %2141 = vdwg.mxu0
    %2142 = vmatprep.subr.bf16.mxu0 0
    %2143 = vmatpush1.bf16.msra.mxu0 %v1622
    %2144 = vmatprep.subr.bf16.mxu0 0
    %2145 = vmatpush1.bf16.msra.mxu0 %v1623
    %2146 = vmatprep.subr.bf16.mxu0 0
    %2147 = vmatpush1.bf16.msra.mxu0 %v1624
    %2148 = vmatprep.subr.bf16.mxu0 0
    %2149 = vmatpush1.bf16.msra.mxu0 %v1625
    %2150 = vmatprep.subr.bf16.mxu0 0
    %2151 = vmatpush1.bf16.msra.mxu0 %v1626
    %2152 = vmatprep.subr.bf16.mxu0 0
    %2153 = vmatpush1.bf16.msra.mxu0 %v1627
    %2154 = vmatprep.subr.bf16.mxu0 0
    %2155 = vmatpush1.bf16.msra.mxu0 %v1628
    %2156 = vmatprep.subr.bf16.mxu0 0
    %2157 = vmatpush1.bf16.msra.mxu0 %v1629
    %2158 = vmatprep.subr.bf16.mxu0 0
    %2159 = vmatpush1.bf16.msra.mxu0 %v1630
    %2160 = vmatprep.subr.bf16.mxu0 0
    %2161 = vmatpush1.bf16.msra.mxu0 %v1631
    %2162 = vmatprep.subr.bf16.mxu0 0
    %2163 = vmatpush1.bf16.msra.mxu0 %v1632
    %2164 = vmatprep.subr.bf16.mxu0 0
    %2165 = vmatpush1.bf16.msra.mxu0 %v1633
    %2166 = vmatprep.subr.bf16.mxu0 0
    %2167 = vmatpush1.bf16.msra.mxu0 %v1634
    %2168 = vmatprep.subr.bf16.mxu0 0
    %2169 = vmatpush1.bf16.msra.mxu0 %v1635
    %2170 = vmatprep.subr.bf16.mxu0 0
    %2171 = vmatpush1.bf16.msra.mxu0 %v1636
    %2172 = vmatprep.subr.bf16.mxu0 0
    %2173 = vmatpush1.bf16.msra.mxu0 %v1637
    %2174 = vmatprep.mubr.bf16.mxu0 %v527
    %2175 = vmatmul.mubr.bf16.gmra.mrb[0].mxu0 %v525
    %v2176 = vpop.f32.mrb[0].mxu0
    %v2177 = vadd.f32 %v2137, %v2176
    %v2178 = vpop.f32.mrb[0].mxu0
    %v2179 = vpop.f32.mrb[0].mxu0
    %v2180 = vpop.f32.mrb[0].mxu0
    %2181 = vdwg.mxu0
    %2182 = vmatprep.subr.bf16.mxu0 0
    %2183 = vmatpush1.bf16.msra.mxu0 %v1638
    %2184 = vmatprep.subr.bf16.mxu0 0
    %2185 = vmatpush1.bf16.msra.mxu0 %v1639
    %2186 = vmatprep.subr.bf16.mxu0 0
    %2187 = vmatpush1.bf16.msra.mxu0 %v1640
    %2188 = vmatprep.subr.bf16.mxu0 0
    %2189 = vmatpush1.bf16.msra.mxu0 %v1641
    %2190 = vmatprep.subr.bf16.mxu0 0
    %2191 = vmatpush1.bf16.msra.mxu0 %v1642
    %2192 = vmatprep.subr.bf16.mxu0 0
    %2193 = vmatpush1.bf16.msra.mxu0 %v1643
    %2194 = vmatprep.subr.bf16.mxu0 0
    %2195 = vmatpush1.bf16.msra.mxu0 %v1644
    %2196 = vmatprep.subr.bf16.mxu0 0
    %2197 = vmatpush1.bf16.msra.mxu0 %v1645
    %2198 = vmatprep.subr.bf16.mxu0 0
    %2199 = vmatpush1.bf16.msra.mxu0 %v1646
    %2200 = vmatprep.subr.bf16.mxu0 0
    %2201 = vmatpush1.bf16.msra.mxu0 %v1647
    %2202 = vmatprep.subr.bf16.mxu0 0
    %2203 = vmatpush1.bf16.msra.mxu0 %v1648
    %2204 = vmatprep.subr.bf16.mxu0 0
    %2205 = vmatpush1.bf16.msra.mxu0 %v1649
    %2206 = vmatprep.subr.bf16.mxu0 0
    %2207 = vmatpush1.bf16.msra.mxu0 %v1650
    %2208 = vmatprep.subr.bf16.mxu0 0
    %2209 = vmatpush1.bf16.msra.mxu0 %v1651
    %2210 = vmatprep.subr.bf16.mxu0 0
    %2211 = vmatpush1.bf16.msra.mxu0 %v1652
    %2212 = vmatprep.subr.bf16.mxu0 0
    %2213 = vmatpush1.bf16.msra.mxu0 %v1653
    %2214 = vmatprep.mubr.bf16.mxu0 %v565
    %2215 = vmatmul.mubr.bf16.gmra.mrb[0].mxu0 %v551
    %v2216 = vpop.f32.mrb[0].mxu0
    %v2217 = vadd.f32 %v2177, %v2216
    %v2218 = vpop.f32.mrb[0].mxu0
    %v2219 = vpop.f32.mrb[0].mxu0
    %v2220 = vpop.f32.mrb[0].mxu0
    %2221 = vdwg.mxu0
    %2222 = vmatprep.subr.bf16.mxu0 0
    %2223 = vmatpush1.bf16.msra.mxu0 %v1654
    %2224 = vmatprep.subr.bf16.mxu0 0
    %2225 = vmatpush1.bf16.msra.mxu0 %v1655
    %2226 = vmatprep.subr.bf16.mxu0 0
    %2227 = vmatpush1.bf16.msra.mxu0 %v1656
    %2228 = vmatprep.subr.bf16.mxu0 0
    %2229 = vmatpush1.bf16.msra.mxu0 %v1657
    %2230 = vmatprep.subr.bf16.mxu0 0
    %2231 = vmatpush1.bf16.msra.mxu0 %v1658
    %2232 = vmatprep.subr.bf16.mxu0 0
    %2233 = vmatpush1.bf16.msra.mxu0 %v1659
    %2234 = vmatprep.subr.bf16.mxu0 0
    %2235 = vmatpush1.bf16.msra.mxu0 %v1660
    %2236 = vmatprep.subr.bf16.mxu0 0
    %2237 = vmatpush1.bf16.msra.mxu0 %v1661
    %2238 = vmatprep.subr.bf16.mxu0 0
    %2239 = vmatpush1.bf16.msra.mxu0 %v1662
    %2240 = vmatprep.subr.bf16.mxu0 0
    %2241 = vmatpush1.bf16.msra.mxu0 %v1663
    %2242 = vmatprep.subr.bf16.mxu0 0
    %2243 = vmatpush1.bf16.msra.mxu0 %v1664
    %2244 = vmatprep.subr.bf16.mxu0 0
    %2245 = vmatpush1.bf16.msra.mxu0 %v1665
    %2246 = vmatprep.subr.bf16.mxu0 0
    %2247 = vmatpush1.bf16.msra.mxu0 %v1666
    %2248 = vmatprep.subr.bf16.mxu0 0
    %2249 = vmatpush1.bf16.msra.mxu0 %v1667
    %2250 = vmatprep.subr.bf16.mxu0 0
    %2251 = vmatpush1.bf16.msra.mxu0 %v1668
    %2252 = vmatprep.subr.bf16.mxu0 0
    %2253 = vmatpush1.bf16.msra.mxu0 %v1669
    %2254 = vmatprep.mubr.bf16.mxu0 %v575
    %2255 = vmatmul.mubr.bf16.gmra.mrb[0].mxu0 %v573
    %v2256 = vpop.f32.mrb[0].mxu0
    %v2257 = vadd.f32 %v2217, %v2256
    %v2258 = vpop.f32.mrb[0].mxu0
    %v2259 = vpop.f32.mrb[0].mxu0
    %v2260 = vpop.f32.mrb[0].mxu0
    %2261 = vdwg.mxu0
    %2262 = vmatprep.subr.bf16.mxu0 0
    %2263 = vmatpush1.bf16.msra.mxu0 %v1670
    %2264 = vmatprep.subr.bf16.mxu0 0
    %2265 = vmatpush1.bf16.msra.mxu0 %v1671
    %2266 = vmatprep.subr.bf16.mxu0 0
    %2267 = vmatpush1.bf16.msra.mxu0 %v1672
    %2268 = vmatprep.subr.bf16.mxu0 0
    %2269 = vmatpush1.bf16.msra.mxu0 %v1673
    %2270 = vmatprep.subr.bf16.mxu0 0
    %2271 = vmatpush1.bf16.msra.mxu0 %v1674
    %2272 = vmatprep.subr.bf16.mxu0 0
    %2273 = vmatpush1.bf16.msra.mxu0 %v1675
    %2274 = vmatprep.subr.bf16.mxu0 0
    %2275 = vmatpush1.bf16.msra.mxu0 %v1676
    %2276 = vmatprep.subr.bf16.mxu0 0
    %2277 = vmatpush1.bf16.msra.mxu0 %v1677
    %2278 = vmatprep.subr.bf16.mxu0 0
    %2279 = vmatpush1.bf16.msra.mxu0 %v1678
    %2280 = vmatprep.subr.bf16.mxu0 0
    %2281 = vmatpush1.bf16.msra.mxu0 %v1679
    %2282 = vmatprep.subr.bf16.mxu0 0
    %2283 = vmatpush1.bf16.msra.mxu0 %v1680
    %2284 = vmatprep.subr.bf16.mxu0 0
    %2285 = vmatpush1.bf16.msra.mxu0 %v1681
    %2286 = vmatprep.subr.bf16.mxu0 0
    %2287 = vmatpush1.bf16.msra.mxu0 %v1682
    %2288 = vmatprep.subr.bf16.mxu0 0
    %2289 = vmatpush1.bf16.msra.mxu0 %v1683
    %2290 = vmatprep.subr.bf16.mxu0 0
    %2291 = vmatpush1.bf16.msra.mxu0 %v1684
    %2292 = vmatprep.subr.bf16.mxu0 0
    %2293 = vmatpush1.bf16.msra.mxu0 %v1685
    %2294 = vmatprep.mubr.bf16.mxu0 %v572
    %2295 = vmatmul.mubr.bf16.gmra.mrb[0].mxu0 %v558
    %v2296 = vpop.f32.mrb[0].mxu0
    %v2297 = vadd.f32 %v2257, %v2296
    %v2298 = vpop.f32.mrb[0].mxu0
    %v2299 = vpop.f32.mrb[0].mxu0
    %v2300 = vpop.f32.mrb[0].mxu0
    %2301 = vdwg.mxu0
    %2302 = vmatprep.subr.bf16.mxu0 0
    %2303 = vmatpush1.bf16.msra.mxu0 %v1686
    %2304 = vmatprep.subr.bf16.mxu0 0
    %2305 = vmatpush1.bf16.msra.mxu0 %v1687
    %2306 = vmatprep.subr.bf16.mxu0 0
    %2307 = vmatpush1.bf16.msra.mxu0 %v1688
    %2308 = vmatprep.subr.bf16.mxu0 0
    %2309 = vmatpush1.bf16.msra.mxu0 %v1689
    %2310 = vmatprep.subr.bf16.mxu0 0
    %2311 = vmatpush1.bf16.msra.mxu0 %v1690
    %2312 = vmatprep.subr.bf16.mxu0 0
    %2313 = vmatpush1.bf16.msra.mxu0 %v1691
    %2314 = vmatprep.subr.bf16.mxu0 0
    %2315 = vmatpush1.bf16.msra.mxu0 %v1692
    %2316 = vmatprep.subr.bf16.mxu0 0
    %2317 = vmatpush1.bf16.msra.mxu0 %v1693
    %2318 = vmatprep.subr.bf16.mxu0 0
    %2319 = vmatpush1.bf16.msra.mxu0 %v1694
    %2320 = vmatprep.subr.bf16.mxu0 0
    %2321 = vmatpush1.bf16.msra.mxu0 %v1695
    %2322 = vmatprep.subr.bf16.mxu0 0
    %2323 = vmatpush1.bf16.msra.mxu0 %v1696
    %2324 = vmatprep.subr.bf16.mxu0 0
    %2325 = vmatpush1.bf16.msra.mxu0 %v1697
    %2326 = vmatprep.subr.bf16.mxu0 0
    %2327 = vmatpush1.bf16.msra.mxu0 %v1698
    %2328 = vmatprep.subr.bf16.mxu0 0
    %2329 = vmatpush1.bf16.msra.mxu0 %v1699
    %2330 = vmatprep.subr.bf16.mxu0 0
    %2331 = vmatpush1.bf16.msra.mxu0 %v1700
    %2332 = vmatprep.subr.bf16.mxu0 0
    %2333 = vmatpush1.bf16.msra.mxu0 %v1701
    %2334 = vmatprep.mubr.bf16.mxu0 %v576
    %2335 = vmatmul.mubr.bf16.gmra.mrb[0].mxu0 %v574
    %v2336 = vpop.f32.mrb[0].mxu0
    %v2337 = vadd.f32 %v2297, %v2336
    %v2338 = vpop.f32.mrb[0].mxu0
    %v2339 = vpop.f32.mrb[0].mxu0
    %v2340 = vpop.f32.mrb[0].mxu0
    %2341 = vdwg.mxu0
    %2342 = vmatprep.subr.bf16.mxu0 0
    %2343 = vmatpush1.bf16.msra.mxu0 %v1702
    %2344 = vmatprep.subr.bf16.mxu0 0
    %2345 = vmatpush1.bf16.msra.mxu0 %v1703
    %2346 = vmatprep.subr.bf16.mxu0 0
    %2347 = vmatpush1.bf16.msra.mxu0 %v1704
    %2348 = vmatprep.subr.bf16.mxu0 0
    %2349 = vmatpush1.bf16.msra.mxu0 %v1705
    %2350 = vmatprep.subr.bf16.mxu0 0
    %2351 = vmatpush1.bf16.msra.mxu0 %v1706
    %2352 = vmatprep.subr.bf16.mxu0 0
    %2353 = vmatpush1.bf16.msra.mxu0 %v1707
    %2354 = vmatprep.subr.bf16.mxu0 0
    %2355 = vmatpush1.bf16.msra.mxu0 %v1708
    %2356 = vmatprep.subr.bf16.mxu0 0
    %2357 = vmatpush1.bf16.msra.mxu0 %v1709
    %2358 = vmatprep.subr.bf16.mxu0 0
    %2359 = vmatpush1.bf16.msra.mxu0 %v1710
    %2360 = vmatprep.subr.bf16.mxu0 0
    %2361 = vmatpush1.bf16.msra.mxu0 %v1711
    %2362 = vmatprep.subr.bf16.mxu0 0
    %2363 = vmatpush1.bf16.msra.mxu0 %v1712
    %2364 = vmatprep.subr.bf16.mxu0 0
    %2365 = vmatpush1.bf16.msra.mxu0 %v1713
    %2366 = vmatprep.subr.bf16.mxu0 0
    %2367 = vmatpush1.bf16.msra.mxu0 %v1714
    %2368 = vmatprep.subr.bf16.mxu0 0
    %2369 = vmatpush1.bf16.msra.mxu0 %v1715
    %2370 = vmatprep.subr.bf16.mxu0 0
    %2371 = vmatpush1.bf16.msra.mxu0 %v1716
    %2372 = vmatprep.subr.bf16.mxu0 0
    %2373 = vmatpush1.bf16.msra.mxu0 %v1717
    %2374 = vmatprep.mubr.bf16.mxu0 %v614
    %2375 = vmatmul.mubr.bf16.gmra.mrb[0].mxu0 %v600
    %v2376 = vpop.f32.mrb[0].mxu0
    %v2377 = vadd.f32 %v2337, %v2376
    %v2378 = vpop.f32.mrb[0].mxu0
    %v2379 = vpop.f32.mrb[0].mxu0
    %v2380 = vpop.f32.mrb[0].mxu0
    %2381 = vdwg.mxu0
    %2382 = vmatprep.subr.bf16.mxu0 0
    %2383 = vmatpush1.bf16.msra.mxu0 %v1718
    %2384 = vmatprep.subr.bf16.mxu0 0
    %2385 = vmatpush1.bf16.msra.mxu0 %v1719
    %2386 = vmatprep.subr.bf16.mxu0 0
    %2387 = vmatpush1.bf16.msra.mxu0 %v1720
    %2388 = vmatprep.subr.bf16.mxu0 0
    %2389 = vmatpush1.bf16.msra.mxu0 %v1721
    %2390 = vmatprep.subr.bf16.mxu0 0
    %2391 = vmatpush1.bf16.msra.mxu0 %v1722
    %2392 = vmatprep.subr.bf16.mxu0 0
    %2393 = vmatpush1.bf16.msra.mxu0 %v1723
    %2394 = vmatprep.subr.bf16.mxu0 0
    %2395 = vmatpush1.bf16.msra.mxu0 %v1724
    %2396 = vmatprep.subr.bf16.mxu0 0
    %2397 = vmatpush1.bf16.msra.mxu0 %v1725
    %2398 = vmatprep.subr.bf16.mxu0 0
    %2399 = vmatpush1.bf16.msra.mxu0 %v1726
    %2400 = vmatprep.subr.bf16.mxu0 0
    %2401 = vmatpush1.bf16.msra.mxu0 %v1727
    %2402 = vmatprep.subr.bf16.mxu0 0
    %2403 = vmatpush1.bf16.msra.mxu0 %v1728
    %2404 = vmatprep.subr.bf16.mxu0 0
    %2405 = vmatpush1.bf16.msra.mxu0 %v1729
    %2406 = vmatprep.subr.bf16.mxu0 0
    %2407 = vmatpush1.bf16.msra.mxu0 %v1730
    %2408 = vmatprep.subr.bf16.mxu0 0
    %2409 = vmatpush1.bf16.msra.mxu0 %v1731
    %2410 = vmatprep.subr.bf16.mxu0 0
    %2411 = vmatpush1.bf16.msra.mxu0 %v1732
    %2412 = vmatprep.subr.bf16.mxu0 0
    %2413 = vmatpush1.bf16.msra.mxu0 %v1733
    %2414 = vmatprep.mubr.bf16.mxu0 %v624
    %2415 = vmatmul.mubr.bf16.gmra.mrb[0].mxu0 %v622
    %v2416 = vpop.f32.mrb[0].mxu0
    %v2417 = vadd.f32 %v2377, %v2416
    %v2418 = vpop.f32.mrb[0].mxu0
    %v2419 = vpop.f32.mrb[0].mxu0
    %v2420 = vpop.f32.mrb[0].mxu0
    %2421 = vdwg.mxu0
    %2422 = vmatprep.subr.bf16.mxu0 0
    %2423 = vmatpush1.bf16.msra.mxu0 %v1734
    %2424 = vmatprep.subr.bf16.mxu0 0
    %2425 = vmatpush1.bf16.msra.mxu0 %v1735
    %2426 = vmatprep.subr.bf16.mxu0 0
    %2427 = vmatpush1.bf16.msra.mxu0 %v1736
    %2428 = vmatprep.subr.bf16.mxu0 0
    %2429 = vmatpush1.bf16.msra.mxu0 %v1737
    %2430 = vmatprep.subr.bf16.mxu0 0
    %2431 = vmatpush1.bf16.msra.mxu0 %v1738
    %2432 = vmatprep.subr.bf16.mxu0 0
    %2433 = vmatpush1.bf16.msra.mxu0 %v1739
    %2434 = vmatprep.subr.bf16.mxu0 0
    %2435 = vmatpush1.bf16.msra.mxu0 %v1740
    %2436 = vmatprep.subr.bf16.mxu0 0
    %2437 = vmatpush1.bf16.msra.mxu0 %v1741
    %2438 = vmatprep.subr.bf16.mxu0 0
    %2439 = vmatpush1.bf16.msra.mxu0 %v1742
    %2440 = vmatprep.subr.bf16.mxu0 0
    %2441 = vmatpush1.bf16.msra.mxu0 %v1743
    %2442 = vmatprep.subr.bf16.mxu0 0
    %2443 = vmatpush1.bf16.msra.mxu0 %v1744
    %2444 = vmatprep.subr.bf16.mxu0 0
    %2445 = vmatpush1.bf16.msra.mxu0 %v1745
    %2446 = vmatprep.subr.bf16.mxu0 0
    %2447 = vmatpush1.bf16.msra.mxu0 %v1746
    %2448 = vmatprep.subr.bf16.mxu0 0
    %2449 = vmatpush1.bf16.msra.mxu0 %v1747
    %2450 = vmatprep.subr.bf16.mxu0 0
    %2451 = vmatpush1.bf16.msra.mxu0 %v1748
    %2452 = vmatprep.subr.bf16.mxu0 0
    %2453 = vmatpush1.bf16.msra.mxu0 %v1749
    %2454 = vmatprep.mubr.bf16.mxu0 %v621
    %2455 = vmatmul.mubr.bf16.gmra.mrb[0].mxu0 %v607
    %v2456 = vpop.f32.mrb[0].mxu0
    %v2457 = vadd.f32 %v2417, %v2456
    %v2458 = vpop.f32.mrb[0].mxu0
    %v2459 = vpop.f32.mrb[0].mxu0
    %v2460 = vpop.f32.mrb[0].mxu0
    %2461 = vdwg.mxu0
    %2462 = vmatprep.subr.bf16.mxu0 0
    %2463 = vmatpush1.bf16.msra.mxu0 %v1750
    %2464 = vmatprep.subr.bf16.mxu0 0
    %2465 = vmatpush1.bf16.msra.mxu0 %v1751
    %2466 = vmatprep.subr.bf16.mxu0 0
    %2467 = vmatpush1.bf16.msra.mxu0 %v1752
    %2468 = vmatprep.subr.bf16.mxu0 0
    %2469 = vmatpush1.bf16.msra.mxu0 %v1753
    %2470 = vmatprep.subr.bf16.mxu0 0
    %2471 = vmatpush1.bf16.msra.mxu0 %v1754
    %2472 = vmatprep.subr.bf16.mxu0 0
    %2473 = vmatpush1.bf16.msra.mxu0 %v1755
    %2474 = vmatprep.subr.bf16.mxu0 0
    %2475 = vmatpush1.bf16.msra.mxu0 %v1756
    %2476 = vmatprep.subr.bf16.mxu0 0
    %2477 = vmatpush1.bf16.msra.mxu0 %v1757
    %2478 = vmatprep.subr.bf16.mxu0 0
    %2479 = vmatpush1.bf16.msra.mxu0 %v1758
    %2480 = vmatprep.subr.bf16.mxu0 0
    %2481 = vmatpush1.bf16.msra.mxu0 %v1759
    %2482 = vmatprep.subr.bf16.mxu0 0
    %2483 = vmatpush1.bf16.msra.mxu0 %v1760
    %2484 = vmatprep.subr.bf16.mxu0 0
    %2485 = vmatpush1.bf16.msra.mxu0 %v1761
    %2486 = vmatprep.subr.bf16.mxu0 0
    %2487 = vmatpush1.bf16.msra.mxu0 %v1762
    %2488 = vmatprep.subr.bf16.mxu0 0
    %2489 = vmatpush1.bf16.msra.mxu0 %v1763
    %2490 = vmatprep.subr.bf16.mxu0 0
    %2491 = vmatpush1.bf16.msra.mxu0 %v1764
    %2492 = vmatprep.subr.bf16.mxu0 0
    %2493 = vmatpush1.bf16.msra.mxu0 %v1765
    %2494 = vmatprep.mubr.bf16.mxu0 %v625
    %2495 = vmatmul.mubr.bf16.gmra.mrb[0].mxu0 %v623
    %v2496 = vpop.f32.mrb[0].mxu0
    %v2497 = vadd.f32 %v2457, %v2496
    %v2498 = vpop.f32.mrb[0].mxu0
    %v2499 = vpop.f32.mrb[0].mxu0
    %v2500 = vpop.f32.mrb[0].mxu0
    %2501 = vdwg.mxu0
    %2502 = vmatprep.subr.bf16.mxu0 0
    %2503 = vmatpush1.bf16.msra.mxu0 %v1766
    %2504 = vmatprep.subr.bf16.mxu0 0
    %2505 = vmatpush1.bf16.msra.mxu0 %v1767
    %2506 = vmatprep.subr.bf16.mxu0 0
    %2507 = vmatpush1.bf16.msra.mxu0 %v1768
    %2508 = vmatprep.subr.bf16.mxu0 0
    %2509 = vmatpush1.bf16.msra.mxu0 %v1769
    %2510 = vmatprep.subr.bf16.mxu0 0
    %2511 = vmatpush1.bf16.msra.mxu0 %v1770
    %2512 = vmatprep.subr.bf16.mxu0 0
    %2513 = vmatpush1.bf16.msra.mxu0 %v1771
    %2514 = vmatprep.subr.bf16.mxu0 0
    %2515 = vmatpush1.bf16.msra.mxu0 %v1772
    %2516 = vmatprep.subr.bf16.mxu0 0
    %2517 = vmatpush1.bf16.msra.mxu0 %v1773
    %2518 = vmatprep.subr.bf16.mxu0 0
    %2519 = vmatpush1.bf16.msra.mxu0 %v1774
    %2520 = vmatprep.subr.bf16.mxu0 0
    %2521 = vmatpush1.bf16.msra.mxu0 %v1775
    %2522 = vmatprep.subr.bf16.mxu0 0
    %2523 = vmatpush1.bf16.msra.mxu0 %v1776
    %2524 = vmatprep.subr.bf16.mxu0 0
    %2525 = vmatpush1.bf16.msra.mxu0 %v1777
    %2526 = vmatprep.subr.bf16.mxu0 0
    %2527 = vmatpush1.bf16.msra.mxu0 %v1778
    %2528 = vmatprep.subr.bf16.mxu0 0
    %2529 = vmatpush1.bf16.msra.mxu0 %v1779
    %2530 = vmatprep.subr.bf16.mxu0 0
    %2531 = vmatpush1.bf16.msra.mxu0 %v1780
    %2532 = vmatprep.subr.bf16.mxu0 0
    %2533 = vmatpush1.bf16.msra.mxu0 %v1781
    %2534 = vmatprep.mubr.bf16.mxu0 %v647
    %2535 = vmatmul.mubr.bf16.gmra.mrb[0].mxu0 %v640
    %v2536 = vpop.f32.mrb[0].mxu0
    %v2537 = vadd.f32 %v2497, %v2536
    %v2538 = vpop.f32.mrb[0].mxu0
    %v2539 = vpop.f32.mrb[0].mxu0
    %v2540 = vpop.f32.mrb[0].mxu0
    %2541 = vdwg.mxu0
    %2542 = vmatprep.subr.bf16.mxu0 0
    %2543 = vmatpush1.bf16.msra.mxu0 %v1782
    %2544 = vmatprep.subr.bf16.mxu0 0
    %2545 = vmatpush1.bf16.msra.mxu0 %v1783
    %2546 = vmatprep.subr.bf16.mxu0 0
    %2547 = vmatpush1.bf16.msra.mxu0 %v1784
    %2548 = vmatprep.subr.bf16.mxu0 0
    %2549 = vmatpush1.bf16.msra.mxu0 %v1785
    %2550 = vmatprep.subr.bf16.mxu0 0
    %2551 = vmatpush1.bf16.msra.mxu0 %v1786
    %2552 = vmatprep.subr.bf16.mxu0 0
    %2553 = vmatpush1.bf16.msra.mxu0 %v1787
    %2554 = vmatprep.subr.bf16.mxu0 0
    %2555 = vmatpush1.bf16.msra.mxu0 %v1788
    %2556 = vmatprep.subr.bf16.mxu0 0
    %2557 = vmatpush1.bf16.msra.mxu0 %v1789
    %2558 = vmatprep.subr.bf16.mxu0 0
    %2559 = vmatpush1.bf16.msra.mxu0 %v1790
    %2560 = vmatprep.subr.bf16.mxu0 0
    %2561 = vmatpush1.bf16.msra.mxu0 %v1791
    %2562 = vmatprep.subr.bf16.mxu0 0
    %2563 = vmatpush1.bf16.msra.mxu0 %v1792
    %2564 = vmatprep.subr.bf16.mxu0 0
    %2565 = vmatpush1.bf16.msra.mxu0 %v1793
    %2566 = vmatprep.subr.bf16.mxu0 0
    %2567 = vmatpush1.bf16.msra.mxu0 %v1794
    %2568 = vmatprep.subr.bf16.mxu0 0
    %2569 = vmatpush1.bf16.msra.mxu0 %v1795
    %2570 = vmatprep.subr.bf16.mxu0 0
    %2571 = vmatpush1.bf16.msra.mxu0 %v1796
    %2572 = vmatprep.subr.bf16.mxu0 0
    %2573 = vmatpush1.bf16.msra.mxu0 %v1797
    %2574 = vmatprep.mubr.bf16.mxu0 %v649
    %2575 = vmatmul.mubr.bf16.gmra.mrb[0].mxu0 %v648
    %v2576 = vpop.f32.mrb[0].mxu0
    %v2577 = vadd.f32 %v2537, %v2576
    %v2578 = vpop.f32.mrb[0].mxu0
    %v2579 = vpop.f32.mrb[0].mxu0
    %v2580 = vpop.f32.mrb[0].mxu0
    %2581 = vdwg.mxu0
    %2582 = vst [vmem:[#allocation2] sm:$0x3] %v2577
    // Predicated region
    $region14: #{forward.5} parent=1 // pred_check
      _
    $region15: #{forward.5} parent=1 // pred_check_branch
      %2584 = sbr.rel (0) target = $region17
    $region16: #{forward.5} parent=1 // pred_region
      %s2586 = ssub.s32 32, 32
      %2587 = vsyncadd [#allocation3], %s2586
      %s2589 = sshll.u32 [#allocation2], 4
      %s2590 = int_to_ptr.vmem [resolvable:$true] %s2589
      %2592 = dma.vmem_to_hbm [thread:$0]  %s2590, 32, %s3, [#allocation3]
    $region17: #{forward.5} parent=1 // pred_fallthru
      _
    // Predicated region
    $region18: #{forward.5} parent=1 // pred_check
      _
    $region19: #{forward.5} parent=1 // pred_check_branch
      %2594 = sbr.rel (0) target = $region21
    $region20: #{forward.5} parent=1 // pred_region
      %2595 = dma.done [#allocation3], 32
    $region21: #{forward.5} parent=1 // pred_fallthru
      _
    %2596 = vsyncpa [#allocation3], 1

</llo_original>
